<compile_context>
chip_gen: v7x
topology: tpu7x:2x2x1
jax: 0.10.0
libtpu: 0.0.40
codegen_flags: <defaults>
</compile_context>

<pallas_src>
import jax
import jax.numpy as jnp
from jax import lax
from jax.experimental import pallas as pl
from jax.experimental.pallas import tpu as pltpu


# --------------------------------------------------------------------------
# pltpu.roll direction is resolved once with a tiny probe kernel so the conv
# shifts cannot silently use the wrong sign; falls back to an explicit
# slice+concat rotation if the probe cannot run.
# roll_fwd(a, delta, n) returns y with y[..., s] = a[..., (s + delta) % n].
# --------------------------------------------------------------------------
_ROLL_FWD = None


def _probe_roll_convention():
    def _fallback(a, delta, n):
        k = delta % n
        if k == 0:
            return a
        return jnp.concatenate([a[..., k:], a[..., :k]], axis=-1)

    try:
        def _kern(x_ref, o_ref):
            o_ref[...] = pltpu.roll(x_ref[...], 1, 1)

        x = lax.broadcasted_iota(jnp.float32, (8, 128), 1)
        y = pl.pallas_call(
            _kern, out_shape=jax.ShapeDtypeStruct((8, 128), jnp.float32))(x)
        v = int(jax.device_get(y)[0, 1])
        if v == 0:    # numpy convention: y[i] = x[(i - shift) % n]
            return lambda a, delta, n: (
                a if delta % n == 0 else pltpu.roll(a, (-delta) % n, 1))
        if v == 2:    # reversed convention: y[i] = x[(i + shift) % n]
            return lambda a, delta, n: (
                a if delta % n == 0 else pltpu.roll(a, delta % n, 1))
    except Exception:
        pass
    return _fallback


def _get_roll_fwd():
    global _ROLL_FWD
    if _ROLL_FWD is None:
        _ROLL_FWD = _probe_roll_convention()
    return _ROLL_FWD


def _round_up(v, m):
    return ((v + m - 1) // m) * m


# --------------------------------------------------------------------------
# Hoisted boundary masks: mask[(dy+3)*7 + (dx+3), s] = 1 iff the tap at
# spatial offset (dy, dx) from flattened position s stays inside the image.
# Built once in the wrapper (XLA constant-folds it); zero-padding semantics.
# --------------------------------------------------------------------------
_MAXP = 3  # largest padding (7x7 branch)


def _build_tap_masks(H, W):
    s = jnp.arange(H * W, dtype=jnp.int32)
    row = s // W
    col = s % W
    rows = []
    for dy in range(-_MAXP, _MAXP + 1):
        for dx in range(-_MAXP, _MAXP + 1):
            ok = ((row + dy >= 0) & (row + dy < H) &
                  (col + dx >= 0) & (col + dx < W))
            rows.append(ok)
    return jnp.stack(rows, 0).astype(jnp.float32)      # (49, HW)


# --------------------------------------------------------------------------
# Fused SANetCore kernel (one batch element per grid step).
# --------------------------------------------------------------------------
def _make_sanet_kernel(H, W, bo_p, mid_p, roll_fwd):
    HW = H * W

    def kernel(x_ref, masks_ref, ws1_ref, bs1_ref,
               w3_ref, b3_ref, w5_ref, b5_ref, w7_ref, b7_ref,
               o_ref, patch_ref):
        x = x_ref[0]                                   # (cin, HW) bf16

        # Fused stage 1: one MXU pass produces the 1x1 branch output AND the
        # three 1x1 reductions t3/t5/t7 (row blocks are 8-aligned).
        z = jnp.dot(ws1_ref[...], x, preferred_element_type=jnp.float32)
        z = jnp.maximum(z + bs1_ref[...], 0.0)          # (bo_p+3*mid_p, HW) f32

        # 1x1 branch -> output rows [0, bo_p)
        o_ref[0, 0:bo_p, :] = z[0:bo_p, :].astype(o_ref.dtype)

        def branch(w_ref, b_ref, t, k, row0):
            # im2col by lane-roll: each shifted+masked tap is cast to bf16
            # and stored into the (16-row aligned) bf16 patch scratch, then
            # ONE MXU matmul (bo_p, k*k*mid_p) x (k*k*mid_p, HW).
            p = k // 2
            idx = 0
            for kh in range(k):
                dy = kh - p
                for kw in range(k):
                    dx = kw - p
                    if dy == 0 and dx == 0:
                        tap = t
                    else:
                        mi = (dy + _MAXP) * (2 * _MAXP + 1) + (dx + _MAXP)
                        m = masks_ref[mi:mi + 1, :]      # (1, HW)
                        tap = roll_fwd(t, dy * W + dx, HW) * m
                    patch_ref[idx * mid_p:(idx + 1) * mid_p, :] = (
                        tap.astype(jnp.bfloat16))
                    idx += 1
            patches = patch_ref[0:k * k * mid_p, :]
            y = jnp.dot(w_ref[...], patches,
                        preferred_element_type=jnp.float32)
            o_ref[0, row0:row0 + bo_p, :] = (
                jnp.maximum(y + b_ref[...], 0.0).astype(o_ref.dtype))

        branch(w3_ref, b3_ref, z[bo_p:bo_p + mid_p, :], 3, bo_p)
        branch(w5_ref, b5_ref, z[bo_p + mid_p:bo_p + 2 * mid_p, :], 5, 2 * bo_p)
        branch(w7_ref, b7_ref, z[bo_p + 2 * mid_p:bo_p + 3 * mid_p, :], 7,
               3 * bo_p)

    return kernel


# --------------------------------------------------------------------------
# Parameters (HWIO weights) and forward wrapper (NCHW in / NCHW out).
# --------------------------------------------------------------------------
def init_sanet_core_params(key, in_channels, out_channels):
    assert out_channels % 4 == 0, "SANetCore requires out_channels % 4 == 0"
    branch_out = out_channels // 4
    mid = 2 * branch_out

    def conv_params(k, kh, kw, cin, cout):
        kw_key, kb_key = jax.random.split(k)
        w = 0.1 * jax.random.normal(kw_key, (kh, kw, cin, cout), jnp.float32)
        bias = 0.1 * jax.random.normal(kb_key, (cout,), jnp.float32)
        return w, bias

    keys = jax.random.split(key, 7)
    p = {}
    p["w1x1"], p["b1x1"] = conv_params(keys[0], 1, 1, in_channels, branch_out)
    p["w3_1"], p["b3_1"] = conv_params(keys[1], 1, 1, in_channels, mid)
    p["w3_2"], p["b3_2"] = conv_params(keys[2], 3, 3, mid, branch_out)
    p["w5_1"], p["b5_1"] = conv_params(keys[3], 1, 1, in_channels, mid)
    p["w5_2"], p["b5_2"] = conv_params(keys[4], 5, 5, mid, branch_out)
    p["w7_1"], p["b7_1"] = conv_params(keys[5], 1, 1, in_channels, mid)
    p["w7_2"], p["b7_2"] = conv_params(keys[6], 7, 7, mid, branch_out)
    return p


def sanet_core_forward(x_nchw, params):
    """SANetCore forward: single fused Pallas call. NCHW in / NCHW out."""
    N, cin, H, W = x_nchw.shape
    HW = H * W
    bo = params["w1x1"].shape[-1]
    mid = params["w3_1"].shape[-1]
    cout = 4 * bo
    bo_p = _round_up(bo, 8)           # 8-aligned output row blocks (f32)
    mid_p = _round_up(mid, 16)        # 16-aligned bf16 patch row blocks
    S1 = bo_p + 3 * mid_p
    co_p = 4 * bo_p
    out_dt = x_nchw.dtype
    mxdt = jnp.bfloat16
    f32 = jnp.float32

    # ---- trace-time weight repacking (lane-dense, bf16, channel padded) ----
    def t1x1(w):                      # (1,1,cin,co) -> (co, cin)
        return w.reshape(cin, -1).T.astype(f32)

    ws1 = jnp.zeros((S1, cin), f32)
    ws1 = ws1.at[0:bo].set(t1x1(params["w1x1"]))
    ws1 = ws1.at[bo_p:bo_p + mid].set(t1x1(params["w3_1"]))
    ws1 = ws1.at[bo_p + mid_p:bo_p + mid_p + mid].set(t1x1(params["w5_1"]))
    ws1 = ws1.at[bo_p + 2 * mid_p:bo_p + 2 * mid_p + mid].set(
        t1x1(params["w7_1"]))
    bs1 = jnp.zeros((S1, 1), f32)
    bs1 = bs1.at[0:bo, 0].set(params["b1x1"])
    bs1 = bs1.at[bo_p:bo_p + mid, 0].set(params["b3_1"])
    bs1 = bs1.at[bo_p + mid_p:bo_p + mid_p + mid, 0].set(params["b5_1"])
    bs1 = bs1.at[bo_p + 2 * mid_p:bo_p + 2 * mid_p + mid, 0].set(
        params["b7_1"])
    ws1 = ws1.astype(mxdt)

    def pack_spatial(w, b):           # (k,k,mid,bo) -> (bo_p, k*k*mid_p)
        k = w.shape[0]
        wp = jnp.zeros((k, k, mid_p, bo_p), f32).at[:, :, :mid, :bo].set(w)
        wm = wp.reshape(k * k * mid_p, bo_p).T.astype(mxdt)
        bm = jnp.zeros((bo_p, 1), f32).at[:bo, 0].set(b)
        return wm, bm

    w3b, b3b = pack_spatial(params["w3_2"], params["b3_2"])
    w5b, b5b = pack_spatial(params["w5_2"], params["b5_2"])
    w7b, b7b = pack_spatial(params["w7_2"], params["b7_2"])

    masks = _build_tap_masks(H, W)                    # (49, HW) constant
    x_flat = x_nchw.reshape(N, cin, HW).astype(mxdt)  # spatial in lanes, bf16

    roll_fwd = _get_roll_fwd()
    kernel = _make_sanet_kernel(H, W, bo_p, mid_p, roll_fwd)

    args = (x_flat, masks, ws1, bs1, w3b, b3b, w5b, b5b, w7b, b7b)

    def _const_spec(a):
        nd = a.ndim
        return pl.BlockSpec(a.shape, lambda n, _nd=nd: (0,) * _nd)

    in_specs = [pl.BlockSpec((1, cin, HW), lambda n: (n, 0, 0))]
    in_specs += [_const_spec(a) for a in args[1:]]

    # Explicit VMEM budget: bf16 patch scratch + double-buffered x/out blocks
    # + resident constants, with headroom for relayout temporaries.
    vmem_est = (49 * mid_p * HW * 2
                + 2 * (cin * HW * 2 + co_p * HW * 4)
                + 2 * sum(int(a.size) * a.dtype.itemsize for a in args[1:]))
    vmem_limit = int(min(32 * 2 ** 20, max(16 * 2 ** 20, 2 * vmem_est)))

    out_p = pl.pallas_call(
        kernel,
        out_shape=jax.ShapeDtypeStruct((N, co_p, HW), out_dt),
        grid=(N,),
        in_specs=in_specs,
        out_specs=pl.BlockSpec((1, co_p, HW), lambda n: (n, 0, 0)),
        scratch_shapes=[pltpu.VMEM((49 * mid_p, HW), jnp.bfloat16)],
        compiler_params=pltpu.CompilerParams(
            dimension_semantics=("parallel",),
            vmem_limit_bytes=vmem_limit),
    )(*args)

    if bo_p == bo:
        return out_p.reshape(N, cout, H, W)
    # Drop the per-branch channel padding (no-op for bo % 8 == 0 configs).
    out = out_p.reshape(N, 4, bo_p, H, W)[:, :, :bo]
    return out.reshape(N, cout, H, W)


# ----------------------- pure-JAX reference (for checking) -----------------
def _ref_conv_relu(x_nhwc, w_hwio, b, padding):
    y = lax.conv_general_dilated(
        x_nhwc, w_hwio, window_strides=(1, 1),
        padding=[(padding, padding), (padding, padding)],
        dimension_numbers=("NHWC", "HWIO", "NHWC"))
    return jnp.maximum(y + b[None, None, None, :], 0.0)


def sanet_core_reference(x_nchw, params):
    x = jnp.transpose(x_nchw, (0, 2, 3, 1))
    b1 = _ref_conv_relu(x, params["w1x1"], params["b1x1"], 0)
    b3 = _ref_conv_relu(
        _ref_conv_relu(x, params["w3_1"], params["b3_1"], 0),
        params["w3_2"], params["b3_2"], 1)
    b5 = _ref_conv_relu(
        _ref_conv_relu(x, params["w5_1"], params["b5_1"], 0),
        params["w5_2"], params["b5_2"], 2)
    b7 = _ref_conv_relu(
        _ref_conv_relu(x, params["w7_1"], params["b7_1"], 0),
        params["w7_2"], params["b7_2"], 3)
    out = jnp.concatenate([b1, b3, b5, b7], axis=-1)
    return jnp.transpose(out, (0, 3, 1, 2))


if __name__ == "__main__":
    N, C_IN, H, W = 2, 4, 16, 16
    C_OUT = 8  # divisible by 4 -> branch_out = 2

    key = jax.random.PRNGKey(0)
    k_x, k_p = jax.random.split(key)
    x = jax.random.normal(k_x, (N, C_IN, H, W), jnp.float32)
    params = init_sanet_core_params(k_p, C_IN, C_OUT)

    _get_roll_fwd()  # resolve pltpu.roll convention once, outside jit tracing

    out = jax.block_until_ready(jax.jit(sanet_core_forward)(x, params))
    assert out.shape == (N, C_OUT, H, W), out.shape

    ref = jax.block_until_ready(sanet_core_reference(x, params))
    max_err = float(jnp.max(jnp.abs(out - ref)))
    # bf16 MXU operands (f32 accumulate) vs the f32 reference: tolerance
    # loosened accordingly (49-tap 7x7 accumulations dominate the error).
    assert jnp.allclose(out, ref, rtol=2e-2, atol=2e-2), max_err

    print("KERNEL_OK")
</pallas_src>

<mosaic_0001>
module attributes {stable_mosaic.version = 11 : i64} {
  func.func @_kern(%arg0: memref<8x128xf32, #tpu.memory_space<vmem>>, %arg1: memref<8x128xf32, #tpu.memory_space<vmem>>) attributes {dimension_semantics = [], scalar_prefetch = 0 : i64, scratch_operands = 0 : i64, tpu.core_type = #tpu.core_type<tc>} {
    %c0 = arith.constant 0 : index
    %c0_0 = arith.constant 0 : index
    %0 = vector.load %arg0[%c0, %c0_0] : memref<8x128xf32, #tpu.memory_space<vmem>>, vector<8x128xf32>
    %c1_i32 = arith.constant 1 : i32
    %1 = tpu.dynamic_rotate %0 by %c1_i32 dim 1 : vector<8x128xf32>, i32 -> vector<8x128xf32>
    %c0_1 = arith.constant 0 : index
    %c0_2 = arith.constant 0 : index
    %2 = vector.load %arg1[%c0_1, %c0_2] : memref<8x128xf32, #tpu.memory_space<vmem>>, vector<8x128xf32>
    tpu.vector_store %arg1[%c0_1, %c0_2], %1 {strides = array<i32>} : memref<8x128xf32, #tpu.memory_space<vmem>>, vector<8x128xf32>,
    return
  }
}

module attributes {stable_mosaic.version = 11 : i64} {
  func.func @kernel(%arg0: i32, %arg1: memref<1x4x256xbf16, #tpu.memory_space<vmem>>, %arg2: memref<49x256xf32, #tpu.memory_space<vmem>>, %arg3: memref<56x4xbf16, #tpu.memory_space<vmem>>, %arg4: memref<56x1xf32, #tpu.memory_space<vmem>>, %arg5: memref<8x144xbf16, #tpu.memory_space<vmem>>, %arg6: memref<8x1xf32, #tpu.memory_space<vmem>>, %arg7: memref<8x400xbf16, #tpu.memory_space<vmem>>, %arg8: memref<8x1xf32, #tpu.memory_space<vmem>>, %arg9: memref<8x784xbf16, #tpu.memory_space<vmem>>, %arg10: memref<8x1xf32, #tpu.memory_space<vmem>>, %arg11: memref<1x32x256xf32, #tpu.memory_space<vmem>>, %arg12: memref<784x256xbf16, #tpu.memory_space<vmem>>) attributes {dimension_semantics = [#tpu.dimension_semantics<parallel>], iteration_bounds = array<i64: 2>, scalar_prefetch = 0 : i64, scratch_operands = 1 : i64, tpu.core_type = #tpu.core_type<tc>, window_params = [{transform_indices = @transform_0, window_bounds = array<i64: 1, 4, 256>}, {pipeline_mode = #tpu.pipeline_mode<synchronous>, transform_indices = @transform_1, window_bounds = array<i64: 49, 256>}, {pipeline_mode = #tpu.pipeline_mode<synchronous>, transform_indices = @transform_2, window_bounds = array<i64: 56, 4>}, {pipeline_mode = #tpu.pipeline_mode<synchronous>, transform_indices = @transform_3, window_bounds = array<i64: 56, 1>}, {pipeline_mode = #tpu.pipeline_mode<synchronous>, transform_indices = @transform_4, window_bounds = array<i64: 8, 144>}, {pipeline_mode = #tpu.pipeline_mode<synchronous>, transform_indices = @transform_5, window_bounds = array<i64: 8, 1>}, {pipeline_mode = #tpu.pipeline_mode<synchronous>, transform_indices = @transform_6, window_bounds = array<i64: 8, 400>}, {pipeline_mode = #tpu.pipeline_mode<synchronous>, transform_indices = @transform_7, window_bounds = array<i64: 8, 1>}, {pipeline_mode = #tpu.pipeline_mode<synchronous>, transform_indices = @transform_8, window_bounds = array<i64: 8, 784>}, {pipeline_mode = #tpu.pipeline_mode<synchronous>, transform_indices = @transform_9, window_bounds = array<i64: 8, 1>}, {transform_indices = @transform_10, window_bounds = array<i64: 1, 32, 256>}]} {
    %c0 = arith.constant 0 : index
    %c0_0 = arith.constant 0 : index
    %c0_1 = arith.constant 0 : index
    %0 = vector.load %arg1[%c0, %c0_0, %c0_1] : memref<1x4x256xbf16, #tpu.memory_space<vmem>>, vector<1x4x256xbf16>
    %1 = vector.shape_cast %0 : vector<1x4x256xbf16> to vector<4x256xbf16>
    %c0_2 = arith.constant 0 : index
    %c0_3 = arith.constant 0 : index
    %2 = vector.load %arg3[%c0_2, %c0_3] : memref<56x4xbf16, #tpu.memory_space<vmem>>, vector<56x4xbf16>
    %cst = arith.constant dense<0.000000e+00> : vector<56x256xf32>
    %3 = tpu.matmul %2, %1, %cst {dimension_numbers = #tpu.dot_dimension_numbers<[1], [0], [0], [1], [0, 0, 1, 1], [], []>} : vector<56x4xbf16>, vector<4x256xbf16>, vector<56x256xf32> -> vector<56x256xf32>
    %c0_4 = arith.constant 0 : index
    %c0_5 = arith.constant 0 : index
    %4 = vector.load %arg4[%c0_4, %c0_5] : memref<56x1xf32, #tpu.memory_space<vmem>>, vector<56x1xf32>
    %5 = vector.broadcast %4 : vector<56x1xf32> to vector<56x256xf32>
    %6 = arith.addf %3, %5 : vector<56x256xf32>
    %cst_6 = arith.constant 0.000000e+00 : f32
    %7 = vector.broadcast %cst_6 : f32 to vector<56x256xf32>
    %8 = arith.maximumf %6, %7 : vector<56x256xf32>
    %9 = vector.extract_strided_slice %8 {offsets = [0, 0], sizes = [8, 256], strides = [1, 1]} : vector<56x256xf32> to vector<8x256xf32>
    %c0_7 = arith.constant 0 : index
    %c0_8 = arith.constant 0 : index
    %c0_9 = arith.constant 0 : index
    %10 = vector.load %arg11[%c0_7, %c0_8, %c0_9] : memref<1x32x256xf32, #tpu.memory_space<vmem>>, vector<1x8x256xf32>
    %11 = vector.shape_cast %10 : vector<1x8x256xf32> to vector<8x256xf32>
    %12 = vector.shape_cast %9 : vector<8x256xf32> to vector<1x8x256xf32>
    tpu.vector_store %arg11[%c0_7, %c0_8, %c0_9], %12 {strides = array<i32>} : memref<1x32x256xf32, #tpu.memory_space<vmem>>, vector<1x8x256xf32>,
    %13 = vector.extract_strided_slice %8 {offsets = [8, 0], sizes = [16, 256], strides = [1, 1]} : vector<56x256xf32> to vector<16x256xf32>
    %c16 = arith.constant 16 : index
    %c0_10 = arith.constant 0 : index
    %14 = vector.load %arg2[%c16, %c0_10] : memref<49x256xf32, #tpu.memory_space<vmem>>, vector<1x256xf32>
    %15 = vector.extract_strided_slice %13 {offsets = [0, 239], sizes = [16, 17], strides = [1, 1]} : vector<16x256xf32> to vector<16x17xf32>
    %16 = vector.extract_strided_slice %13 {offsets = [0, 0], sizes = [16, 239], strides = [1, 1]} : vector<16x256xf32> to vector<16x239xf32>
    %17 = tpu.concatenate %15, %16 in 1 : vector<16x17xf32>, vector<16x239xf32> -> vector<16x256xf32>
    %18 = vector.broadcast %14 : vector<1x256xf32> to vector<16x256xf32>
    %19 = arith.mulf %17, %18 : vector<16x256xf32>
    %20 = arith.truncf %19 : vector<16x256xf32> to vector<16x256xbf16>
    %c0_11 = arith.constant 0 : index
    %c0_12 = arith.constant 0 : index
    %21 = vector.load %arg12[%c0_11, %c0_12] : memref<784x256xbf16, #tpu.memory_space<vmem>>, vector<16x256xbf16>
    tpu.vector_store %arg12[%c0_11, %c0_12], %20 {strides = array<i32>} : memref<784x256xbf16, #tpu.memory_space<vmem>>, vector<16x256xbf16>,
    %c17 = arith.constant 17 : index
    %c0_13 = arith.constant 0 : index
    %22 = vector.load %arg2[%c17, %c0_13] : memref<49x256xf32, #tpu.memory_space<vmem>>, vector<1x256xf32>
    %23 = vector.extract_strided_slice %13 {offsets = [0, 240], sizes = [16, 16], strides = [1, 1]} : vector<16x256xf32> to vector<16x16xf32>
    %24 = vector.extract_strided_slice %13 {offsets = [0, 0], sizes = [16, 240], strides = [1, 1]} : vector<16x256xf32> to vector<16x240xf32>
    %25 = tpu.concatenate %23, %24 in 1 : vector<16x16xf32>, vector<16x240xf32> -> vector<16x256xf32>
    %26 = vector.broadcast %22 : vector<1x256xf32> to vector<16x256xf32>
    %27 = arith.mulf %25, %26 : vector<16x256xf32>
    %28 = arith.truncf %27 : vector<16x256xf32> to vector<16x256xbf16>
    %c16_14 = arith.constant 16 : index
    %c0_15 = arith.constant 0 : index
    %29 = vector.load %arg12[%c16_14, %c0_15] : memref<784x256xbf16, #tpu.memory_space<vmem>>, vector<16x256xbf16>
    tpu.vector_store %arg12[%c16_14, %c0_15], %28 {strides = array<i32>} : memref<784x256xbf16, #tpu.memory_space<vmem>>, vector<16x256xbf16>,
    %c18 = arith.constant 18 : index
    %c0_16 = arith.constant 0 : index
    %30 = vector.load %arg2[%c18, %c0_16] : memref<49x256xf32, #tpu.memory_space<vmem>>, vector<1x256xf32>
    %31 = vector.extract_strided_slice %13 {offsets = [0, 241], sizes = [16, 15], strides = [1, 1]} : vector<16x256xf32> to vector<16x15xf32>
    %32 = vector.extract_strided_slice %13 {offsets = [0, 0], sizes = [16, 241], strides = [1, 1]} : vector<16x256xf32> to vector<16x241xf32>
    %33 = tpu.concatenate %31, %32 in 1 : vector<16x15xf32>, vector<16x241xf32> -> vector<16x256xf32>
    %34 = vector.broadcast %30 : vector<1x256xf32> to vector<16x256xf32>
    %35 = arith.mulf %33, %34 : vector<16x256xf32>
    %36 = arith.truncf %35 : vector<16x256xf32> to vector<16x256xbf16>
    %c32 = arith.constant 32 : index
    %c0_17 = arith.constant 0 : index
    %37 = vector.load %arg12[%c32, %c0_17] : memref<784x256xbf16, #tpu.memory_space<vmem>>, vector<16x256xbf16>
    tpu.vector_store %arg12[%c32, %c0_17], %36 {strides = array<i32>} : memref<784x256xbf16, #tpu.memory_space<vmem>>, vector<16x256xbf16>,
    %c23 = arith.constant 23 : index
    %c0_18 = arith.constant 0 : index
    %38 = vector.load %arg2[%c23, %c0_18] : memref<49x256xf32, #tpu.memory_space<vmem>>, vector<1x256xf32>
    %39 = vector.extract_strided_slice %13 {offsets = [0, 255], sizes = [16, 1], strides = [1, 1]} : vector<16x256xf32> to vector<16x1xf32>
    %40 = vector.extract_strided_slice %13 {offsets = [0, 0], sizes = [16, 255], strides = [1, 1]} : vector<16x256xf32> to vector<16x255xf32>
    %41 = tpu.concatenate %39, %40 in 1 : vector<16x1xf32>, vector<16x255xf32> -> vector<16x256xf32>
    %42 = vector.broadcast %38 : vector<1x256xf32> to vector<16x256xf32>
    %43 = arith.mulf %41, %42 : vector<16x256xf32>
    %44 = arith.truncf %43 : vector<16x256xf32> to vector<16x256xbf16>
    %c48 = arith.constant 48 : index
    %c0_19 = arith.constant 0 : index
    %45 = vector.load %arg12[%c48, %c0_19] : memref<784x256xbf16, #tpu.memory_space<vmem>>, vector<16x256xbf16>
    tpu.vector_store %arg12[%c48, %c0_19], %44 {strides = array<i32>} : memref<784x256xbf16, #tpu.memory_space<vmem>>, vector<16x256xbf16>,
    %46 = arith.truncf %13 : vector<16x256xf32> to vector<16x256xbf16>
    %c64 = arith.constant 64 : index
    %c0_20 = arith.constant 0 : index
    %47 = vector.load %arg12[%c64, %c0_20] : memref<784x256xbf16, #tpu.memory_space<vmem>>, vector<16x256xbf16>
    tpu.vector_store %arg12[%c64, %c0_20], %46 {strides = array<i32>} : memref<784x256xbf16, #tpu.memory_space<vmem>>, vector<16x256xbf16>,
    %c25 = arith.constant 25 : index
    %c0_21 = arith.constant 0 : index
    %48 = vector.load %arg2[%c25, %c0_21] : memref<49x256xf32, #tpu.memory_space<vmem>>, vector<1x256xf32>
    %49 = vector.extract_strided_slice %13 {offsets = [0, 1], sizes = [16, 255], strides = [1, 1]} : vector<16x256xf32> to vector<16x255xf32>
    %50 = vector.extract_strided_slice %13 {offsets = [0, 0], sizes = [16, 1], strides = [1, 1]} : vector<16x256xf32> to vector<16x1xf32>
    %51 = tpu.concatenate %49, %50 in 1 : vector<16x255xf32>, vector<16x1xf32> -> vector<16x256xf32>
    %52 = vector.broadcast %48 : vector<1x256xf32> to vector<16x256xf32>
    %53 = arith.mulf %51, %52 : vector<16x256xf32>
    %54 = arith.truncf %53 : vector<16x256xf32> to vector<16x256xbf16>
    %c80 = arith.constant 80 : index
    %c0_22 = arith.constant 0 : index
    %55 = vector.load %arg12[%c80, %c0_22] : memref<784x256xbf16, #tpu.memory_space<vmem>>, vector<16x256xbf16>
    tpu.vector_store %arg12[%c80, %c0_22], %54 {strides = array<i32>} : memref<784x256xbf16, #tpu.memory_space<vmem>>, vector<16x256xbf16>,
    %c30 = arith.constant 30 : index
    %c0_23 = arith.constant 0 : index
    %56 = vector.load %arg2[%c30, %c0_23] : memref<49x256xf32, #tpu.memory_space<vmem>>, vector<1x256xf32>
    %57 = vector.extract_strided_slice %13 {offsets = [0, 15], sizes = [16, 241], strides = [1, 1]} : vector<16x256xf32> to vector<16x241xf32>
    %58 = vector.extract_strided_slice %13 {offsets = [0, 0], sizes = [16, 15], strides = [1, 1]} : vector<16x256xf32> to vector<16x15xf32>
    %59 = tpu.concatenate %57, %58 in 1 : vector<16x241xf32>, vector<16x15xf32> -> vector<16x256xf32>
    %60 = vector.broadcast %56 : vector<1x256xf32> to vector<16x256xf32>
    %61 = arith.mulf %59, %60 : vector<16x256xf32>
    %62 = arith.truncf %61 : vector<16x256xf32> to vector<16x256xbf16>
    %c96 = arith.constant 96 : index
    %c0_24 = arith.constant 0 : index
    %63 = vector.load %arg12[%c96, %c0_24] : memref<784x256xbf16, #tpu.memory_space<vmem>>, vector<16x256xbf16>
    tpu.vector_store %arg12[%c96, %c0_24], %62 {strides = array<i32>} : memref<784x256xbf16, #tpu.memory_space<vmem>>, vector<16x256xbf16>,
    %c31 = arith.constant 31 : index
    %c0_25 = arith.constant 0 : index
    %64 = vector.load %arg2[%c31, %c0_25] : memref<49x256xf32, #tpu.memory_space<vmem>>, vector<1x256xf32>
    %65 = vector.extract_strided_slice %13 {offsets = [0, 16], sizes = [16, 240], strides = [1, 1]} : vector<16x256xf32> to vector<16x240xf32>
    %66 = vector.extract_strided_slice %13 {offsets = [0, 0], sizes = [16, 16], strides = [1, 1]} : vector<16x256xf32> to vector<16x16xf32>
    %67 = tpu.concatenate %65, %66 in 1 : vector<16x240xf32>, vector<16x16xf32> -> vector<16x256xf32>
    %68 = vector.broadcast %64 : vector<1x256xf32> to vector<16x256xf32>
    %69 = arith.mulf %67, %68 : vector<16x256xf32>
    %70 = arith.truncf %69 : vector<16x256xf32> to vector<16x256xbf16>
    %c112 = arith.constant 112 : index
    %c0_26 = arith.constant 0 : index
    %71 = vector.load %arg12[%c112, %c0_26] : memref<784x256xbf16, #tpu.memory_space<vmem>>, vector<16x256xbf16>
    tpu.vector_store %arg12[%c112, %c0_26], %70 {strides = array<i32>} : memref<784x256xbf16, #tpu.memory_space<vmem>>, vector<16x256xbf16>,
    %c32_27 = arith.constant 32 : index
    %c0_28 = arith.constant 0 : index
    %72 = vector.load %arg2[%c32_27, %c0_28] : memref<49x256xf32, #tpu.memory_space<vmem>>, vector<1x256xf32>
    %73 = vector.extract_strided_slice %13 {offsets = [0, 17], sizes = [16, 239], strides = [1, 1]} : vector<16x256xf32> to vector<16x239xf32>
    %74 = vector.extract_strided_slice %13 {offsets = [0, 0], sizes = [16, 17], strides = [1, 1]} : vector<16x256xf32> to vector<16x17xf32>
    %75 = tpu.concatenate %73, %74 in 1 : vector<16x239xf32>, vector<16x17xf32> -> vector<16x256xf32>
    %76 = vector.broadcast %72 : vector<1x256xf32> to vector<16x256xf32>
    %77 = arith.mulf %75, %76 : vector<16x256xf32>
    %78 = arith.truncf %77 : vector<16x256xf32> to vector<16x256xbf16>
    %c128 = arith.constant 128 : index
    %c0_29 = arith.constant 0 : index
    %79 = vector.load %arg12[%c128, %c0_29] : memref<784x256xbf16, #tpu.memory_space<vmem>>, vector<16x256xbf16>
    tpu.vector_store %arg12[%c128, %c0_29], %78 {strides = array<i32>} : memref<784x256xbf16, #tpu.memory_space<vmem>>, vector<16x256xbf16>,
    %c0_30 = arith.constant 0 : index
    %c0_31 = arith.constant 0 : index
    %80 = vector.load %arg12[%c0_30, %c0_31] : memref<784x256xbf16, #tpu.memory_space<vmem>>, vector<144x256xbf16>
    %c0_32 = arith.constant 0 : index
    %c0_33 = arith.constant 0 : index
    %81 = vector.load %arg5[%c0_32, %c0_33] : memref<8x144xbf16, #tpu.memory_space<vmem>>, vector<8x144xbf16>
    %cst_34 = arith.constant dense<0.000000e+00> : vector<8x256xf32>
    %82 = tpu.matmul %81, %80, %cst_34 {dimension_numbers = #tpu.dot_dimension_numbers<[1], [0], [0], [1], [0, 0, 1, 1], [], []>} : vector<8x144xbf16>, vector<144x256xbf16>, vector<8x256xf32> -> vector<8x256xf32>
    %c0_35 = arith.constant 0 : index
    %c0_36 = arith.constant 0 : index
    %83 = vector.load %arg6[%c0_35, %c0_36] : memref<8x1xf32, #tpu.memory_space<vmem>>, vector<8x1xf32>
    %84 = vector.broadcast %83 : vector<8x1xf32> to vector<8x256xf32>
    %85 = arith.addf %82, %84 : vector<8x256xf32>
    %cst_37 = arith.constant 0.000000e+00 : f32
    %86 = vector.broadcast %cst_37 : f32 to vector<8x256xf32>
    %87 = arith.maximumf %85, %86 : vector<8x256xf32>
    %c0_38 = arith.constant 0 : index
    %c8 = arith.constant 8 : index
    %c0_39 = arith.constant 0 : index
    %88 = vector.load %arg11[%c0_38, %c8, %c0_39] : memref<1x32x256xf32, #tpu.memory_space<vmem>>, vector<1x8x256xf32>
    %89 = vector.shape_cast %88 : vector<1x8x256xf32> to vector<8x256xf32>
    %90 = vector.shape_cast %87 : vector<8x256xf32> to vector<1x8x256xf32>
    tpu.vector_store %arg11[%c0_38, %c8, %c0_39], %90 {strides = array<i32>} : memref<1x32x256xf32, #tpu.memory_space<vmem>>, vector<1x8x256xf32>,
    %91 = vector.extract_strided_slice %8 {offsets = [24, 0], sizes = [16, 256], strides = [1, 1]} : vector<56x256xf32> to vector<16x256xf32>
    %c8_40 = arith.constant 8 : index
    %c0_41 = arith.constant 0 : index
    %92 = vector.load %arg2[%c8_40, %c0_41] : memref<49x256xf32, #tpu.memory_space<vmem>>, vector<1x256xf32>
    %93 = vector.extract_strided_slice %91 {offsets = [0, 222], sizes = [16, 34], strides = [1, 1]} : vector<16x256xf32> to vector<16x34xf32>
    %94 = vector.extract_strided_slice %91 {offsets = [0, 0], sizes = [16, 222], strides = [1, 1]} : vector<16x256xf32> to vector<16x222xf32>
    %95 = tpu.concatenate %93, %94 in 1 : vector<16x34xf32>, vector<16x222xf32> -> vector<16x256xf32>
    %96 = vector.broadcast %92 : vector<1x256xf32> to vector<16x256xf32>
    %97 = arith.mulf %95, %96 : vector<16x256xf32>
    %98 = arith.truncf %97 : vector<16x256xf32> to vector<16x256xbf16>
    %c0_42 = arith.constant 0 : index
    %c0_43 = arith.constant 0 : index
    %99 = vector.load %arg12[%c0_42, %c0_43] : memref<784x256xbf16, #tpu.memory_space<vmem>>, vector<16x256xbf16>
    tpu.vector_store %arg12[%c0_42, %c0_43], %98 {strides = array<i32>} : memref<784x256xbf16, #tpu.memory_space<vmem>>, vector<16x256xbf16>,
    %c9 = arith.constant 9 : index
    %c0_44 = arith.constant 0 : index
    %100 = vector.load %arg2[%c9, %c0_44] : memref<49x256xf32, #tpu.memory_space<vmem>>, vector<1x256xf32>
    %101 = vector.extract_strided_slice %91 {offsets = [0, 223], sizes = [16, 33], strides = [1, 1]} : vector<16x256xf32> to vector<16x33xf32>
    %102 = vector.extract_strided_slice %91 {offsets = [0, 0], sizes = [16, 223], strides = [1, 1]} : vector<16x256xf32> to vector<16x223xf32>
    %103 = tpu.concatenate %101, %102 in 1 : vector<16x33xf32>, vector<16x223xf32> -> vector<16x256xf32>
    %104 = vector.broadcast %100 : vector<1x256xf32> to vector<16x256xf32>
    %105 = arith.mulf %103, %104 : vector<16x256xf32>
    %106 = arith.truncf %105 : vector<16x256xf32> to vector<16x256xbf16>
    %c16_45 = arith.constant 16 : index
    %c0_46 = arith.constant 0 : index
    %107 = vector.load %arg12[%c16_45, %c0_46] : memref<784x256xbf16, #tpu.memory_space<vmem>>, vector<16x256xbf16>
    tpu.vector_store %arg12[%c16_45, %c0_46], %106 {strides = array<i32>} : memref<784x256xbf16, #tpu.memory_space<vmem>>, vector<16x256xbf16>,
    %c10 = arith.constant 10 : index
    %c0_47 = arith.constant 0 : index
    %108 = vector.load %arg2[%c10, %c0_47] : memref<49x256xf32, #tpu.memory_space<vmem>>, vector<1x256xf32>
    %109 = vector.extract_strided_slice %91 {offsets = [0, 224], sizes = [16, 32], strides = [1, 1]} : vector<16x256xf32> to vector<16x32xf32>
    %110 = vector.extract_strided_slice %91 {offsets = [0, 0], sizes = [16, 224], strides = [1, 1]} : vector<16x256xf32> to vector<16x224xf32>
    %111 = tpu.concatenate %109, %110 in 1 : vector<16x32xf32>, vector<16x224xf32> -> vector<16x256xf32>
    %112 = vector.broadcast %108 : vector<1x256xf32> to vector<16x256xf32>
    %113 = arith.mulf %111, %112 : vector<16x256xf32>
    %114 = arith.truncf %113 : vector<16x256xf32> to vector<16x256xbf16>
    %c32_48 = arith.constant 32 : index
    %c0_49 = arith.constant 0 : index
    %115 = vector.load %arg12[%c32_48, %c0_49] : memref<784x256xbf16, #tpu.memory_space<vmem>>, vector<16x256xbf16>
    tpu.vector_store %arg12[%c32_48, %c0_49], %114 {strides = array<i32>} : memref<784x256xbf16, #tpu.memory_space<vmem>>, vector<16x256xbf16>,
    %c11 = arith.constant 11 : index
    %c0_50 = arith.constant 0 : index
    %116 = vector.load %arg2[%c11, %c0_50] : memref<49x256xf32, #tpu.memory_space<vmem>>, vector<1x256xf32>
    %117 = vector.extract_strided_slice %91 {offsets = [0, 225], sizes = [16, 31], strides = [1, 1]} : vector<16x256xf32> to vector<16x31xf32>
    %118 = vector.extract_strided_slice %91 {offsets = [0, 0], sizes = [16, 225], strides = [1, 1]} : vector<16x256xf32> to vector<16x225xf32>
    %119 = tpu.concatenate %117, %118 in 1 : vector<16x31xf32>, vector<16x225xf32> -> vector<16x256xf32>
    %120 = vector.broadcast %116 : vector<1x256xf32> to vector<16x256xf32>
    %121 = arith.mulf %119, %120 : vector<16x256xf32>
    %122 = arith.truncf %121 : vector<16x256xf32> to vector<16x256xbf16>
    %c48_51 = arith.constant 48 : index
    %c0_52 = arith.constant 0 : index
    %123 = vector.load %arg12[%c48_51, %c0_52] : memref<784x256xbf16, #tpu.memory_space<vmem>>, vector<16x256xbf16>
    tpu.vector_store %arg12[%c48_51, %c0_52], %122 {strides = array<i32>} : memref<784x256xbf16, #tpu.memory_space<vmem>>, vector<16x256xbf16>,
    %c12 = arith.constant 12 : index
    %c0_53 = arith.constant 0 : index
    %124 = vector.load %arg2[%c12, %c0_53] : memref<49x256xf32, #tpu.memory_space<vmem>>, vector<1x256xf32>
    %125 = vector.extract_strided_slice %91 {offsets = [0, 226], sizes = [16, 30], strides = [1, 1]} : vector<16x256xf32> to vector<16x30xf32>
    %126 = vector.extract_strided_slice %91 {offsets = [0, 0], sizes = [16, 226], strides = [1, 1]} : vector<16x256xf32> to vector<16x226xf32>
    %127 = tpu.concatenate %125, %126 in 1 : vector<16x30xf32>, vector<16x226xf32> -> vector<16x256xf32>
    %128 = vector.broadcast %124 : vector<1x256xf32> to vector<16x256xf32>
    %129 = arith.mulf %127, %128 : vector<16x256xf32>
    %130 = arith.truncf %129 : vector<16x256xf32> to vector<16x256xbf16>
    %c64_54 = arith.constant 64 : index
    %c0_55 = arith.constant 0 : index
    %131 = vector.load %arg12[%c64_54, %c0_55] : memref<784x256xbf16, #tpu.memory_space<vmem>>, vector<16x256xbf16>
    tpu.vector_store %arg12[%c64_54, %c0_55], %130 {strides = array<i32>} : memref<784x256xbf16, #tpu.memory_space<vmem>>, vector<16x256xbf16>,
    %c15 = arith.constant 15 : index
    %c0_56 = arith.constant 0 : index
    %132 = vector.load %arg2[%c15, %c0_56] : memref<49x256xf32, #tpu.memory_space<vmem>>, vector<1x256xf32>
    %133 = vector.extract_strided_slice %91 {offsets = [0, 238], sizes = [16, 18], strides = [1, 1]} : vector<16x256xf32> to vector<16x18xf32>
    %134 = vector.extract_strided_slice %91 {offsets = [0, 0], sizes = [16, 238], strides = [1, 1]} : vector<16x256xf32> to vector<16x238xf32>
    %135 = tpu.concatenate %133, %134 in 1 : vector<16x18xf32>, vector<16x238xf32> -> vector<16x256xf32>
    %136 = vector.broadcast %132 : vector<1x256xf32> to vector<16x256xf32>
    %137 = arith.mulf %135, %136 : vector<16x256xf32>
    %138 = arith.truncf %137 : vector<16x256xf32> to vector<16x256xbf16>
    %c80_57 = arith.constant 80 : index
    %c0_58 = arith.constant 0 : index
    %139 = vector.load %arg12[%c80_57, %c0_58] : memref<784x256xbf16, #tpu.memory_space<vmem>>, vector<16x256xbf16>
    tpu.vector_store %arg12[%c80_57, %c0_58], %138 {strides = array<i32>} : memref<784x256xbf16, #tpu.memory_space<vmem>>, vector<16x256xbf16>,
    %c16_59 = arith.constant 16 : index
    %c0_60 = arith.constant 0 : index
    %140 = vector.load %arg2[%c16_59, %c0_60] : memref<49x256xf32, #tpu.memory_space<vmem>>, vector<1x256xf32>
    %141 = vector.extract_strided_slice %91 {offsets = [0, 239], sizes = [16, 17], strides = [1, 1]} : vector<16x256xf32> to vector<16x17xf32>
    %142 = vector.extract_strided_slice %91 {offsets = [0, 0], sizes = [16, 239], strides = [1, 1]} : vector<16x256xf32> to vector<16x239xf32>
    %143 = tpu.concatenate %141, %142 in 1 : vector<16x17xf32>, vector<16x239xf32> -> vector<16x256xf32>
    %144 = vector.broadcast %140 : vector<1x256xf32> to vector<16x256xf32>
    %145 = arith.mulf %143, %144 : vector<16x256xf32>
    %146 = arith.truncf %145 : vector<16x256xf32> to vector<16x256xbf16>
    %c96_61 = arith.constant 96 : index
    %c0_62 = arith.constant 0 : index
    %147 = vector.load %arg12[%c96_61, %c0_62] : memref<784x256xbf16, #tpu.memory_space<vmem>>, vector<16x256xbf16>
    tpu.vector_store %arg12[%c96_61, %c0_62], %146 {strides = array<i32>} : memref<784x256xbf16, #tpu.memory_space<vmem>>, vector<16x256xbf16>,
    %c17_63 = arith.constant 17 : index
    %c0_64 = arith.constant 0 : index
    %148 = vector.load %arg2[%c17_63, %c0_64] : memref<49x256xf32, #tpu.memory_space<vmem>>, vector<1x256xf32>
    %149 = vector.extract_strided_slice %91 {offsets = [0, 240], sizes = [16, 16], strides = [1, 1]} : vector<16x256xf32> to vector<16x16xf32>
    %150 = vector.extract_strided_slice %91 {offsets = [0, 0], sizes = [16, 240], strides = [1, 1]} : vector<16x256xf32> to vector<16x240xf32>
    %151 = tpu.concatenate %149, %150 in 1 : vector<16x16xf32>, vector<16x240xf32> -> vector<16x256xf32>
    %152 = vector.broadcast %148 : vector<1x256xf32> to vector<16x256xf32>
    %153 = arith.mulf %151, %152 : vector<16x256xf32>
    %154 = arith.truncf %153 : vector<16x256xf32> to vector<16x256xbf16>
    %c112_65 = arith.constant 112 : index
    %c0_66 = arith.constant 0 : index
    %155 = vector.load %arg12[%c112_65, %c0_66] : memref<784x256xbf16, #tpu.memory_space<vmem>>, vector<16x256xbf16>
    tpu.vector_store %arg12[%c112_65, %c0_66], %154 {strides = array<i32>} : memref<784x256xbf16, #tpu.memory_space<vmem>>, vector<16x256xbf16>,
    %c18_67 = arith.constant 18 : index
    %c0_68 = arith.constant 0 : index
    %156 = vector.load %arg2[%c18_67, %c0_68] : memref<49x256xf32, #tpu.memory_space<vmem>>, vector<1x256xf32>
    %157 = vector.extract_strided_slice %91 {offsets = [0, 241], sizes = [16, 15], strides = [1, 1]} : vector<16x256xf32> to vector<16x15xf32>
    %158 = vector.extract_strided_slice %91 {offsets = [0, 0], sizes = [16, 241], strides = [1, 1]} : vector<16x256xf32> to vector<16x241xf32>
    %159 = tpu.concatenate %157, %158 in 1 : vector<16x15xf32>, vector<16x241xf32> -> vector<16x256xf32>
    %160 = vector.broadcast %156 : vector<1x256xf32> to vector<16x256xf32>
    %161 = arith.mulf %159, %160 : vector<16x256xf32>
    %162 = arith.truncf %161 : vector<16x256xf32> to vector<16x256xbf16>
    %c128_69 = arith.constant 128 : index
    %c0_70 = arith.constant 0 : index
    %163 = vector.load %arg12[%c128_69, %c0_70] : memref<784x256xbf16, #tpu.memory_space<vmem>>, vector<16x256xbf16>
    tpu.vector_store %arg12[%c128_69, %c0_70], %162 {strides = array<i32>} : memref<784x256xbf16, #tpu.memory_space<vmem>>, vector<16x256xbf16>,
    %c19 = arith.constant 19 : index
    %c0_71 = arith.constant 0 : index
    %164 = vector.load %arg2[%c19, %c0_71] : memref<49x256xf32, #tpu.memory_space<vmem>>, vector<1x256xf32>
    %165 = vector.extract_strided_slice %91 {offsets = [0, 242], sizes = [16, 14], strides = [1, 1]} : vector<16x256xf32> to vector<16x14xf32>
    %166 = vector.extract_strided_slice %91 {offsets = [0, 0], sizes = [16, 242], strides = [1, 1]} : vector<16x256xf32> to vector<16x242xf32>
    %167 = tpu.concatenate %165, %166 in 1 : vector<16x14xf32>, vector<16x242xf32> -> vector<16x256xf32>
    %168 = vector.broadcast %164 : vector<1x256xf32> to vector<16x256xf32>
    %169 = arith.mulf %167, %168 : vector<16x256xf32>
    %170 = arith.truncf %169 : vector<16x256xf32> to vector<16x256xbf16>
    %c144 = arith.constant 144 : index
    %c0_72 = arith.constant 0 : index
    %171 = vector.load %arg12[%c144, %c0_72] : memref<784x256xbf16, #tpu.memory_space<vmem>>, vector<16x256xbf16>
    tpu.vector_store %arg12[%c144, %c0_72], %170 {strides = array<i32>} : memref<784x256xbf16, #tpu.memory_space<vmem>>, vector<16x256xbf16>,
    %c22 = arith.constant 22 : index
    %c0_73 = arith.constant 0 : index
    %172 = vector.load %arg2[%c22, %c0_73] : memref<49x256xf32, #tpu.memory_space<vmem>>, vector<1x256xf32>
    %173 = vector.extract_strided_slice %91 {offsets = [0, 254], sizes = [16, 2], strides = [1, 1]} : vector<16x256xf32> to vector<16x2xf32>
    %174 = vector.extract_strided_slice %91 {offsets = [0, 0], sizes = [16, 254], strides = [1, 1]} : vector<16x256xf32> to vector<16x254xf32>
    %175 = tpu.concatenate %173, %174 in 1 : vector<16x2xf32>, vector<16x254xf32> -> vector<16x256xf32>
    %176 = vector.broadcast %172 : vector<1x256xf32> to vector<16x256xf32>
    %177 = arith.mulf %175, %176 : vector<16x256xf32>
    %178 = arith.truncf %177 : vector<16x256xf32> to vector<16x256xbf16>
    %c160 = arith.constant 160 : index
    %c0_74 = arith.constant 0 : index
    %179 = vector.load %arg12[%c160, %c0_74] : memref<784x256xbf16, #tpu.memory_space<vmem>>, vector<16x256xbf16>
    tpu.vector_store %arg12[%c160, %c0_74], %178 {strides = array<i32>} : memref<784x256xbf16, #tpu.memory_space<vmem>>, vector<16x256xbf16>,
    %c23_75 = arith.constant 23 : index
    %c0_76 = arith.constant 0 : index
    %180 = vector.load %arg2[%c23_75, %c0_76] : memref<49x256xf32, #tpu.memory_space<vmem>>, vector<1x256xf32>
    %181 = vector.extract_strided_slice %91 {offsets = [0, 255], sizes = [16, 1], strides = [1, 1]} : vector<16x256xf32> to vector<16x1xf32>
    %182 = vector.extract_strided_slice %91 {offsets = [0, 0], sizes = [16, 255], strides = [1, 1]} : vector<16x256xf32> to vector<16x255xf32>
    %183 = tpu.concatenate %181, %182 in 1 : vector<16x1xf32>, vector<16x255xf32> -> vector<16x256xf32>
    %184 = vector.broadcast %180 : vector<1x256xf32> to vector<16x256xf32>
    %185 = arith.mulf %183, %184 : vector<16x256xf32>
    %186 = arith.truncf %185 : vector<16x256xf32> to vector<16x256xbf16>
    %c176 = arith.constant 176 : index
    %c0_77 = arith.constant 0 : index
    %187 = vector.load %arg12[%c176, %c0_77] : memref<784x256xbf16, #tpu.memory_space<vmem>>, vector<16x256xbf16>
    tpu.vector_store %arg12[%c176, %c0_77], %186 {strides = array<i32>} : memref<784x256xbf16, #tpu.memory_space<vmem>>, vector<16x256xbf16>,
    %188 = arith.truncf %91 : vector<16x256xf32> to vector<16x256xbf16>
    %c192 = arith.constant 192 : index
    %c0_78 = arith.constant 0 : index
    %189 = vector.load %arg12[%c192, %c0_78] : memref<784x256xbf16, #tpu.memory_space<vmem>>, vector<16x256xbf16>
    tpu.vector_store %arg12[%c192, %c0_78], %188 {strides = array<i32>} : memref<784x256xbf16, #tpu.memory_space<vmem>>, vector<16x256xbf16>,
    %c25_79 = arith.constant 25 : index
    %c0_80 = arith.constant 0 : index
    %190 = vector.load %arg2[%c25_79, %c0_80] : memref<49x256xf32, #tpu.memory_space<vmem>>, vector<1x256xf32>
    %191 = vector.extract_strided_slice %91 {offsets = [0, 1], sizes = [16, 255], strides = [1, 1]} : vector<16x256xf32> to vector<16x255xf32>
    %192 = vector.extract_strided_slice %91 {offsets = [0, 0], sizes = [16, 1], strides = [1, 1]} : vector<16x256xf32> to vector<16x1xf32>
    %193 = tpu.concatenate %191, %192 in 1 : vector<16x255xf32>, vector<16x1xf32> -> vector<16x256xf32>
    %194 = vector.broadcast %190 : vector<1x256xf32> to vector<16x256xf32>
    %195 = arith.mulf %193, %194 : vector<16x256xf32>
    %196 = arith.truncf %195 : vector<16x256xf32> to vector<16x256xbf16>
    %c208 = arith.constant 208 : index
    %c0_81 = arith.constant 0 : index
    %197 = vector.load %arg12[%c208, %c0_81] : memref<784x256xbf16, #tpu.memory_space<vmem>>, vector<16x256xbf16>
    tpu.vector_store %arg12[%c208, %c0_81], %196 {strides = array<i32>} : memref<784x256xbf16, #tpu.memory_space<vmem>>, vector<16x256xbf16>,
    %c26 = arith.constant 26 : index
    %c0_82 = arith.constant 0 : index
    %198 = vector.load %arg2[%c26, %c0_82] : memref<49x256xf32, #tpu.memory_space<vmem>>, vector<1x256xf32>
    %199 = vector.extract_strided_slice %91 {offsets = [0, 2], sizes = [16, 254], strides = [1, 1]} : vector<16x256xf32> to vector<16x254xf32>
    %200 = vector.extract_strided_slice %91 {offsets = [0, 0], sizes = [16, 2], strides = [1, 1]} : vector<16x256xf32> to vector<16x2xf32>
    %201 = tpu.concatenate %199, %200 in 1 : vector<16x254xf32>, vector<16x2xf32> -> vector<16x256xf32>
    %202 = vector.broadcast %198 : vector<1x256xf32> to vector<16x256xf32>
    %203 = arith.mulf %201, %202 : vector<16x256xf32>
    %204 = arith.truncf %203 : vector<16x256xf32> to vector<16x256xbf16>
    %c224 = arith.constant 224 : index
    %c0_83 = arith.constant 0 : index
    %205 = vector.load %arg12[%c224, %c0_83] : memref<784x256xbf16, #tpu.memory_space<vmem>>, vector<16x256xbf16>
    tpu.vector_store %arg12[%c224, %c0_83], %204 {strides = array<i32>} : memref<784x256xbf16, #tpu.memory_space<vmem>>, vector<16x256xbf16>,
    %c29 = arith.constant 29 : index
    %c0_84 = arith.constant 0 : index
    %206 = vector.load %arg2[%c29, %c0_84] : memref<49x256xf32, #tpu.memory_space<vmem>>, vector<1x256xf32>
    %207 = vector.extract_strided_slice %91 {offsets = [0, 14], sizes = [16, 242], strides = [1, 1]} : vector<16x256xf32> to vector<16x242xf32>
    %208 = vector.extract_strided_slice %91 {offsets = [0, 0], sizes = [16, 14], strides = [1, 1]} : vector<16x256xf32> to vector<16x14xf32>
    %209 = tpu.concatenate %207, %208 in 1 : vector<16x242xf32>, vector<16x14xf32> -> vector<16x256xf32>
    %210 = vector.broadcast %206 : vector<1x256xf32> to vector<16x256xf32>
    %211 = arith.mulf %209, %210 : vector<16x256xf32>
    %212 = arith.truncf %211 : vector<16x256xf32> to vector<16x256xbf16>
    %c240 = arith.constant 240 : index
    %c0_85 = arith.constant 0 : index
    %213 = vector.load %arg12[%c240, %c0_85] : memref<784x256xbf16, #tpu.memory_space<vmem>>, vector<16x256xbf16>
    tpu.vector_store %arg12[%c240, %c0_85], %212 {strides = array<i32>} : memref<784x256xbf16, #tpu.memory_space<vmem>>, vector<16x256xbf16>,
    %c30_86 = arith.constant 30 : index
    %c0_87 = arith.constant 0 : index
    %214 = vector.load %arg2[%c30_86, %c0_87] : memref<49x256xf32, #tpu.memory_space<vmem>>, vector<1x256xf32>
    %215 = vector.extract_strided_slice %91 {offsets = [0, 15], sizes = [16, 241], strides = [1, 1]} : vector<16x256xf32> to vector<16x241xf32>
    %216 = vector.extract_strided_slice %91 {offsets = [0, 0], sizes = [16, 15], strides = [1, 1]} : vector<16x256xf32> to vector<16x15xf32>
    %217 = tpu.concatenate %215, %216 in 1 : vector<16x241xf32>, vector<16x15xf32> -> vector<16x256xf32>
    %218 = vector.broadcast %214 : vector<1x256xf32> to vector<16x256xf32>
    %219 = arith.mulf %217, %218 : vector<16x256xf32>
    %220 = arith.truncf %219 : vector<16x256xf32> to vector<16x256xbf16>
    %c256 = arith.constant 256 : index
    %c0_88 = arith.constant 0 : index
    %221 = vector.load %arg12[%c256, %c0_88] : memref<784x256xbf16, #tpu.memory_space<vmem>>, vector<16x256xbf16>
    tpu.vector_store %arg12[%c256, %c0_88], %220 {strides = array<i32>} : memref<784x256xbf16, #tpu.memory_space<vmem>>, vector<16x256xbf16>,
    %c31_89 = arith.constant 31 : index
    %c0_90 = arith.constant 0 : index
    %222 = vector.load %arg2[%c31_89, %c0_90] : memref<49x256xf32, #tpu.memory_space<vmem>>, vector<1x256xf32>
    %223 = vector.extract_strided_slice %91 {offsets = [0, 16], sizes = [16, 240], strides = [1, 1]} : vector<16x256xf32> to vector<16x240xf32>
    %224 = vector.extract_strided_slice %91 {offsets = [0, 0], sizes = [16, 16], strides = [1, 1]} : vector<16x256xf32> to vector<16x16xf32>
    %225 = tpu.concatenate %223, %224 in 1 : vector<16x240xf32>, vector<16x16xf32> -> vector<16x256xf32>
    %226 = vector.broadcast %222 : vector<1x256xf32> to vector<16x256xf32>
    %227 = arith.mulf %225, %226 : vector<16x256xf32>
    %228 = arith.truncf %227 : vector<16x256xf32> to vector<16x256xbf16>
    %c272 = arith.constant 272 : index
    %c0_91 = arith.constant 0 : index
    %229 = vector.load %arg12[%c272, %c0_91] : memref<784x256xbf16, #tpu.memory_space<vmem>>, vector<16x256xbf16>
    tpu.vector_store %arg12[%c272, %c0_91], %228 {strides = array<i32>} : memref<784x256xbf16, #tpu.memory_space<vmem>>, vector<16x256xbf16>,
    %c32_92 = arith.constant 32 : index
    %c0_93 = arith.constant 0 : index
    %230 = vector.load %arg2[%c32_92, %c0_93] : memref<49x256xf32, #tpu.memory_space<vmem>>, vector<1x256xf32>
    %231 = vector.extract_strided_slice %91 {offsets = [0, 17], sizes = [16, 239], strides = [1, 1]} : vector<16x256xf32> to vector<16x239xf32>
    %232 = vector.extract_strided_slice %91 {offsets = [0, 0], sizes = [16, 17], strides = [1, 1]} : vector<16x256xf32> to vector<16x17xf32>
    %233 = tpu.concatenate %231, %232 in 1 : vector<16x239xf32>, vector<16x17xf32> -> vector<16x256xf32>
    %234 = vector.broadcast %230 : vector<1x256xf32> to vector<16x256xf32>
    %235 = arith.mulf %233, %234 : vector<16x256xf32>
    %236 = arith.truncf %235 : vector<16x256xf32> to vector<16x256xbf16>
    %c288 = arith.constant 288 : index
    %c0_94 = arith.constant 0 : index
    %237 = vector.load %arg12[%c288, %c0_94] : memref<784x256xbf16, #tpu.memory_space<vmem>>, vector<16x256xbf16>
    tpu.vector_store %arg12[%c288, %c0_94], %236 {strides = array<i32>} : memref<784x256xbf16, #tpu.memory_space<vmem>>, vector<16x256xbf16>,
    %c33 = arith.constant 33 : index
    %c0_95 = arith.constant 0 : index
    %238 = vector.load %arg2[%c33, %c0_95] : memref<49x256xf32, #tpu.memory_space<vmem>>, vector<1x256xf32>
    %239 = vector.extract_strided_slice %91 {offsets = [0, 18], sizes = [16, 238], strides = [1, 1]} : vector<16x256xf32> to vector<16x238xf32>
    %240 = vector.extract_strided_slice %91 {offsets = [0, 0], sizes = [16, 18], strides = [1, 1]} : vector<16x256xf32> to vector<16x18xf32>
    %241 = tpu.concatenate %239, %240 in 1 : vector<16x238xf32>, vector<16x18xf32> -> vector<16x256xf32>
    %242 = vector.broadcast %238 : vector<1x256xf32> to vector<16x256xf32>
    %243 = arith.mulf %241, %242 : vector<16x256xf32>
    %244 = arith.truncf %243 : vector<16x256xf32> to vector<16x256xbf16>
    %c304 = arith.constant 304 : index
    %c0_96 = arith.constant 0 : index
    %245 = vector.load %arg12[%c304, %c0_96] : memref<784x256xbf16, #tpu.memory_space<vmem>>, vector<16x256xbf16>
    tpu.vector_store %arg12[%c304, %c0_96], %244 {strides = array<i32>} : memref<784x256xbf16, #tpu.memory_space<vmem>>, vector<16x256xbf16>,
    %c36 = arith.constant 36 : index
    %c0_97 = arith.constant 0 : index
    %246 = vector.load %arg2[%c36, %c0_97] : memref<49x256xf32, #tpu.memory_space<vmem>>, vector<1x256xf32>
    %247 = vector.extract_strided_slice %91 {offsets = [0, 30], sizes = [16, 226], strides = [1, 1]} : vector<16x256xf32> to vector<16x226xf32>
    %248 = vector.extract_strided_slice %91 {offsets = [0, 0], sizes = [16, 30], strides = [1, 1]} : vector<16x256xf32> to vector<16x30xf32>
    %249 = tpu.concatenate %247, %248 in 1 : vector<16x226xf32>, vector<16x30xf32> -> vector<16x256xf32>
    %250 = vector.broadcast %246 : vector<1x256xf32> to vector<16x256xf32>
    %251 = arith.mulf %249, %250 : vector<16x256xf32>
    %252 = arith.truncf %251 : vector<16x256xf32> to vector<16x256xbf16>
    %c320 = arith.constant 320 : index
    %c0_98 = arith.constant 0 : index
    %253 = vector.load %arg12[%c320, %c0_98] : memref<784x256xbf16, #tpu.memory_space<vmem>>, vector<16x256xbf16>
    tpu.vector_store %arg12[%c320, %c0_98], %252 {strides = array<i32>} : memref<784x256xbf16, #tpu.memory_space<vmem>>, vector<16x256xbf16>,
    %c37 = arith.constant 37 : index
    %c0_99 = arith.constant 0 : index
    %254 = vector.load %arg2[%c37, %c0_99] : memref<49x256xf32, #tpu.memory_space<vmem>>, vector<1x256xf32>
    %255 = vector.extract_strided_slice %91 {offsets = [0, 31], sizes = [16, 225], strides = [1, 1]} : vector<16x256xf32> to vector<16x225xf32>
    %256 = vector.extract_strided_slice %91 {offsets = [0, 0], sizes = [16, 31], strides = [1, 1]} : vector<16x256xf32> to vector<16x31xf32>
    %257 = tpu.concatenate %255, %256 in 1 : vector<16x225xf32>, vector<16x31xf32> -> vector<16x256xf32>
    %258 = vector.broadcast %254 : vector<1x256xf32> to vector<16x256xf32>
    %259 = arith.mulf %257, %258 : vector<16x256xf32>
    %260 = arith.truncf %259 : vector<16x256xf32> to vector<16x256xbf16>
    %c336 = arith.constant 336 : index
    %c0_100 = arith.constant 0 : index
    %261 = vector.load %arg12[%c336, %c0_100] : memref<784x256xbf16, #tpu.memory_space<vmem>>, vector<16x256xbf16>
    tpu.vector_store %arg12[%c336, %c0_100], %260 {strides = array<i32>} : memref<784x256xbf16, #tpu.memory_space<vmem>>, vector<16x256xbf16>,
    %c38 = arith.constant 38 : index
    %c0_101 = arith.constant 0 : index
    %262 = vector.load %arg2[%c38, %c0_101] : memref<49x256xf32, #tpu.memory_space<vmem>>, vector<1x256xf32>
    %263 = vector.extract_strided_slice %91 {offsets = [0, 32], sizes = [16, 224], strides = [1, 1]} : vector<16x256xf32> to vector<16x224xf32>
    %264 = vector.extract_strided_slice %91 {offsets = [0, 0], sizes = [16, 32], strides = [1, 1]} : vector<16x256xf32> to vector<16x32xf32>
    %265 = tpu.concatenate %263, %264 in 1 : vector<16x224xf32>, vector<16x32xf32> -> vector<16x256xf32>
    %266 = vector.broadcast %262 : vector<1x256xf32> to vector<16x256xf32>
    %267 = arith.mulf %265, %266 : vector<16x256xf32>
    %268 = arith.truncf %267 : vector<16x256xf32> to vector<16x256xbf16>
    %c352 = arith.constant 352 : index
    %c0_102 = arith.constant 0 : index
    %269 = vector.load %arg12[%c352, %c0_102] : memref<784x256xbf16, #tpu.memory_space<vmem>>, vector<16x256xbf16>
    tpu.vector_store %arg12[%c352, %c0_102], %268 {strides = array<i32>} : memref<784x256xbf16, #tpu.memory_space<vmem>>, vector<16x256xbf16>,
    %c39 = arith.constant 39 : index
    %c0_103 = arith.constant 0 : index
    %270 = vector.load %arg2[%c39, %c0_103] : memref<49x256xf32, #tpu.memory_space<vmem>>, vector<1x256xf32>
    %271 = vector.extract_strided_slice %91 {offsets = [0, 33], sizes = [16, 223], strides = [1, 1]} : vector<16x256xf32> to vector<16x223xf32>
    %272 = vector.extract_strided_slice %91 {offsets = [0, 0], sizes = [16, 33], strides = [1, 1]} : vector<16x256xf32> to vector<16x33xf32>
    %273 = tpu.concatenate %271, %272 in 1 : vector<16x223xf32>, vector<16x33xf32> -> vector<16x256xf32>
    %274 = vector.broadcast %270 : vector<1x256xf32> to vector<16x256xf32>
    %275 = arith.mulf %273, %274 : vector<16x256xf32>
    %276 = arith.truncf %275 : vector<16x256xf32> to vector<16x256xbf16>
    %c368 = arith.constant 368 : index
    %c0_104 = arith.constant 0 : index
    %277 = vector.load %arg12[%c368, %c0_104] : memref<784x256xbf16, #tpu.memory_space<vmem>>, vector<16x256xbf16>
    tpu.vector_store %arg12[%c368, %c0_104], %276 {strides = array<i32>} : memref<784x256xbf16, #tpu.memory_space<vmem>>, vector<16x256xbf16>,
    %c40 = arith.constant 40 : index
    %c0_105 = arith.constant 0 : index
    %278 = vector.load %arg2[%c40, %c0_105] : memref<49x256xf32, #tpu.memory_space<vmem>>, vector<1x256xf32>
    %279 = vector.extract_strided_slice %91 {offsets = [0, 34], sizes = [16, 222], strides = [1, 1]} : vector<16x256xf32> to vector<16x222xf32>
    %280 = vector.extract_strided_slice %91 {offsets = [0, 0], sizes = [16, 34], strides = [1, 1]} : vector<16x256xf32> to vector<16x34xf32>
    %281 = tpu.concatenate %279, %280 in 1 : vector<16x222xf32>, vector<16x34xf32> -> vector<16x256xf32>
    %282 = vector.broadcast %278 : vector<1x256xf32> to vector<16x256xf32>
    %283 = arith.mulf %281, %282 : vector<16x256xf32>
    %284 = arith.truncf %283 : vector<16x256xf32> to vector<16x256xbf16>
    %c384 = arith.constant 384 : index
    %c0_106 = arith.constant 0 : index
    %285 = vector.load %arg12[%c384, %c0_106] : memref<784x256xbf16, #tpu.memory_space<vmem>>, vector<16x256xbf16>
    tpu.vector_store %arg12[%c384, %c0_106], %284 {strides = array<i32>} : memref<784x256xbf16, #tpu.memory_space<vmem>>, vector<16x256xbf16>,
    %c0_107 = arith.constant 0 : index
    %c0_108 = arith.constant 0 : index
    %286 = vector.load %arg12[%c0_107, %c0_108] : memref<784x256xbf16, #tpu.memory_space<vmem>>, vector<400x256xbf16>
    %c0_109 = arith.constant 0 : index
    %c0_110 = arith.constant 0 : index
    %287 = vector.load %arg7[%c0_109, %c0_110] : memref<8x400xbf16, #tpu.memory_space<vmem>>, vector<8x400xbf16>
    %cst_111 = arith.constant dense<0.000000e+00> : vector<8x256xf32>
    %288 = tpu.matmul %287, %286, %cst_111 {dimension_numbers = #tpu.dot_dimension_numbers<[1], [0], [0], [1], [0, 0, 1, 1], [], []>} : vector<8x400xbf16>, vector<400x256xbf16>, vector<8x256xf32> -> vector<8x256xf32>
    %c0_112 = arith.constant 0 : index
    %c0_113 = arith.constant 0 : index
    %289 = vector.load %arg8[%c0_112, %c0_113] : memref<8x1xf32, #tpu.memory_space<vmem>>, vector<8x1xf32>
    %290 = vector.broadcast %289 : vector<8x1xf32> to vector<8x256xf32>
    %291 = arith.addf %288, %290 : vector<8x256xf32>
    %cst_114 = arith.constant 0.000000e+00 : f32
    %292 = vector.broadcast %cst_114 : f32 to vector<8x256xf32>
    %293 = arith.maximumf %291, %292 : vector<8x256xf32>
    %c0_115 = arith.constant 0 : index
    %c16_116 = arith.constant 16 : index
    %c0_117 = arith.constant 0 : index
    %294 = vector.load %arg11[%c0_115, %c16_116, %c0_117] : memref<1x32x256xf32, #tpu.memory_space<vmem>>, vector<1x8x256xf32>
    %295 = vector.shape_cast %294 : vector<1x8x256xf32> to vector<8x256xf32>
    %296 = vector.shape_cast %293 : vector<8x256xf32> to vector<1x8x256xf32>
    tpu.vector_store %arg11[%c0_115, %c16_116, %c0_117], %296 {strides = array<i32>} : memref<1x32x256xf32, #tpu.memory_space<vmem>>, vector<1x8x256xf32>,
    %297 = vector.extract_strided_slice %8 {offsets = [40, 0], sizes = [16, 256], strides = [1, 1]} : vector<56x256xf32> to vector<16x256xf32>
    %c0_118 = arith.constant 0 : index
    %c0_119 = arith.constant 0 : index
    %298 = vector.load %arg2[%c0_118, %c0_119] : memref<49x256xf32, #tpu.memory_space<vmem>>, vector<1x256xf32>
    %299 = vector.extract_strided_slice %297 {offsets = [0, 205], sizes = [16, 51], strides = [1, 1]} : vector<16x256xf32> to vector<16x51xf32>
    %300 = vector.extract_strided_slice %297 {offsets = [0, 0], sizes = [16, 205], strides = [1, 1]} : vector<16x256xf32> to vector<16x205xf32>
    %301 = tpu.concatenate %299, %300 in 1 : vector<16x51xf32>, vector<16x205xf32> -> vector<16x256xf32>
    %302 = vector.broadcast %298 : vector<1x256xf32> to vector<16x256xf32>
    %303 = arith.mulf %301, %302 : vector<16x256xf32>
    %304 = arith.truncf %303 : vector<16x256xf32> to vector<16x256xbf16>
    %c0_120 = arith.constant 0 : index
    %c0_121 = arith.constant 0 : index
    %305 = vector.load %arg12[%c0_120, %c0_121] : memref<784x256xbf16, #tpu.memory_space<vmem>>, vector<16x256xbf16>
    tpu.vector_store %arg12[%c0_120, %c0_121], %304 {strides = array<i32>} : memref<784x256xbf16, #tpu.memory_space<vmem>>, vector<16x256xbf16>,
    %c1 = arith.constant 1 : index
    %c0_122 = arith.constant 0 : index
    %306 = vector.load %arg2[%c1, %c0_122] : memref<49x256xf32, #tpu.memory_space<vmem>>, vector<1x256xf32>
    %307 = vector.extract_strided_slice %297 {offsets = [0, 206], sizes = [16, 50], strides = [1, 1]} : vector<16x256xf32> to vector<16x50xf32>
    %308 = vector.extract_strided_slice %297 {offsets = [0, 0], sizes = [16, 206], strides = [1, 1]} : vector<16x256xf32> to vector<16x206xf32>
    %309 = tpu.concatenate %307, %308 in 1 : vector<16x50xf32>, vector<16x206xf32> -> vector<16x256xf32>
    %310 = vector.broadcast %306 : vector<1x256xf32> to vector<16x256xf32>
    %311 = arith.mulf %309, %310 : vector<16x256xf32>
    %312 = arith.truncf %311 : vector<16x256xf32> to vector<16x256xbf16>
    %c16_123 = arith.constant 16 : index
    %c0_124 = arith.constant 0 : index
    %313 = vector.load %arg12[%c16_123, %c0_124] : memref<784x256xbf16, #tpu.memory_space<vmem>>, vector<16x256xbf16>
    tpu.vector_store %arg12[%c16_123, %c0_124], %312 {strides = array<i32>} : memref<784x256xbf16, #tpu.memory_space<vmem>>, vector<16x256xbf16>,
    %c2 = arith.constant 2 : index
    %c0_125 = arith.constant 0 : index
    %314 = vector.load %arg2[%c2, %c0_125] : memref<49x256xf32, #tpu.memory_space<vmem>>, vector<1x256xf32>
    %315 = vector.extract_strided_slice %297 {offsets = [0, 207], sizes = [16, 49], strides = [1, 1]} : vector<16x256xf32> to vector<16x49xf32>
    %316 = vector.extract_strided_slice %297 {offsets = [0, 0], sizes = [16, 207], strides = [1, 1]} : vector<16x256xf32> to vector<16x207xf32>
    %317 = tpu.concatenate %315, %316 in 1 : vector<16x49xf32>, vector<16x207xf32> -> vector<16x256xf32>
    %318 = vector.broadcast %314 : vector<1x256xf32> to vector<16x256xf32>
    %319 = arith.mulf %317, %318 : vector<16x256xf32>
    %320 = arith.truncf %319 : vector<16x256xf32> to vector<16x256xbf16>
    %c32_126 = arith.constant 32 : index
    %c0_127 = arith.constant 0 : index
    %321 = vector.load %arg12[%c32_126, %c0_127] : memref<784x256xbf16, #tpu.memory_space<vmem>>, vector<16x256xbf16>
    tpu.vector_store %arg12[%c32_126, %c0_127], %320 {strides = array<i32>} : memref<784x256xbf16, #tpu.memory_space<vmem>>, vector<16x256xbf16>,
    %c3 = arith.constant 3 : index
    %c0_128 = arith.constant 0 : index
    %322 = vector.load %arg2[%c3, %c0_128] : memref<49x256xf32, #tpu.memory_space<vmem>>, vector<1x256xf32>
    %323 = vector.extract_strided_slice %297 {offsets = [0, 208], sizes = [16, 48], strides = [1, 1]} : vector<16x256xf32> to vector<16x48xf32>
    %324 = vector.extract_strided_slice %297 {offsets = [0, 0], sizes = [16, 208], strides = [1, 1]} : vector<16x256xf32> to vector<16x208xf32>
    %325 = tpu.concatenate %323, %324 in 1 : vector<16x48xf32>, vector<16x208xf32> -> vector<16x256xf32>
    %326 = vector.broadcast %322 : vector<1x256xf32> to vector<16x256xf32>
    %327 = arith.mulf %325, %326 : vector<16x256xf32>
    %328 = arith.truncf %327 : vector<16x256xf32> to vector<16x256xbf16>
    %c48_129 = arith.constant 48 : index
    %c0_130 = arith.constant 0 : index
    %329 = vector.load %arg12[%c48_129, %c0_130] : memref<784x256xbf16, #tpu.memory_space<vmem>>, vector<16x256xbf16>
    tpu.vector_store %arg12[%c48_129, %c0_130], %328 {strides = array<i32>} : memref<784x256xbf16, #tpu.memory_space<vmem>>, vector<16x256xbf16>,
    %c4 = arith.constant 4 : index
    %c0_131 = arith.constant 0 : index
    %330 = vector.load %arg2[%c4, %c0_131] : memref<49x256xf32, #tpu.memory_space<vmem>>, vector<1x256xf32>
    %331 = vector.extract_strided_slice %297 {offsets = [0, 209], sizes = [16, 47], strides = [1, 1]} : vector<16x256xf32> to vector<16x47xf32>
    %332 = vector.extract_strided_slice %297 {offsets = [0, 0], sizes = [16, 209], strides = [1, 1]} : vector<16x256xf32> to vector<16x209xf32>
    %333 = tpu.concatenate %331, %332 in 1 : vector<16x47xf32>, vector<16x209xf32> -> vector<16x256xf32>
    %334 = vector.broadcast %330 : vector<1x256xf32> to vector<16x256xf32>
    %335 = arith.mulf %333, %334 : vector<16x256xf32>
    %336 = arith.truncf %335 : vector<16x256xf32> to vector<16x256xbf16>
    %c64_132 = arith.constant 64 : index
    %c0_133 = arith.constant 0 : index
    %337 = vector.load %arg12[%c64_132, %c0_133] : memref<784x256xbf16, #tpu.memory_space<vmem>>, vector<16x256xbf16>
    tpu.vector_store %arg12[%c64_132, %c0_133], %336 {strides = array<i32>} : memref<784x256xbf16, #tpu.memory_space<vmem>>, vector<16x256xbf16>,
    %c5 = arith.constant 5 : index
    %c0_134 = arith.constant 0 : index
    %338 = vector.load %arg2[%c5, %c0_134] : memref<49x256xf32, #tpu.memory_space<vmem>>, vector<1x256xf32>
    %339 = vector.extract_strided_slice %297 {offsets = [0, 210], sizes = [16, 46], strides = [1, 1]} : vector<16x256xf32> to vector<16x46xf32>
    %340 = vector.extract_strided_slice %297 {offsets = [0, 0], sizes = [16, 210], strides = [1, 1]} : vector<16x256xf32> to vector<16x210xf32>
    %341 = tpu.concatenate %339, %340 in 1 : vector<16x46xf32>, vector<16x210xf32> -> vector<16x256xf32>
    %342 = vector.broadcast %338 : vector<1x256xf32> to vector<16x256xf32>
    %343 = arith.mulf %341, %342 : vector<16x256xf32>
    %344 = arith.truncf %343 : vector<16x256xf32> to vector<16x256xbf16>
    %c80_135 = arith.constant 80 : index
    %c0_136 = arith.constant 0 : index
    %345 = vector.load %arg12[%c80_135, %c0_136] : memref<784x256xbf16, #tpu.memory_space<vmem>>, vector<16x256xbf16>
    tpu.vector_store %arg12[%c80_135, %c0_136], %344 {strides = array<i32>} : memref<784x256xbf16, #tpu.memory_space<vmem>>, vector<16x256xbf16>,
    %c6 = arith.constant 6 : index
    %c0_137 = arith.constant 0 : index
    %346 = vector.load %arg2[%c6, %c0_137] : memref<49x256xf32, #tpu.memory_space<vmem>>, vector<1x256xf32>
    %347 = vector.extract_strided_slice %297 {offsets = [0, 211], sizes = [16, 45], strides = [1, 1]} : vector<16x256xf32> to vector<16x45xf32>
    %348 = vector.extract_strided_slice %297 {offsets = [0, 0], sizes = [16, 211], strides = [1, 1]} : vector<16x256xf32> to vector<16x211xf32>
    %349 = tpu.concatenate %347, %348 in 1 : vector<16x45xf32>, vector<16x211xf32> -> vector<16x256xf32>
    %350 = vector.broadcast %346 : vector<1x256xf32> to vector<16x256xf32>
    %351 = arith.mulf %349, %350 : vector<16x256xf32>
    %352 = arith.truncf %351 : vector<16x256xf32> to vector<16x256xbf16>
    %c96_138 = arith.constant 96 : index
    %c0_139 = arith.constant 0 : index
    %353 = vector.load %arg12[%c96_138, %c0_139] : memref<784x256xbf16, #tpu.memory_space<vmem>>, vector<16x256xbf16>
    tpu.vector_store %arg12[%c96_138, %c0_139], %352 {strides = array<i32>} : memref<784x256xbf16, #tpu.memory_space<vmem>>, vector<16x256xbf16>,
    %c7 = arith.constant 7 : index
    %c0_140 = arith.constant 0 : index
    %354 = vector.load %arg2[%c7, %c0_140] : memref<49x256xf32, #tpu.memory_space<vmem>>, vector<1x256xf32>
    %355 = vector.extract_strided_slice %297 {offsets = [0, 221], sizes = [16, 35], strides = [1, 1]} : vector<16x256xf32> to vector<16x35xf32>
    %356 = vector.extract_strided_slice %297 {offsets = [0, 0], sizes = [16, 221], strides = [1, 1]} : vector<16x256xf32> to vector<16x221xf32>
    %357 = tpu.concatenate %355, %356 in 1 : vector<16x35xf32>, vector<16x221xf32> -> vector<16x256xf32>
    %358 = vector.broadcast %354 : vector<1x256xf32> to vector<16x256xf32>
    %359 = arith.mulf %357, %358 : vector<16x256xf32>
    %360 = arith.truncf %359 : vector<16x256xf32> to vector<16x256xbf16>
    %c112_141 = arith.constant 112 : index
    %c0_142 = arith.constant 0 : index
    %361 = vector.load %arg12[%c112_141, %c0_142] : memref<784x256xbf16, #tpu.memory_space<vmem>>, vector<16x256xbf16>
    tpu.vector_store %arg12[%c112_141, %c0_142], %360 {strides = array<i32>} : memref<784x256xbf16, #tpu.memory_space<vmem>>, vector<16x256xbf16>,
    %c8_143 = arith.constant 8 : index
    %c0_144 = arith.constant 0 : index
    %362 = vector.load %arg2[%c8_143, %c0_144] : memref<49x256xf32, #tpu.memory_space<vmem>>, vector<1x256xf32>
    %363 = vector.extract_strided_slice %297 {offsets = [0, 222], sizes = [16, 34], strides = [1, 1]} : vector<16x256xf32> to vector<16x34xf32>
    %364 = vector.extract_strided_slice %297 {offsets = [0, 0], sizes = [16, 222], strides = [1, 1]} : vector<16x256xf32> to vector<16x222xf32>
    %365 = tpu.concatenate %363, %364 in 1 : vector<16x34xf32>, vector<16x222xf32> -> vector<16x256xf32>
    %366 = vector.broadcast %362 : vector<1x256xf32> to vector<16x256xf32>
    %367 = arith.mulf %365, %366 : vector<16x256xf32>
    %368 = arith.truncf %367 : vector<16x256xf32> to vector<16x256xbf16>
    %c128_145 = arith.constant 128 : index
    %c0_146 = arith.constant 0 : index
    %369 = vector.load %arg12[%c128_145, %c0_146] : memref<784x256xbf16, #tpu.memory_space<vmem>>, vector<16x256xbf16>
    tpu.vector_store %arg12[%c128_145, %c0_146], %368 {strides = array<i32>} : memref<784x256xbf16, #tpu.memory_space<vmem>>, vector<16x256xbf16>,
    %c9_147 = arith.constant 9 : index
    %c0_148 = arith.constant 0 : index
    %370 = vector.load %arg2[%c9_147, %c0_148] : memref<49x256xf32, #tpu.memory_space<vmem>>, vector<1x256xf32>
    %371 = vector.extract_strided_slice %297 {offsets = [0, 223], sizes = [16, 33], strides = [1, 1]} : vector<16x256xf32> to vector<16x33xf32>
    %372 = vector.extract_strided_slice %297 {offsets = [0, 0], sizes = [16, 223], strides = [1, 1]} : vector<16x256xf32> to vector<16x223xf32>
    %373 = tpu.concatenate %371, %372 in 1 : vector<16x33xf32>, vector<16x223xf32> -> vector<16x256xf32>
    %374 = vector.broadcast %370 : vector<1x256xf32> to vector<16x256xf32>
    %375 = arith.mulf %373, %374 : vector<16x256xf32>
    %376 = arith.truncf %375 : vector<16x256xf32> to vector<16x256xbf16>
    %c144_149 = arith.constant 144 : index
    %c0_150 = arith.constant 0 : index
    %377 = vector.load %arg12[%c144_149, %c0_150] : memref<784x256xbf16, #tpu.memory_space<vmem>>, vector<16x256xbf16>
    tpu.vector_store %arg12[%c144_149, %c0_150], %376 {strides = array<i32>} : memref<784x256xbf16, #tpu.memory_space<vmem>>, vector<16x256xbf16>,
    %c10_151 = arith.constant 10 : index
    %c0_152 = arith.constant 0 : index
    %378 = vector.load %arg2[%c10_151, %c0_152] : memref<49x256xf32, #tpu.memory_space<vmem>>, vector<1x256xf32>
    %379 = vector.extract_strided_slice %297 {offsets = [0, 224], sizes = [16, 32], strides = [1, 1]} : vector<16x256xf32> to vector<16x32xf32>
    %380 = vector.extract_strided_slice %297 {offsets = [0, 0], sizes = [16, 224], strides = [1, 1]} : vector<16x256xf32> to vector<16x224xf32>
    %381 = tpu.concatenate %379, %380 in 1 : vector<16x32xf32>, vector<16x224xf32> -> vector<16x256xf32>
    %382 = vector.broadcast %378 : vector<1x256xf32> to vector<16x256xf32>
    %383 = arith.mulf %381, %382 : vector<16x256xf32>
    %384 = arith.truncf %383 : vector<16x256xf32> to vector<16x256xbf16>
    %c160_153 = arith.constant 160 : index
    %c0_154 = arith.constant 0 : index
    %385 = vector.load %arg12[%c160_153, %c0_154] : memref<784x256xbf16, #tpu.memory_space<vmem>>, vector<16x256xbf16>
    tpu.vector_store %arg12[%c160_153, %c0_154], %384 {strides = array<i32>} : memref<784x256xbf16, #tpu.memory_space<vmem>>, vector<16x256xbf16>,
    %c11_155 = arith.constant 11 : index
    %c0_156 = arith.constant 0 : index
    %386 = vector.load %arg2[%c11_155, %c0_156] : memref<49x256xf32, #tpu.memory_space<vmem>>, vector<1x256xf32>
    %387 = vector.extract_strided_slice %297 {offsets = [0, 225], sizes = [16, 31], strides = [1, 1]} : vector<16x256xf32> to vector<16x31xf32>
    %388 = vector.extract_strided_slice %297 {offsets = [0, 0], sizes = [16, 225], strides = [1, 1]} : vector<16x256xf32> to vector<16x225xf32>
    %389 = tpu.concatenate %387, %388 in 1 : vector<16x31xf32>, vector<16x225xf32> -> vector<16x256xf32>
    %390 = vector.broadcast %386 : vector<1x256xf32> to vector<16x256xf32>
    %391 = arith.mulf %389, %390 : vector<16x256xf32>
    %392 = arith.truncf %391 : vector<16x256xf32> to vector<16x256xbf16>
    %c176_157 = arith.constant 176 : index
    %c0_158 = arith.constant 0 : index
    %393 = vector.load %arg12[%c176_157, %c0_158] : memref<784x256xbf16, #tpu.memory_space<vmem>>, vector<16x256xbf16>
    tpu.vector_store %arg12[%c176_157, %c0_158], %392 {strides = array<i32>} : memref<784x256xbf16, #tpu.memory_space<vmem>>, vector<16x256xbf16>,
    %c12_159 = arith.constant 12 : index
    %c0_160 = arith.constant 0 : index
    %394 = vector.load %arg2[%c12_159, %c0_160] : memref<49x256xf32, #tpu.memory_space<vmem>>, vector<1x256xf32>
    %395 = vector.extract_strided_slice %297 {offsets = [0, 226], sizes = [16, 30], strides = [1, 1]} : vector<16x256xf32> to vector<16x30xf32>
    %396 = vector.extract_strided_slice %297 {offsets = [0, 0], sizes = [16, 226], strides = [1, 1]} : vector<16x256xf32> to vector<16x226xf32>
    %397 = tpu.concatenate %395, %396 in 1 : vector<16x30xf32>, vector<16x226xf32> -> vector<16x256xf32>
    %398 = vector.broadcast %394 : vector<1x256xf32> to vector<16x256xf32>
    %399 = arith.mulf %397, %398 : vector<16x256xf32>
    %400 = arith.truncf %399 : vector<16x256xf32> to vector<16x256xbf16>
    %c192_161 = arith.constant 192 : index
    %c0_162 = arith.constant 0 : index
    %401 = vector.load %arg12[%c192_161, %c0_162] : memref<784x256xbf16, #tpu.memory_space<vmem>>, vector<16x256xbf16>
    tpu.vector_store %arg12[%c192_161, %c0_162], %400 {strides = array<i32>} : memref<784x256xbf16, #tpu.memory_space<vmem>>, vector<16x256xbf16>,
    %c13 = arith.constant 13 : index
    %c0_163 = arith.constant 0 : index
    %402 = vector.load %arg2[%c13, %c0_163] : memref<49x256xf32, #tpu.memory_space<vmem>>, vector<1x256xf32>
    %403 = vector.extract_strided_slice %297 {offsets = [0, 227], sizes = [16, 29], strides = [1, 1]} : vector<16x256xf32> to vector<16x29xf32>
    %404 = vector.extract_strided_slice %297 {offsets = [0, 0], sizes = [16, 227], strides = [1, 1]} : vector<16x256xf32> to vector<16x227xf32>
    %405 = tpu.concatenate %403, %404 in 1 : vector<16x29xf32>, vector<16x227xf32> -> vector<16x256xf32>
    %406 = vector.broadcast %402 : vector<1x256xf32> to vector<16x256xf32>
    %407 = arith.mulf %405, %406 : vector<16x256xf32>
    %408 = arith.truncf %407 : vector<16x256xf32> to vector<16x256xbf16>
    %c208_164 = arith.constant 208 : index
    %c0_165 = arith.constant 0 : index
    %409 = vector.load %arg12[%c208_164, %c0_165] : memref<784x256xbf16, #tpu.memory_space<vmem>>, vector<16x256xbf16>
    tpu.vector_store %arg12[%c208_164, %c0_165], %408 {strides = array<i32>} : memref<784x256xbf16, #tpu.memory_space<vmem>>, vector<16x256xbf16>,
    %c14 = arith.constant 14 : index
    %c0_166 = arith.constant 0 : index
    %410 = vector.load %arg2[%c14, %c0_166] : memref<49x256xf32, #tpu.memory_space<vmem>>, vector<1x256xf32>
    %411 = vector.extract_strided_slice %297 {offsets = [0, 237], sizes = [16, 19], strides = [1, 1]} : vector<16x256xf32> to vector<16x19xf32>
    %412 = vector.extract_strided_slice %297 {offsets = [0, 0], sizes = [16, 237], strides = [1, 1]} : vector<16x256xf32> to vector<16x237xf32>
    %413 = tpu.concatenate %411, %412 in 1 : vector<16x19xf32>, vector<16x237xf32> -> vector<16x256xf32>
    %414 = vector.broadcast %410 : vector<1x256xf32> to vector<16x256xf32>
    %415 = arith.mulf %413, %414 : vector<16x256xf32>
    %416 = arith.truncf %415 : vector<16x256xf32> to vector<16x256xbf16>
    %c224_167 = arith.constant 224 : index
    %c0_168 = arith.constant 0 : index
    %417 = vector.load %arg12[%c224_167, %c0_168] : memref<784x256xbf16, #tpu.memory_space<vmem>>, vector<16x256xbf16>
    tpu.vector_store %arg12[%c224_167, %c0_168], %416 {strides = array<i32>} : memref<784x256xbf16, #tpu.memory_space<vmem>>, vector<16x256xbf16>,
    %c15_169 = arith.constant 15 : index
    %c0_170 = arith.constant 0 : index
    %418 = vector.load %arg2[%c15_169, %c0_170] : memref<49x256xf32, #tpu.memory_space<vmem>>, vector<1x256xf32>
    %419 = vector.extract_strided_slice %297 {offsets = [0, 238], sizes = [16, 18], strides = [1, 1]} : vector<16x256xf32> to vector<16x18xf32>
    %420 = vector.extract_strided_slice %297 {offsets = [0, 0], sizes = [16, 238], strides = [1, 1]} : vector<16x256xf32> to vector<16x238xf32>
    %421 = tpu.concatenate %419, %420 in 1 : vector<16x18xf32>, vector<16x238xf32> -> vector<16x256xf32>
    %422 = vector.broadcast %418 : vector<1x256xf32> to vector<16x256xf32>
    %423 = arith.mulf %421, %422 : vector<16x256xf32>
    %424 = arith.truncf %423 : vector<16x256xf32> to vector<16x256xbf16>
    %c240_171 = arith.constant 240 : index
    %c0_172 = arith.constant 0 : index
    %425 = vector.load %arg12[%c240_171, %c0_172] : memref<784x256xbf16, #tpu.memory_space<vmem>>, vector<16x256xbf16>
    tpu.vector_store %arg12[%c240_171, %c0_172], %424 {strides = array<i32>} : memref<784x256xbf16, #tpu.memory_space<vmem>>, vector<16x256xbf16>,
    %c16_173 = arith.constant 16 : index
    %c0_174 = arith.constant 0 : index
    %426 = vector.load %arg2[%c16_173, %c0_174] : memref<49x256xf32, #tpu.memory_space<vmem>>, vector<1x256xf32>
    %427 = vector.extract_strided_slice %297 {offsets = [0, 239], sizes = [16, 17], strides = [1, 1]} : vector<16x256xf32> to vector<16x17xf32>
    %428 = vector.extract_strided_slice %297 {offsets = [0, 0], sizes = [16, 239], strides = [1, 1]} : vector<16x256xf32> to vector<16x239xf32>
    %429 = tpu.concatenate %427, %428 in 1 : vector<16x17xf32>, vector<16x239xf32> -> vector<16x256xf32>
    %430 = vector.broadcast %426 : vector<1x256xf32> to vector<16x256xf32>
    %431 = arith.mulf %429, %430 : vector<16x256xf32>
    %432 = arith.truncf %431 : vector<16x256xf32> to vector<16x256xbf16>
    %c256_175 = arith.constant 256 : index
    %c0_176 = arith.constant 0 : index
    %433 = vector.load %arg12[%c256_175, %c0_176] : memref<784x256xbf16, #tpu.memory_space<vmem>>, vector<16x256xbf16>
    tpu.vector_store %arg12[%c256_175, %c0_176], %432 {strides = array<i32>} : memref<784x256xbf16, #tpu.memory_space<vmem>>, vector<16x256xbf16>,
    %c17_177 = arith.constant 17 : index
    %c0_178 = arith.constant 0 : index
    %434 = vector.load %arg2[%c17_177, %c0_178] : memref<49x256xf32, #tpu.memory_space<vmem>>, vector<1x256xf32>
    %435 = vector.extract_strided_slice %297 {offsets = [0, 240], sizes = [16, 16], strides = [1, 1]} : vector<16x256xf32> to vector<16x16xf32>
    %436 = vector.extract_strided_slice %297 {offsets = [0, 0], sizes = [16, 240], strides = [1, 1]} : vector<16x256xf32> to vector<16x240xf32>
    %437 = tpu.concatenate %435, %436 in 1 : vector<16x16xf32>, vector<16x240xf32> -> vector<16x256xf32>
    %438 = vector.broadcast %434 : vector<1x256xf32> to vector<16x256xf32>
    %439 = arith.mulf %437, %438 : vector<16x256xf32>
    %440 = arith.truncf %439 : vector<16x256xf32> to vector<16x256xbf16>
    %c272_179 = arith.constant 272 : index
    %c0_180 = arith.constant 0 : index
    %441 = vector.load %arg12[%c272_179, %c0_180] : memref<784x256xbf16, #tpu.memory_space<vmem>>, vector<16x256xbf16>
    tpu.vector_store %arg12[%c272_179, %c0_180], %440 {strides = array<i32>} : memref<784x256xbf16, #tpu.memory_space<vmem>>, vector<16x256xbf16>,
    %c18_181 = arith.constant 18 : index
    %c0_182 = arith.constant 0 : index
    %442 = vector.load %arg2[%c18_181, %c0_182] : memref<49x256xf32, #tpu.memory_space<vmem>>, vector<1x256xf32>
    %443 = vector.extract_strided_slice %297 {offsets = [0, 241], sizes = [16, 15], strides = [1, 1]} : vector<16x256xf32> to vector<16x15xf32>
    %444 = vector.extract_strided_slice %297 {offsets = [0, 0], sizes = [16, 241], strides = [1, 1]} : vector<16x256xf32> to vector<16x241xf32>
    %445 = tpu.concatenate %443, %444 in 1 : vector<16x15xf32>, vector<16x241xf32> -> vector<16x256xf32>
    %446 = vector.broadcast %442 : vector<1x256xf32> to vector<16x256xf32>
    %447 = arith.mulf %445, %446 : vector<16x256xf32>
    %448 = arith.truncf %447 : vector<16x256xf32> to vector<16x256xbf16>
    %c288_183 = arith.constant 288 : index
    %c0_184 = arith.constant 0 : index
    %449 = vector.load %arg12[%c288_183, %c0_184] : memref<784x256xbf16, #tpu.memory_space<vmem>>, vector<16x256xbf16>
    tpu.vector_store %arg12[%c288_183, %c0_184], %448 {strides = array<i32>} : memref<784x256xbf16, #tpu.memory_space<vmem>>, vector<16x256xbf16>,
    %c19_185 = arith.constant 19 : index
    %c0_186 = arith.constant 0 : index
    %450 = vector.load %arg2[%c19_185, %c0_186] : memref<49x256xf32, #tpu.memory_space<vmem>>, vector<1x256xf32>
    %451 = vector.extract_strided_slice %297 {offsets = [0, 242], sizes = [16, 14], strides = [1, 1]} : vector<16x256xf32> to vector<16x14xf32>
    %452 = vector.extract_strided_slice %297 {offsets = [0, 0], sizes = [16, 242], strides = [1, 1]} : vector<16x256xf32> to vector<16x242xf32>
    %453 = tpu.concatenate %451, %452 in 1 : vector<16x14xf32>, vector<16x242xf32> -> vector<16x256xf32>
    %454 = vector.broadcast %450 : vector<1x256xf32> to vector<16x256xf32>
    %455 = arith.mulf %453, %454 : vector<16x256xf32>
    %456 = arith.truncf %455 : vector<16x256xf32> to vector<16x256xbf16>
    %c304_187 = arith.constant 304 : index
    %c0_188 = arith.constant 0 : index
    %457 = vector.load %arg12[%c304_187, %c0_188] : memref<784x256xbf16, #tpu.memory_space<vmem>>, vector<16x256xbf16>
    tpu.vector_store %arg12[%c304_187, %c0_188], %456 {strides = array<i32>} : memref<784x256xbf16, #tpu.memory_space<vmem>>, vector<16x256xbf16>,
    %c20 = arith.constant 20 : index
    %c0_189 = arith.constant 0 : index
    %458 = vector.load %arg2[%c20, %c0_189] : memref<49x256xf32, #tpu.memory_space<vmem>>, vector<1x256xf32>
    %459 = vector.extract_strided_slice %297 {offsets = [0, 243], sizes = [16, 13], strides = [1, 1]} : vector<16x256xf32> to vector<16x13xf32>
    %460 = vector.extract_strided_slice %297 {offsets = [0, 0], sizes = [16, 243], strides = [1, 1]} : vector<16x256xf32> to vector<16x243xf32>
    %461 = tpu.concatenate %459, %460 in 1 : vector<16x13xf32>, vector<16x243xf32> -> vector<16x256xf32>
    %462 = vector.broadcast %458 : vector<1x256xf32> to vector<16x256xf32>
    %463 = arith.mulf %461, %462 : vector<16x256xf32>
    %464 = arith.truncf %463 : vector<16x256xf32> to vector<16x256xbf16>
    %c320_190 = arith.constant 320 : index
    %c0_191 = arith.constant 0 : index
    %465 = vector.load %arg12[%c320_190, %c0_191] : memref<784x256xbf16, #tpu.memory_space<vmem>>, vector<16x256xbf16>
    tpu.vector_store %arg12[%c320_190, %c0_191], %464 {strides = array<i32>} : memref<784x256xbf16, #tpu.memory_space<vmem>>, vector<16x256xbf16>,
    %c21 = arith.constant 21 : index
    %c0_192 = arith.constant 0 : index
    %466 = vector.load %arg2[%c21, %c0_192] : memref<49x256xf32, #tpu.memory_space<vmem>>, vector<1x256xf32>
    %467 = vector.extract_strided_slice %297 {offsets = [0, 253], sizes = [16, 3], strides = [1, 1]} : vector<16x256xf32> to vector<16x3xf32>
    %468 = vector.extract_strided_slice %297 {offsets = [0, 0], sizes = [16, 253], strides = [1, 1]} : vector<16x256xf32> to vector<16x253xf32>
    %469 = tpu.concatenate %467, %468 in 1 : vector<16x3xf32>, vector<16x253xf32> -> vector<16x256xf32>
    %470 = vector.broadcast %466 : vector<1x256xf32> to vector<16x256xf32>
    %471 = arith.mulf %469, %470 : vector<16x256xf32>
    %472 = arith.truncf %471 : vector<16x256xf32> to vector<16x256xbf16>
    %c336_193 = arith.constant 336 : index
    %c0_194 = arith.constant 0 : index
    %473 = vector.load %arg12[%c336_193, %c0_194] : memref<784x256xbf16, #tpu.memory_space<vmem>>, vector<16x256xbf16>
    tpu.vector_store %arg12[%c336_193, %c0_194], %472 {strides = array<i32>} : memref<784x256xbf16, #tpu.memory_space<vmem>>, vector<16x256xbf16>,
    %c22_195 = arith.constant 22 : index
    %c0_196 = arith.constant 0 : index
    %474 = vector.load %arg2[%c22_195, %c0_196] : memref<49x256xf32, #tpu.memory_space<vmem>>, vector<1x256xf32>
    %475 = vector.extract_strided_slice %297 {offsets = [0, 254], sizes = [16, 2], strides = [1, 1]} : vector<16x256xf32> to vector<16x2xf32>
    %476 = vector.extract_strided_slice %297 {offsets = [0, 0], sizes = [16, 254], strides = [1, 1]} : vector<16x256xf32> to vector<16x254xf32>
    %477 = tpu.concatenate %475, %476 in 1 : vector<16x2xf32>, vector<16x254xf32> -> vector<16x256xf32>
    %478 = vector.broadcast %474 : vector<1x256xf32> to vector<16x256xf32>
    %479 = arith.mulf %477, %478 : vector<16x256xf32>
    %480 = arith.truncf %479 : vector<16x256xf32> to vector<16x256xbf16>
    %c352_197 = arith.constant 352 : index
    %c0_198 = arith.constant 0 : index
    %481 = vector.load %arg12[%c352_197, %c0_198] : memref<784x256xbf16, #tpu.memory_space<vmem>>, vector<16x256xbf16>
    tpu.vector_store %arg12[%c352_197, %c0_198], %480 {strides = array<i32>} : memref<784x256xbf16, #tpu.memory_space<vmem>>, vector<16x256xbf16>,
    %c23_199 = arith.constant 23 : index
    %c0_200 = arith.constant 0 : index
    %482 = vector.load %arg2[%c23_199, %c0_200] : memref<49x256xf32, #tpu.memory_space<vmem>>, vector<1x256xf32>
    %483 = vector.extract_strided_slice %297 {offsets = [0, 255], sizes = [16, 1], strides = [1, 1]} : vector<16x256xf32> to vector<16x1xf32>
    %484 = vector.extract_strided_slice %297 {offsets = [0, 0], sizes = [16, 255], strides = [1, 1]} : vector<16x256xf32> to vector<16x255xf32>
    %485 = tpu.concatenate %483, %484 in 1 : vector<16x1xf32>, vector<16x255xf32> -> vector<16x256xf32>
    %486 = vector.broadcast %482 : vector<1x256xf32> to vector<16x256xf32>
    %487 = arith.mulf %485, %486 : vector<16x256xf32>
    %488 = arith.truncf %487 : vector<16x256xf32> to vector<16x256xbf16>
    %c368_201 = arith.constant 368 : index
    %c0_202 = arith.constant 0 : index
    %489 = vector.load %arg12[%c368_201, %c0_202] : memref<784x256xbf16, #tpu.memory_space<vmem>>, vector<16x256xbf16>
    tpu.vector_store %arg12[%c368_201, %c0_202], %488 {strides = array<i32>} : memref<784x256xbf16, #tpu.memory_space<vmem>>, vector<16x256xbf16>,
    %490 = arith.truncf %297 : vector<16x256xf32> to vector<16x256xbf16>
    %c384_203 = arith.constant 384 : index
    %c0_204 = arith.constant 0 : index
    %491 = vector.load %arg12[%c384_203, %c0_204] : memref<784x256xbf16, #tpu.memory_space<vmem>>, vector<16x256xbf16>
    tpu.vector_store %arg12[%c384_203, %c0_204], %490 {strides = array<i32>} : memref<784x256xbf16, #tpu.memory_space<vmem>>, vector<16x256xbf16>,
    %c25_205 = arith.constant 25 : index
    %c0_206 = arith.constant 0 : index
    %492 = vector.load %arg2[%c25_205, %c0_206] : memref<49x256xf32, #tpu.memory_space<vmem>>, vector<1x256xf32>
    %493 = vector.extract_strided_slice %297 {offsets = [0, 1], sizes = [16, 255], strides = [1, 1]} : vector<16x256xf32> to vector<16x255xf32>
    %494 = vector.extract_strided_slice %297 {offsets = [0, 0], sizes = [16, 1], strides = [1, 1]} : vector<16x256xf32> to vector<16x1xf32>
    %495 = tpu.concatenate %493, %494 in 1 : vector<16x255xf32>, vector<16x1xf32> -> vector<16x256xf32>
    %496 = vector.broadcast %492 : vector<1x256xf32> to vector<16x256xf32>
    %497 = arith.mulf %495, %496 : vector<16x256xf32>
    %498 = arith.truncf %497 : vector<16x256xf32> to vector<16x256xbf16>
    %c400 = arith.constant 400 : index
    %c0_207 = arith.constant 0 : index
    %499 = vector.load %arg12[%c400, %c0_207] : memref<784x256xbf16, #tpu.memory_space<vmem>>, vector<16x256xbf16>
    tpu.vector_store %arg12[%c400, %c0_207], %498 {strides = array<i32>} : memref<784x256xbf16, #tpu.memory_space<vmem>>, vector<16x256xbf16>,
    %c26_208 = arith.constant 26 : index
    %c0_209 = arith.constant 0 : index
    %500 = vector.load %arg2[%c26_208, %c0_209] : memref<49x256xf32, #tpu.memory_space<vmem>>, vector<1x256xf32>
    %501 = vector.extract_strided_slice %297 {offsets = [0, 2], sizes = [16, 254], strides = [1, 1]} : vector<16x256xf32> to vector<16x254xf32>
    %502 = vector.extract_strided_slice %297 {offsets = [0, 0], sizes = [16, 2], strides = [1, 1]} : vector<16x256xf32> to vector<16x2xf32>
    %503 = tpu.concatenate %501, %502 in 1 : vector<16x254xf32>, vector<16x2xf32> -> vector<16x256xf32>
    %504 = vector.broadcast %500 : vector<1x256xf32> to vector<16x256xf32>
    %505 = arith.mulf %503, %504 : vector<16x256xf32>
    %506 = arith.truncf %505 : vector<16x256xf32> to vector<16x256xbf16>
    %c416 = arith.constant 416 : index
    %c0_210 = arith.constant 0 : index
    %507 = vector.load %arg12[%c416, %c0_210] : memref<784x256xbf16, #tpu.memory_space<vmem>>, vector<16x256xbf16>
    tpu.vector_store %arg12[%c416, %c0_210], %506 {strides = array<i32>} : memref<784x256xbf16, #tpu.memory_space<vmem>>, vector<16x256xbf16>,
    %c27 = arith.constant 27 : index
    %c0_211 = arith.constant 0 : index
    %508 = vector.load %arg2[%c27, %c0_211] : memref<49x256xf32, #tpu.memory_space<vmem>>, vector<1x256xf32>
    %509 = vector.extract_strided_slice %297 {offsets = [0, 3], sizes = [16, 253], strides = [1, 1]} : vector<16x256xf32> to vector<16x253xf32>
    %510 = vector.extract_strided_slice %297 {offsets = [0, 0], sizes = [16, 3], strides = [1, 1]} : vector<16x256xf32> to vector<16x3xf32>
    %511 = tpu.concatenate %509, %510 in 1 : vector<16x253xf32>, vector<16x3xf32> -> vector<16x256xf32>
    %512 = vector.broadcast %508 : vector<1x256xf32> to vector<16x256xf32>
    %513 = arith.mulf %511, %512 : vector<16x256xf32>
    %514 = arith.truncf %513 : vector<16x256xf32> to vector<16x256xbf16>
    %c432 = arith.constant 432 : index
    %c0_212 = arith.constant 0 : index
    %515 = vector.load %arg12[%c432, %c0_212] : memref<784x256xbf16, #tpu.memory_space<vmem>>, vector<16x256xbf16>
    tpu.vector_store %arg12[%c432, %c0_212], %514 {strides = array<i32>} : memref<784x256xbf16, #tpu.memory_space<vmem>>, vector<16x256xbf16>,
    %c28 = arith.constant 28 : index
    %c0_213 = arith.constant 0 : index
    %516 = vector.load %arg2[%c28, %c0_213] : memref<49x256xf32, #tpu.memory_space<vmem>>, vector<1x256xf32>
    %517 = vector.extract_strided_slice %297 {offsets = [0, 13], sizes = [16, 243], strides = [1, 1]} : vector<16x256xf32> to vector<16x243xf32>
    %518 = vector.extract_strided_slice %297 {offsets = [0, 0], sizes = [16, 13], strides = [1, 1]} : vector<16x256xf32> to vector<16x13xf32>
    %519 = tpu.concatenate %517, %518 in 1 : vector<16x243xf32>, vector<16x13xf32> -> vector<16x256xf32>
    %520 = vector.broadcast %516 : vector<1x256xf32> to vector<16x256xf32>
    %521 = arith.mulf %519, %520 : vector<16x256xf32>
    %522 = arith.truncf %521 : vector<16x256xf32> to vector<16x256xbf16>
    %c448 = arith.constant 448 : index
    %c0_214 = arith.constant 0 : index
    %523 = vector.load %arg12[%c448, %c0_214] : memref<784x256xbf16, #tpu.memory_space<vmem>>, vector<16x256xbf16>
    tpu.vector_store %arg12[%c448, %c0_214], %522 {strides = array<i32>} : memref<784x256xbf16, #tpu.memory_space<vmem>>, vector<16x256xbf16>,
    %c29_215 = arith.constant 29 : index
    %c0_216 = arith.constant 0 : index
    %524 = vector.load %arg2[%c29_215, %c0_216] : memref<49x256xf32, #tpu.memory_space<vmem>>, vector<1x256xf32>
    %525 = vector.extract_strided_slice %297 {offsets = [0, 14], sizes = [16, 242], strides = [1, 1]} : vector<16x256xf32> to vector<16x242xf32>
    %526 = vector.extract_strided_slice %297 {offsets = [0, 0], sizes = [16, 14], strides = [1, 1]} : vector<16x256xf32> to vector<16x14xf32>
    %527 = tpu.concatenate %525, %526 in 1 : vector<16x242xf32>, vector<16x14xf32> -> vector<16x256xf32>
    %528 = vector.broadcast %524 : vector<1x256xf32> to vector<16x256xf32>
    %529 = arith.mulf %527, %528 : vector<16x256xf32>
    %530 = arith.truncf %529 : vector<16x256xf32> to vector<16x256xbf16>
    %c464 = arith.constant 464 : index
    %c0_217 = arith.constant 0 : index
    %531 = vector.load %arg12[%c464, %c0_217] : memref<784x256xbf16, #tpu.memory_space<vmem>>, vector<16x256xbf16>
    tpu.vector_store %arg12[%c464, %c0_217], %530 {strides = array<i32>} : memref<784x256xbf16, #tpu.memory_space<vmem>>, vector<16x256xbf16>,
    %c30_218 = arith.constant 30 : index
    %c0_219 = arith.constant 0 : index
    %532 = vector.load %arg2[%c30_218, %c0_219] : memref<49x256xf32, #tpu.memory_space<vmem>>, vector<1x256xf32>
    %533 = vector.extract_strided_slice %297 {offsets = [0, 15], sizes = [16, 241], strides = [1, 1]} : vector<16x256xf32> to vector<16x241xf32>
    %534 = vector.extract_strided_slice %297 {offsets = [0, 0], sizes = [16, 15], strides = [1, 1]} : vector<16x256xf32> to vector<16x15xf32>
    %535 = tpu.concatenate %533, %534 in 1 : vector<16x241xf32>, vector<16x15xf32> -> vector<16x256xf32>
    %536 = vector.broadcast %532 : vector<1x256xf32> to vector<16x256xf32>
    %537 = arith.mulf %535, %536 : vector<16x256xf32>
    %538 = arith.truncf %537 : vector<16x256xf32> to vector<16x256xbf16>
    %c480 = arith.constant 480 : index
    %c0_220 = arith.constant 0 : index
    %539 = vector.load %arg12[%c480, %c0_220] : memref<784x256xbf16, #tpu.memory_space<vmem>>, vector<16x256xbf16>
    tpu.vector_store %arg12[%c480, %c0_220], %538 {strides = array<i32>} : memref<784x256xbf16, #tpu.memory_space<vmem>>, vector<16x256xbf16>,
    %c31_221 = arith.constant 31 : index
    %c0_222 = arith.constant 0 : index
    %540 = vector.load %arg2[%c31_221, %c0_222] : memref<49x256xf32, #tpu.memory_space<vmem>>, vector<1x256xf32>
    %541 = vector.extract_strided_slice %297 {offsets = [0, 16], sizes = [16, 240], strides = [1, 1]} : vector<16x256xf32> to vector<16x240xf32>
    %542 = vector.extract_strided_slice %297 {offsets = [0, 0], sizes = [16, 16], strides = [1, 1]} : vector<16x256xf32> to vector<16x16xf32>
    %543 = tpu.concatenate %541, %542 in 1 : vector<16x240xf32>, vector<16x16xf32> -> vector<16x256xf32>
    %544 = vector.broadcast %540 : vector<1x256xf32> to vector<16x256xf32>
    %545 = arith.mulf %543, %544 : vector<16x256xf32>
    %546 = arith.truncf %545 : vector<16x256xf32> to vector<16x256xbf16>
    %c496 = arith.constant 496 : index
    %c0_223 = arith.constant 0 : index
    %547 = vector.load %arg12[%c496, %c0_223] : memref<784x256xbf16, #tpu.memory_space<vmem>>, vector<16x256xbf16>
    tpu.vector_store %arg12[%c496, %c0_223], %546 {strides = array<i32>} : memref<784x256xbf16, #tpu.memory_space<vmem>>, vector<16x256xbf16>,
    %c32_224 = arith.constant 32 : index
    %c0_225 = arith.constant 0 : index
    %548 = vector.load %arg2[%c32_224, %c0_225] : memref<49x256xf32, #tpu.memory_space<vmem>>, vector<1x256xf32>
    %549 = vector.extract_strided_slice %297 {offsets = [0, 17], sizes = [16, 239], strides = [1, 1]} : vector<16x256xf32> to vector<16x239xf32>
    %550 = vector.extract_strided_slice %297 {offsets = [0, 0], sizes = [16, 17], strides = [1, 1]} : vector<16x256xf32> to vector<16x17xf32>
    %551 = tpu.concatenate %549, %550 in 1 : vector<16x239xf32>, vector<16x17xf32> -> vector<16x256xf32>
    %552 = vector.broadcast %548 : vector<1x256xf32> to vector<16x256xf32>
    %553 = arith.mulf %551, %552 : vector<16x256xf32>
    %554 = arith.truncf %553 : vector<16x256xf32> to vector<16x256xbf16>
    %c512 = arith.constant 512 : index
    %c0_226 = arith.constant 0 : index
    %555 = vector.load %arg12[%c512, %c0_226] : memref<784x256xbf16, #tpu.memory_space<vmem>>, vector<16x256xbf16>
    tpu.vector_store %arg12[%c512, %c0_226], %554 {strides = array<i32>} : memref<784x256xbf16, #tpu.memory_space<vmem>>, vector<16x256xbf16>,
    %c33_227 = arith.constant 33 : index
    %c0_228 = arith.constant 0 : index
    %556 = vector.load %arg2[%c33_227, %c0_228] : memref<49x256xf32, #tpu.memory_space<vmem>>, vector<1x256xf32>
    %557 = vector.extract_strided_slice %297 {offsets = [0, 18], sizes = [16, 238], strides = [1, 1]} : vector<16x256xf32> to vector<16x238xf32>
    %558 = vector.extract_strided_slice %297 {offsets = [0, 0], sizes = [16, 18], strides = [1, 1]} : vector<16x256xf32> to vector<16x18xf32>
    %559 = tpu.concatenate %557, %558 in 1 : vector<16x238xf32>, vector<16x18xf32> -> vector<16x256xf32>
    %560 = vector.broadcast %556 : vector<1x256xf32> to vector<16x256xf32>
    %561 = arith.mulf %559, %560 : vector<16x256xf32>
    %562 = arith.truncf %561 : vector<16x256xf32> to vector<16x256xbf16>
    %c528 = arith.constant 528 : index
    %c0_229 = arith.constant 0 : index
    %563 = vector.load %arg12[%c528, %c0_229] : memref<784x256xbf16, #tpu.memory_space<vmem>>, vector<16x256xbf16>
    tpu.vector_store %arg12[%c528, %c0_229], %562 {strides = array<i32>} : memref<784x256xbf16, #tpu.memory_space<vmem>>, vector<16x256xbf16>,
    %c34 = arith.constant 34 : index
    %c0_230 = arith.constant 0 : index
    %564 = vector.load %arg2[%c34, %c0_230] : memref<49x256xf32, #tpu.memory_space<vmem>>, vector<1x256xf32>
    %565 = vector.extract_strided_slice %297 {offsets = [0, 19], sizes = [16, 237], strides = [1, 1]} : vector<16x256xf32> to vector<16x237xf32>
    %566 = vector.extract_strided_slice %297 {offsets = [0, 0], sizes = [16, 19], strides = [1, 1]} : vector<16x256xf32> to vector<16x19xf32>
    %567 = tpu.concatenate %565, %566 in 1 : vector<16x237xf32>, vector<16x19xf32> -> vector<16x256xf32>
    %568 = vector.broadcast %564 : vector<1x256xf32> to vector<16x256xf32>
    %569 = arith.mulf %567, %568 : vector<16x256xf32>
    %570 = arith.truncf %569 : vector<16x256xf32> to vector<16x256xbf16>
    %c544 = arith.constant 544 : index
    %c0_231 = arith.constant 0 : index
    %571 = vector.load %arg12[%c544, %c0_231] : memref<784x256xbf16, #tpu.memory_space<vmem>>, vector<16x256xbf16>
    tpu.vector_store %arg12[%c544, %c0_231], %570 {strides = array<i32>} : memref<784x256xbf16, #tpu.memory_space<vmem>>, vector<16x256xbf16>,
    %c35 = arith.constant 35 : index
    %c0_232 = arith.constant 0 : index
    %572 = vector.load %arg2[%c35, %c0_232] : memref<49x256xf32, #tpu.memory_space<vmem>>, vector<1x256xf32>
    %573 = vector.extract_strided_slice %297 {offsets = [0, 29], sizes = [16, 227], strides = [1, 1]} : vector<16x256xf32> to vector<16x227xf32>
    %574 = vector.extract_strided_slice %297 {offsets = [0, 0], sizes = [16, 29], strides = [1, 1]} : vector<16x256xf32> to vector<16x29xf32>
    %575 = tpu.concatenate %573, %574 in 1 : vector<16x227xf32>, vector<16x29xf32> -> vector<16x256xf32>
    %576 = vector.broadcast %572 : vector<1x256xf32> to vector<16x256xf32>
    %577 = arith.mulf %575, %576 : vector<16x256xf32>
    %578 = arith.truncf %577 : vector<16x256xf32> to vector<16x256xbf16>
    %c560 = arith.constant 560 : index
    %c0_233 = arith.constant 0 : index
    %579 = vector.load %arg12[%c560, %c0_233] : memref<784x256xbf16, #tpu.memory_space<vmem>>, vector<16x256xbf16>
    tpu.vector_store %arg12[%c560, %c0_233], %578 {strides = array<i32>} : memref<784x256xbf16, #tpu.memory_space<vmem>>, vector<16x256xbf16>,
    %c36_234 = arith.constant 36 : index
    %c0_235 = arith.constant 0 : index
    %580 = vector.load %arg2[%c36_234, %c0_235] : memref<49x256xf32, #tpu.memory_space<vmem>>, vector<1x256xf32>
    %581 = vector.extract_strided_slice %297 {offsets = [0, 30], sizes = [16, 226], strides = [1, 1]} : vector<16x256xf32> to vector<16x226xf32>
    %582 = vector.extract_strided_slice %297 {offsets = [0, 0], sizes = [16, 30], strides = [1, 1]} : vector<16x256xf32> to vector<16x30xf32>
    %583 = tpu.concatenate %581, %582 in 1 : vector<16x226xf32>, vector<16x30xf32> -> vector<16x256xf32>
    %584 = vector.broadcast %580 : vector<1x256xf32> to vector<16x256xf32>
    %585 = arith.mulf %583, %584 : vector<16x256xf32>
    %586 = arith.truncf %585 : vector<16x256xf32> to vector<16x256xbf16>
    %c576 = arith.constant 576 : index
    %c0_236 = arith.constant 0 : index
    %587 = vector.load %arg12[%c576, %c0_236] : memref<784x256xbf16, #tpu.memory_space<vmem>>, vector<16x256xbf16>
    tpu.vector_store %arg12[%c576, %c0_236], %586 {strides = array<i32>} : memref<784x256xbf16, #tpu.memory_space<vmem>>, vector<16x256xbf16>,
    %c37_237 = arith.constant 37 : index
    %c0_238 = arith.constant 0 : index
    %588 = vector.load %arg2[%c37_237, %c0_238] : memref<49x256xf32, #tpu.memory_space<vmem>>, vector<1x256xf32>
    %589 = vector.extract_strided_slice %297 {offsets = [0, 31], sizes = [16, 225], strides = [1, 1]} : vector<16x256xf32> to vector<16x225xf32>
    %590 = vector.extract_strided_slice %297 {offsets = [0, 0], sizes = [16, 31], strides = [1, 1]} : vector<16x256xf32> to vector<16x31xf32>
    %591 = tpu.concatenate %589, %590 in 1 : vector<16x225xf32>, vector<16x31xf32> -> vector<16x256xf32>
    %592 = vector.broadcast %588 : vector<1x256xf32> to vector<16x256xf32>
    %593 = arith.mulf %591, %592 : vector<16x256xf32>
    %594 = arith.truncf %593 : vector<16x256xf32> to vector<16x256xbf16>
    %c592 = arith.constant 592 : index
    %c0_239 = arith.constant 0 : index
    %595 = vector.load %arg12[%c592, %c0_239] : memref<784x256xbf16, #tpu.memory_space<vmem>>, vector<16x256xbf16>
    tpu.vector_store %arg12[%c592, %c0_239], %594 {strides = array<i32>} : memref<784x256xbf16, #tpu.memory_space<vmem>>, vector<16x256xbf16>,
    %c38_240 = arith.constant 38 : index
    %c0_241 = arith.constant 0 : index
    %596 = vector.load %arg2[%c38_240, %c0_241] : memref<49x256xf32, #tpu.memory_space<vmem>>, vector<1x256xf32>
    %597 = vector.extract_strided_slice %297 {offsets = [0, 32], sizes = [16, 224], strides = [1, 1]} : vector<16x256xf32> to vector<16x224xf32>
    %598 = vector.extract_strided_slice %297 {offsets = [0, 0], sizes = [16, 32], strides = [1, 1]} : vector<16x256xf32> to vector<16x32xf32>
    %599 = tpu.concatenate %597, %598 in 1 : vector<16x224xf32>, vector<16x32xf32> -> vector<16x256xf32>
    %600 = vector.broadcast %596 : vector<1x256xf32> to vector<16x256xf32>
    %601 = arith.mulf %599, %600 : vector<16x256xf32>
    %602 = arith.truncf %601 : vector<16x256xf32> to vector<16x256xbf16>
    %c608 = arith.constant 608 : index
    %c0_242 = arith.constant 0 : index
    %603 = vector.load %arg12[%c608, %c0_242] : memref<784x256xbf16, #tpu.memory_space<vmem>>, vector<16x256xbf16>
    tpu.vector_store %arg12[%c608, %c0_242], %602 {strides = array<i32>} : memref<784x256xbf16, #tpu.memory_space<vmem>>, vector<16x256xbf16>,
    %c39_243 = arith.constant 39 : index
    %c0_244 = arith.constant 0 : index
    %604 = vector.load %arg2[%c39_243, %c0_244] : memref<49x256xf32, #tpu.memory_space<vmem>>, vector<1x256xf32>
    %605 = vector.extract_strided_slice %297 {offsets = [0, 33], sizes = [16, 223], strides = [1, 1]} : vector<16x256xf32> to vector<16x223xf32>
    %606 = vector.extract_strided_slice %297 {offsets = [0, 0], sizes = [16, 33], strides = [1, 1]} : vector<16x256xf32> to vector<16x33xf32>
    %607 = tpu.concatenate %605, %606 in 1 : vector<16x223xf32>, vector<16x33xf32> -> vector<16x256xf32>
    %608 = vector.broadcast %604 : vector<1x256xf32> to vector<16x256xf32>
    %609 = arith.mulf %607, %608 : vector<16x256xf32>
    %610 = arith.truncf %609 : vector<16x256xf32> to vector<16x256xbf16>
    %c624 = arith.constant 624 : index
    %c0_245 = arith.constant 0 : index
    %611 = vector.load %arg12[%c624, %c0_245] : memref<784x256xbf16, #tpu.memory_space<vmem>>, vector<16x256xbf16>
    tpu.vector_store %arg12[%c624, %c0_245], %610 {strides = array<i32>} : memref<784x256xbf16, #tpu.memory_space<vmem>>, vector<16x256xbf16>,
    %c40_246 = arith.constant 40 : index
    %c0_247 = arith.constant 0 : index
    %612 = vector.load %arg2[%c40_246, %c0_247] : memref<49x256xf32, #tpu.memory_space<vmem>>, vector<1x256xf32>
    %613 = vector.extract_strided_slice %297 {offsets = [0, 34], sizes = [16, 222], strides = [1, 1]} : vector<16x256xf32> to vector<16x222xf32>
    %614 = vector.extract_strided_slice %297 {offsets = [0, 0], sizes = [16, 34], strides = [1, 1]} : vector<16x256xf32> to vector<16x34xf32>
    %615 = tpu.concatenate %613, %614 in 1 : vector<16x222xf32>, vector<16x34xf32> -> vector<16x256xf32>
    %616 = vector.broadcast %612 : vector<1x256xf32> to vector<16x256xf32>
    %617 = arith.mulf %615, %616 : vector<16x256xf32>
    %618 = arith.truncf %617 : vector<16x256xf32> to vector<16x256xbf16>
    %c640 = arith.constant 640 : index
    %c0_248 = arith.constant 0 : index
    %619 = vector.load %arg12[%c640, %c0_248] : memref<784x256xbf16, #tpu.memory_space<vmem>>, vector<16x256xbf16>
    tpu.vector_store %arg12[%c640, %c0_248], %618 {strides = array<i32>} : memref<784x256xbf16, #tpu.memory_space<vmem>>, vector<16x256xbf16>,
    %c41 = arith.constant 41 : index
    %c0_249 = arith.constant 0 : index
    %620 = vector.load %arg2[%c41, %c0_249] : memref<49x256xf32, #tpu.memory_space<vmem>>, vector<1x256xf32>
    %621 = vector.extract_strided_slice %297 {offsets = [0, 35], sizes = [16, 221], strides = [1, 1]} : vector<16x256xf32> to vector<16x221xf32>
    %622 = vector.extract_strided_slice %297 {offsets = [0, 0], sizes = [16, 35], strides = [1, 1]} : vector<16x256xf32> to vector<16x35xf32>
    %623 = tpu.concatenate %621, %622 in 1 : vector<16x221xf32>, vector<16x35xf32> -> vector<16x256xf32>
    %624 = vector.broadcast %620 : vector<1x256xf32> to vector<16x256xf32>
    %625 = arith.mulf %623, %624 : vector<16x256xf32>
    %626 = arith.truncf %625 : vector<16x256xf32> to vector<16x256xbf16>
    %c656 = arith.constant 656 : index
    %c0_250 = arith.constant 0 : index
    %627 = vector.load %arg12[%c656, %c0_250] : memref<784x256xbf16, #tpu.memory_space<vmem>>, vector<16x256xbf16>
    tpu.vector_store %arg12[%c656, %c0_250], %626 {strides = array<i32>} : memref<784x256xbf16, #tpu.memory_space<vmem>>, vector<16x256xbf16>,
    %c42 = arith.constant 42 : index
    %c0_251 = arith.constant 0 : index
    %628 = vector.load %arg2[%c42, %c0_251] : memref<49x256xf32, #tpu.memory_space<vmem>>, vector<1x256xf32>
    %629 = vector.extract_strided_slice %297 {offsets = [0, 45], sizes = [16, 211], strides = [1, 1]} : vector<16x256xf32> to vector<16x211xf32>
    %630 = vector.extract_strided_slice %297 {offsets = [0, 0], sizes = [16, 45], strides = [1, 1]} : vector<16x256xf32> to vector<16x45xf32>
    %631 = tpu.concatenate %629, %630 in 1 : vector<16x211xf32>, vector<16x45xf32> -> vector<16x256xf32>
    %632 = vector.broadcast %628 : vector<1x256xf32> to vector<16x256xf32>
    %633 = arith.mulf %631, %632 : vector<16x256xf32>
    %634 = arith.truncf %633 : vector<16x256xf32> to vector<16x256xbf16>
    %c672 = arith.constant 672 : index
    %c0_252 = arith.constant 0 : index
    %635 = vector.load %arg12[%c672, %c0_252] : memref<784x256xbf16, #tpu.memory_space<vmem>>, vector<16x256xbf16>
    tpu.vector_store %arg12[%c672, %c0_252], %634 {strides = array<i32>} : memref<784x256xbf16, #tpu.memory_space<vmem>>, vector<16x256xbf16>,
    %c43 = arith.constant 43 : index
    %c0_253 = arith.constant 0 : index
    %636 = vector.load %arg2[%c43, %c0_253] : memref<49x256xf32, #tpu.memory_space<vmem>>, vector<1x256xf32>
    %637 = vector.extract_strided_slice %297 {offsets = [0, 46], sizes = [16, 210], strides = [1, 1]} : vector<16x256xf32> to vector<16x210xf32>
    %638 = vector.extract_strided_slice %297 {offsets = [0, 0], sizes = [16, 46], strides = [1, 1]} : vector<16x256xf32> to vector<16x46xf32>
    %639 = tpu.concatenate %637, %638 in 1 : vector<16x210xf32>, vector<16x46xf32> -> vector<16x256xf32>
    %640 = vector.broadcast %636 : vector<1x256xf32> to vector<16x256xf32>
    %641 = arith.mulf %639, %640 : vector<16x256xf32>
    %642 = arith.truncf %641 : vector<16x256xf32> to vector<16x256xbf16>
    %c688 = arith.constant 688 : index
    %c0_254 = arith.constant 0 : index
    %643 = vector.load %arg12[%c688, %c0_254] : memref<784x256xbf16, #tpu.memory_space<vmem>>, vector<16x256xbf16>
    tpu.vector_store %arg12[%c688, %c0_254], %642 {strides = array<i32>} : memref<784x256xbf16, #tpu.memory_space<vmem>>, vector<16x256xbf16>,
    %c44 = arith.constant 44 : index
    %c0_255 = arith.constant 0 : index
    %644 = vector.load %arg2[%c44, %c0_255] : memref<49x256xf32, #tpu.memory_space<vmem>>, vector<1x256xf32>
    %645 = vector.extract_strided_slice %297 {offsets = [0, 47], sizes = [16, 209], strides = [1, 1]} : vector<16x256xf32> to vector<16x209xf32>
    %646 = vector.extract_strided_slice %297 {offsets = [0, 0], sizes = [16, 47], strides = [1, 1]} : vector<16x256xf32> to vector<16x47xf32>
    %647 = tpu.concatenate %645, %646 in 1 : vector<16x209xf32>, vector<16x47xf32> -> vector<16x256xf32>
    %648 = vector.broadcast %644 : vector<1x256xf32> to vector<16x256xf32>
    %649 = arith.mulf %647, %648 : vector<16x256xf32>
    %650 = arith.truncf %649 : vector<16x256xf32> to vector<16x256xbf16>
    %c704 = arith.constant 704 : index
    %c0_256 = arith.constant 0 : index
    %651 = vector.load %arg12[%c704, %c0_256] : memref<784x256xbf16, #tpu.memory_space<vmem>>, vector<16x256xbf16>
    tpu.vector_store %arg12[%c704, %c0_256], %650 {strides = array<i32>} : memref<784x256xbf16, #tpu.memory_space<vmem>>, vector<16x256xbf16>,
    %c45 = arith.constant 45 : index
    %c0_257 = arith.constant 0 : index
    %652 = vector.load %arg2[%c45, %c0_257] : memref<49x256xf32, #tpu.memory_space<vmem>>, vector<1x256xf32>
    %653 = vector.extract_strided_slice %297 {offsets = [0, 48], sizes = [16, 208], strides = [1, 1]} : vector<16x256xf32> to vector<16x208xf32>
    %654 = vector.extract_strided_slice %297 {offsets = [0, 0], sizes = [16, 48], strides = [1, 1]} : vector<16x256xf32> to vector<16x48xf32>
    %655 = tpu.concatenate %653, %654 in 1 : vector<16x208xf32>, vector<16x48xf32> -> vector<16x256xf32>
    %656 = vector.broadcast %652 : vector<1x256xf32> to vector<16x256xf32>
    %657 = arith.mulf %655, %656 : vector<16x256xf32>
    %658 = arith.truncf %657 : vector<16x256xf32> to vector<16x256xbf16>
    %c720 = arith.constant 720 : index
    %c0_258 = arith.constant 0 : index
    %659 = vector.load %arg12[%c720, %c0_258] : memref<784x256xbf16, #tpu.memory_space<vmem>>, vector<16x256xbf16>
    tpu.vector_store %arg12[%c720, %c0_258], %658 {strides = array<i32>} : memref<784x256xbf16, #tpu.memory_space<vmem>>, vector<16x256xbf16>,
    %c46 = arith.constant 46 : index
    %c0_259 = arith.constant 0 : index
    %660 = vector.load %arg2[%c46, %c0_259] : memref<49x256xf32, #tpu.memory_space<vmem>>, vector<1x256xf32>
    %661 = vector.extract_strided_slice %297 {offsets = [0, 49], sizes = [16, 207], strides = [1, 1]} : vector<16x256xf32> to vector<16x207xf32>
    %662 = vector.extract_strided_slice %297 {offsets = [0, 0], sizes = [16, 49], strides = [1, 1]} : vector<16x256xf32> to vector<16x49xf32>
    %663 = tpu.concatenate %661, %662 in 1 : vector<16x207xf32>, vector<16x49xf32> -> vector<16x256xf32>
    %664 = vector.broadcast %660 : vector<1x256xf32> to vector<16x256xf32>
    %665 = arith.mulf %663, %664 : vector<16x256xf32>
    %666 = arith.truncf %665 : vector<16x256xf32> to vector<16x256xbf16>
    %c736 = arith.constant 736 : index
    %c0_260 = arith.constant 0 : index
    %667 = vector.load %arg12[%c736, %c0_260] : memref<784x256xbf16, #tpu.memory_space<vmem>>, vector<16x256xbf16>
    tpu.vector_store %arg12[%c736, %c0_260], %666 {strides = array<i32>} : memref<784x256xbf16, #tpu.memory_space<vmem>>, vector<16x256xbf16>,
    %c47 = arith.constant 47 : index
    %c0_261 = arith.constant 0 : index
    %668 = vector.load %arg2[%c47, %c0_261] : memref<49x256xf32, #tpu.memory_space<vmem>>, vector<1x256xf32>
    %669 = vector.extract_strided_slice %297 {offsets = [0, 50], sizes = [16, 206], strides = [1, 1]} : vector<16x256xf32> to vector<16x206xf32>
    %670 = vector.extract_strided_slice %297 {offsets = [0, 0], sizes = [16, 50], strides = [1, 1]} : vector<16x256xf32> to vector<16x50xf32>
    %671 = tpu.concatenate %669, %670 in 1 : vector<16x206xf32>, vector<16x50xf32> -> vector<16x256xf32>
    %672 = vector.broadcast %668 : vector<1x256xf32> to vector<16x256xf32>
    %673 = arith.mulf %671, %672 : vector<16x256xf32>
    %674 = arith.truncf %673 : vector<16x256xf32> to vector<16x256xbf16>
    %c752 = arith.constant 752 : index
    %c0_262 = arith.constant 0 : index
    %675 = vector.load %arg12[%c752, %c0_262] : memref<784x256xbf16, #tpu.memory_space<vmem>>, vector<16x256xbf16>
    tpu.vector_store %arg12[%c752, %c0_262], %674 {strides = array<i32>} : memref<784x256xbf16, #tpu.memory_space<vmem>>, vector<16x256xbf16>,
    %c48_263 = arith.constant 48 : index
    %c0_264 = arith.constant 0 : index
    %676 = vector.load %arg2[%c48_263, %c0_264] : memref<49x256xf32, #tpu.memory_space<vmem>>, vector<1x256xf32>
    %677 = vector.extract_strided_slice %297 {offsets = [0, 51], sizes = [16, 205], strides = [1, 1]} : vector<16x256xf32> to vector<16x205xf32>
    %678 = vector.extract_strided_slice %297 {offsets = [0, 0], sizes = [16, 51], strides = [1, 1]} : vector<16x256xf32> to vector<16x51xf32>
    %679 = tpu.concatenate %677, %678 in 1 : vector<16x205xf32>, vector<16x51xf32> -> vector<16x256xf32>
    %680 = vector.broadcast %676 : vector<1x256xf32> to vector<16x256xf32>
    %681 = arith.mulf %679, %680 : vector<16x256xf32>
    %682 = arith.truncf %681 : vector<16x256xf32> to vector<16x256xbf16>
    %c768 = arith.constant 768 : index
    %c0_265 = arith.constant 0 : index
    %683 = vector.load %arg12[%c768, %c0_265] : memref<784x256xbf16, #tpu.memory_space<vmem>>, vector<16x256xbf16>
    tpu.vector_store %arg12[%c768, %c0_265], %682 {strides = array<i32>} : memref<784x256xbf16, #tpu.memory_space<vmem>>, vector<16x256xbf16>,
    %c0_266 = arith.constant 0 : index
    %c0_267 = arith.constant 0 : index
    %684 = vector.load %arg12[%c0_266, %c0_267] : memref<784x256xbf16, #tpu.memory_space<vmem>>, vector<784x256xbf16>
    %c0_268 = arith.constant 0 : index
    %c0_269 = arith.constant 0 : index
    %685 = vector.load %arg9[%c0_268, %c0_269] : memref<8x784xbf16, #tpu.memory_space<vmem>>, vector<8x784xbf16>
    %cst_270 = arith.constant dense<0.000000e+00> : vector<8x256xf32>
    %686 = tpu.matmul %685, %684, %cst_270 {dimension_numbers = #tpu.dot_dimension_numbers<[1], [0], [0], [1], [0, 0, 1, 1], [], []>} : vector<8x784xbf16>, vector<784x256xbf16>, vector<8x256xf32> -> vector<8x256xf32>
    %c0_271 = arith.constant 0 : index
    %c0_272 = arith.constant 0 : index
    %687 = vector.load %arg10[%c0_271, %c0_272] : memref<8x1xf32, #tpu.memory_space<vmem>>, vector<8x1xf32>
    %688 = vector.broadcast %687 : vector<8x1xf32> to vector<8x256xf32>
    %689 = arith.addf %686, %688 : vector<8x256xf32>
    %cst_273 = arith.constant 0.000000e+00 : f32
    %690 = vector.broadcast %cst_273 : f32 to vector<8x256xf32>
    %691 = arith.maximumf %689, %690 : vector<8x256xf32>
    %c0_274 = arith.constant 0 : index
    %c24 = arith.constant 24 : index
    %c0_275 = arith.constant 0 : index
    %692 = vector.load %arg11[%c0_274, %c24, %c0_275] : memref<1x32x256xf32, #tpu.memory_space<vmem>>, vector<1x8x256xf32>
    %693 = vector.shape_cast %692 : vector<1x8x256xf32> to vector<8x256xf32>
    %694 = vector.shape_cast %691 : vector<8x256xf32> to vector<1x8x256xf32>
    tpu.vector_store %arg11[%c0_274, %c24, %c0_275], %694 {strides = array<i32>} : memref<1x32x256xf32, #tpu.memory_space<vmem>>, vector<1x8x256xf32>,
    return
  }
  func.func @transform_0(%arg0: i32) -> (i32, i32, i32) {
    %c0_i32 = arith.constant 0 : i32
    %c0_i32_0 = arith.constant 0 : i32
    %c0_i32_1 = arith.constant 0 : i32
    return %arg0, %c0_i32, %c0_i32_0 : i32, i32, i32
  }
  func.func @transform_1(%arg0: i32) -> (i32, i32) {
    %c0_i32 = arith.constant 0 : i32
    %c0_i32_0 = arith.constant 0 : i32
    %c0_i32_1 = arith.constant 0 : i32
    return %c0_i32, %c0_i32_0 : i32, i32
  }
  func.func @transform_2(%arg0: i32) -> (i32, i32) {
    %c0_i32 = arith.constant 0 : i32
    %c0_i32_0 = arith.constant 0 : i32
    %c0_i32_1 = arith.constant 0 : i32
    return %c0_i32, %c0_i32_0 : i32, i32
  }
  func.func @transform_3(%arg0: i32) -> (i32, i32) {
    %c0_i32 = arith.constant 0 : i32
    %c0_i32_0 = arith.constant 0 : i32
    %c0_i32_1 = arith.constant 0 : i32
    return %c0_i32, %c0_i32_0 : i32, i32
  }
  func.func @transform_4(%arg0: i32) -> (i32, i32) {
    %c0_i32 = arith.constant 0 : i32
    %c0_i32_0 = arith.constant 0 : i32
    %c0_i32_1 = arith.constant 0 : i32
    return %c0_i32, %c0_i32_0 : i32, i32
  }
  func.func @transform_5(%arg0: i32) -> (i32, i32) {
    %c0_i32 = arith.constant 0 : i32
    %c0_i32_0 = arith.constant 0 : i32
    %c0_i32_1 = arith.constant 0 : i32
    return %c0_i32, %c0_i32_0 : i32, i32
  }
  func.func @transform_6(%arg0: i32) -> (i32, i32) {
    %c0_i32 = arith.constant 0 : i32
    %c0_i32_0 = arith.constant 0 : i32
    %c0_i32_1 = arith.constant 0 : i32
    return %c0_i32, %c0_i32_0 : i32, i32
  }
  func.func @transform_7(%arg0: i32) -> (i32, i32) {
    %c0_i32 = arith.constant 0 : i32
    %c0_i32_0 = arith.constant 0 : i32
    %c0_i32_1 = arith.constant 0 : i32
    return %c0_i32, %c0_i32_0 : i32, i32
  }
  func.func @transform_8(%arg0: i32) -> (i32, i32) {
    %c0_i32 = arith.constant 0 : i32
    %c0_i32_0 = arith.constant 0 : i32
    %c0_i32_1 = arith.constant 0 : i32
    return %c0_i32, %c0_i32_0 : i32, i32
  }
  func.func @transform_9(%arg0: i32) -> (i32, i32) {
    %c0_i32 = arith.constant 0 : i32
    %c0_i32_0 = arith.constant 0 : i32
    %c0_i32_1 = arith.constant 0 : i32
    return %c0_i32, %c0_i32_0 : i32, i32
  }
  func.func @transform_10(%arg0: i32) -> (i32, i32, i32) {
    %c0_i32 = arith.constant 0 : i32
    %c0_i32_0 = arith.constant 0 : i32
    %c0_i32_1 = arith.constant 0 : i32
    return %arg0, %c0_i32, %c0_i32_0 : i32, i32, i32
  }
}

</mosaic_0001>

<llo_original>
// kernel: tpu_custom_call.1
$region0: #{tpu_custom_call.1}
  #allocation0 [shape = 'u32[]', space=smem, size = 0x4, offset = 0x4, fixed_abs, tag = 'smem constant byte address 0x4 - core index']
  #allocation1 [shape = 'u32[144,128]{1,0:T(1,128)}', space=vmem, size = 0x12000, scoped, tag = 'internal scratch']
  %s0 = inlined_call_operand.hbm [shape: f32[8,128], index: 0, kind: input, shape index: {}]
  %s1 = inlined_call_operand.hbm [shape: f32[8,128], index: 1, kind: output, shape index: {}]
  %s2 = sld [smem:[#allocation0]]
  $region18: #{tpu_custom_call.1} parent=0
    _
  %s4 = ssub.s32 1, %s2
  %s5 = scalar_select 0, %s4, %s2
  $region1: #{tpu_custom_call.1} parent=0
    #allocation2 [shape = 'u8[4096]{0}', space=vmem, size = 0x1000, scoped, tag = 'input window, operand 0, single buffered']
    #allocation3 [shape = 's32[1]{0}', space=sflag, size = 0x4, scoped, tag = 'scoped memory for tpu_custom_call.1']
    #allocation4 [shape = 's32[1]{0}', space=sflag, size = 0x4, scoped, tag = 'scoped memory for tpu_custom_call.1']
    #allocation5 [shape = 'u8[4096]{0}', space=vmem, size = 0x1000, scoped, tag = 'output window, operand 0, single buffered']
    %6 = vsyncpa [#allocation3], 0
    %7 = vsyncpa [#allocation4], 0
    // Predicated region
    $region2: #{tpu_custom_call.1} parent=1 // pred_check
      _
    $region3: #{tpu_custom_call.1} parent=1 // pred_check_branch
      %9 = sbr.rel (0) target = $region5
    $region4: #{tpu_custom_call.1} parent=1 // pred_region
      %s11 = ssub.s32 128, 128
      %12 = vsyncadd [#allocation3], %s11
      %s14 = sshll.u32 [#allocation2], 4
      %s15 = int_to_ptr.vmem [resolvable:$true] %s14
      %17 = dma.hbm_to_vmem [thread:$0]  %s0, 128, %s15, [#allocation3]
    $region5: #{tpu_custom_call.1} parent=1 // pred_fallthru
      _
    // Predicated region
    $region6: #{tpu_custom_call.1} parent=1 // pred_check
      _
    $region7: #{tpu_custom_call.1} parent=1 // pred_check_branch
      %19 = sbr.rel (0) target = $region9
    $region8: #{tpu_custom_call.1} parent=1 // pred_region
      %20 = dma.done [#allocation3], 128
    $region9: #{tpu_custom_call.1} parent=1 // pred_fallthru
      _
    %v21 = vld [vmem:[#allocation2] sm:$0xff]
    %22 = vrot.lane.b32.xlu0 %v21, 1
    %v23 = vpop.permute.xlu0 %22
    %24 = vst [vmem:[#allocation5] sm:$0xff] %v23
    // Predicated region
    $region10: #{tpu_custom_call.1} parent=1 // pred_check
      _
    $region11: #{tpu_custom_call.1} parent=1 // pred_check_branch
      %26 = sbr.rel (0) target = $region13
    $region12: #{tpu_custom_call.1} parent=1 // pred_region
      %s28 = ssub.s32 128, 128
      %29 = vsyncadd [#allocation4], %s28
      %s31 = sshll.u32 [#allocation5], 4
      %s32 = int_to_ptr.vmem [resolvable:$true] %s31
      %34 = dma.vmem_to_hbm [thread:$0]  %s32, 128, %s1, [#allocation4]
    $region13: #{tpu_custom_call.1} parent=1 // pred_fallthru
      _
    // Predicated region
    $region14: #{tpu_custom_call.1} parent=1 // pred_check
      _
    $region15: #{tpu_custom_call.1} parent=1 // pred_check_branch
      %36 = sbr.rel (0) target = $region17
    $region16: #{tpu_custom_call.1} parent=1 // pred_region
      %37 = dma.done [#allocation4], 128
    $region17: #{tpu_custom_call.1} parent=1 // pred_fallthru
      _
    %38 = vsyncpa [#allocation3], 1
    %39 = vsyncpa [#allocation4], 1

// kernel: sanet_core_forward.1
$region0: #{sanet_core_forward.1}
  #allocation0 [shape = 'u32[]', space=smem, size = 0x4, offset = 0x4, fixed_abs, tag = 'smem constant byte address 0x4 - core index']
  #allocation1 [shape = 'u32[144,128]{1,0:T(1,128)}', space=vmem, size = 0x12000, scoped, tag = 'internal scratch']
  #allocation2 [shape = 'bf16[784,256]{1,0:T(16,128)(2,1)}', space=vmem, size = 0x62000, scoped, tag = 'scratch operand']
  %s0 = inlined_call_operand.vmem [shape: bf16[2,4,256], index: 0, kind: input, shape index: {}]
  %s1 = inlined_call_operand.vmem [shape: f32[49,256], index: 1, kind: input, shape index: {}]
  %s2 = inlined_call_operand.vmem [shape: bf16[56,4], index: 2, kind: input, shape index: {}]
  %s3 = inlined_call_operand.vmem [shape: f32[56,1], index: 3, kind: input, shape index: {}]
  %s4 = inlined_call_operand.vmem [shape: bf16[8,144], index: 4, kind: input, shape index: {}]
  %s5 = inlined_call_operand.vmem [shape: f32[8,1], index: 5, kind: input, shape index: {}]
  %s6 = inlined_call_operand.vmem [shape: bf16[8,400], index: 6, kind: input, shape index: {}]
  %s7 = inlined_call_operand.vmem [shape: f32[8,1], index: 7, kind: input, shape index: {}]
  %s8 = inlined_call_operand.vmem [shape: bf16[8,784], index: 8, kind: input, shape index: {}]
  %s9 = inlined_call_operand.vmem [shape: f32[8,1], index: 9, kind: input, shape index: {}]
  %s10 = inlined_call_operand.vmem [shape: f32[2,32,256], index: 10, kind: output, shape index: {}]
  %s11 = sld [smem:[#allocation0]]
  $region73: #{sanet_core_forward.1} parent=0
    _
  %s13 = ssub.s32 1, %s11
  %s14 = scalar_select 0, %s13, %s11
  loop: start=0, step=1, limit=4
  $region2: #{sanet_core_forward.1} parent=0 // loop_pre_header
    _
  $region3: #{sanet_core_forward.1} parent=0 // loop_header
    %s16 = sphi 0, %s20
    %p17 = scmp.ge.s32.totalorder %s16, 4
    %s26 = sphi 0, %s28
    %s29 = sphi 0, %s26
    %s30 = sphi 0, %s29
    %s46 = sphi 0, %s30
    %s50 = sphi 0, %s50
    %s52 = sphi 0, %s50
    %s53 = sphi 0, %s52
    %s67 = sphi 0, %s53
    %s71 = sphi 0, %s71
    %s73 = sphi 0, %s71
    %s74 = sphi 0, %s73
    %s88 = sphi 0, %s74
    %s92 = sphi 0, %s92
    %s94 = sphi 0, %s92
    %s95 = sphi 0, %s94
    %s109 = sphi 0, %s95
    %s113 = sphi 0, %s113
    %s115 = sphi 0, %s113
    %s116 = sphi 0, %s115
    %s130 = sphi 0, %s116
    %s134 = sphi 0, %s134
    %s136 = sphi 0, %s134
    %s137 = sphi 0, %s136
    %s151 = sphi 0, %s137
    %s155 = sphi 0, %s155
    %s157 = sphi 0, %s155
    %s158 = sphi 0, %s157
    %s172 = sphi 0, %s158
    %s176 = sphi 0, %s176
    %s178 = sphi 0, %s176
    %s179 = sphi 0, %s178
    %s193 = sphi 0, %s179
    %s197 = sphi 0, %s197
    %s199 = sphi 0, %s197
    %s200 = sphi 0, %s199
    %s214 = sphi 0, %s200
    %s218 = sphi 0, %s218
    %s220 = sphi 0, %s218
    %s221 = sphi 0, %s220
    %s235 = sphi 0, %s221
    %s241 = sphi 0, %s243
    %s244 = sphi 0, %s241
    %s245 = sphi 0, %s244
    %s261 = sphi 0, %s245
  $region4: #{sanet_core_forward.1} parent=0 // loop_header_branch
    %19 = sbr.rel (%p17) target = $region8
  $region5: #{sanet_core_forward.1} parent=0 // loop_body
    %s21 = ssub.s32 %s16, 1
    %s22 = ssub.s32 %s16, 2
    %s23 = sadd.s32 %s16, 1
    %s24 = ssub.s32 %s16, %s23
    %p25 = scmp.eq.s32.totalorder %s24, 0
    %s27 = sadd.s32 %s26, 1
    %s28 = scalar_select %p25, %s26, %s27
    %p31 = pneg %p25
    %p32 = scmp.eq.s32.totalorder %s16, 1
    %p33 = por %p31, %p32
    %p34 = scmp.ne.s32.totalorder %s26, %s29
    %p35 = scmp.eq.s32.totalorder %s16, 0
    %p36 = por %p34, %p35
    %p37 = scmp.ne.s32.totalorder %s26, %s29
    %p38 = scmp.eq.s32.totalorder %s21, 1
    %p39 = por %p37, %p38
    %p40 = scmp.ne.s32.totalorder %s29, %s30
    %p41 = scmp.eq.s32.totalorder %s21, 0
    %p42 = por %p40, %p41
    %p43 = scmp.ne.s32.totalorder %s29, %s30
    %p44 = scmp.eq.s32.totalorder %s22, 1
    %p45 = por %p43, %p44
    %p47 = scmp.ne.s32.totalorder %s30, %s46
    %p48 = scmp.eq.s32.totalorder %s22, 0
    %p49 = por %p47, %p48
    %s51 = sadd.s32 %s50, 1
    %p54 = scmp.eq.s32.totalorder %s16, 1
    %p55 = scmp.ne.s32.totalorder %s50, %s52
    %p56 = scmp.eq.s32.totalorder %s16, 0
    %p57 = por %p55, %p56
    %p58 = scmp.ne.s32.totalorder %s50, %s52
    %p59 = scmp.eq.s32.totalorder %s21, 1
    %p60 = por %p58, %p59
    %p61 = scmp.ne.s32.totalorder %s52, %s53
    %p62 = scmp.eq.s32.totalorder %s21, 0
    %p63 = por %p61, %p62
    %p64 = scmp.ne.s32.totalorder %s52, %s53
    %p65 = scmp.eq.s32.totalorder %s22, 1
    %p66 = por %p64, %p65
    %p68 = scmp.ne.s32.totalorder %s53, %s67
    %p69 = scmp.eq.s32.totalorder %s22, 0
    %p70 = por %p68, %p69
    %s72 = sadd.s32 %s71, 1
    %p75 = scmp.eq.s32.totalorder %s16, 1
    %p76 = scmp.ne.s32.totalorder %s71, %s73
    %p77 = scmp.eq.s32.totalorder %s16, 0
    %p78 = por %p76, %p77
    %p79 = scmp.ne.s32.totalorder %s71, %s73
    %p80 = scmp.eq.s32.totalorder %s21, 1
    %p81 = por %p79, %p80
    %p82 = scmp.ne.s32.totalorder %s73, %s74
    %p83 = scmp.eq.s32.totalorder %s21, 0
    %p84 = por %p82, %p83
    %p85 = scmp.ne.s32.totalorder %s73, %s74
    %p86 = scmp.eq.s32.totalorder %s22, 1
    %p87 = por %p85, %p86
    %p89 = scmp.ne.s32.totalorder %s74, %s88
    %p90 = scmp.eq.s32.totalorder %s22, 0
    %p91 = por %p89, %p90
    %s93 = sadd.s32 %s92, 1
    %p96 = scmp.eq.s32.totalorder %s16, 1
    %p97 = scmp.ne.s32.totalorder %s92, %s94
    %p98 = scmp.eq.s32.totalorder %s16, 0
    %p99 = por %p97, %p98
    %p100 = scmp.ne.s32.totalorder %s92, %s94
    %p101 = scmp.eq.s32.totalorder %s21, 1
    %p102 = por %p100, %p101
    %p103 = scmp.ne.s32.totalorder %s94, %s95
    %p104 = scmp.eq.s32.totalorder %s21, 0
    %p105 = por %p103, %p104
    %p106 = scmp.ne.s32.totalorder %s94, %s95
    %p107 = scmp.eq.s32.totalorder %s22, 1
    %p108 = por %p106, %p107
    %p110 = scmp.ne.s32.totalorder %s95, %s109
    %p111 = scmp.eq.s32.totalorder %s22, 0
    %p112 = por %p110, %p111
    %s114 = sadd.s32 %s113, 1
    %p117 = scmp.eq.s32.totalorder %s16, 1
    %p118 = scmp.ne.s32.totalorder %s113, %s115
    %p119 = scmp.eq.s32.totalorder %s16, 0
    %p120 = por %p118, %p119
    %p121 = scmp.ne.s32.totalorder %s113, %s115
    %p122 = scmp.eq.s32.totalorder %s21, 1
    %p123 = por %p121, %p122
    %p124 = scmp.ne.s32.totalorder %s115, %s116
    %p125 = scmp.eq.s32.totalorder %s21, 0
    %p126 = por %p124, %p125
    %p127 = scmp.ne.s32.totalorder %s115, %s116
    %p128 = scmp.eq.s32.totalorder %s22, 1
    %p129 = por %p127, %p128
    %p131 = scmp.ne.s32.totalorder %s116, %s130
    %p132 = scmp.eq.s32.totalorder %s22, 0
    %p133 = por %p131, %p132
    %s135 = sadd.s32 %s134, 1
    %p138 = scmp.eq.s32.totalorder %s16, 1
    %p139 = scmp.ne.s32.totalorder %s134, %s136
    %p140 = scmp.eq.s32.totalorder %s16, 0
    %p141 = por %p139, %p140
    %p142 = scmp.ne.s32.totalorder %s134, %s136
    %p143 = scmp.eq.s32.totalorder %s21, 1
    %p144 = por %p142, %p143
    %p145 = scmp.ne.s32.totalorder %s136, %s137
    %p146 = scmp.eq.s32.totalorder %s21, 0
    %p147 = por %p145, %p146
    %p148 = scmp.ne.s32.totalorder %s136, %s137
    %p149 = scmp.eq.s32.totalorder %s22, 1
    %p150 = por %p148, %p149
    %p152 = scmp.ne.s32.totalorder %s137, %s151
    %p153 = scmp.eq.s32.totalorder %s22, 0
    %p154 = por %p152, %p153
    %s156 = sadd.s32 %s155, 1
    %p159 = scmp.eq.s32.totalorder %s16, 1
    %p160 = scmp.ne.s32.totalorder %s155, %s157
    %p161 = scmp.eq.s32.totalorder %s16, 0
    %p162 = por %p160, %p161
    %p163 = scmp.ne.s32.totalorder %s155, %s157
    %p164 = scmp.eq.s32.totalorder %s21, 1
    %p165 = por %p163, %p164
    %p166 = scmp.ne.s32.totalorder %s157, %s158
    %p167 = scmp.eq.s32.totalorder %s21, 0
    %p168 = por %p166, %p167
    %p169 = scmp.ne.s32.totalorder %s157, %s158
    %p170 = scmp.eq.s32.totalorder %s22, 1
    %p171 = por %p169, %p170
    %p173 = scmp.ne.s32.totalorder %s158, %s172
    %p174 = scmp.eq.s32.totalorder %s22, 0
    %p175 = por %p173, %p174
    %s177 = sadd.s32 %s176, 1
    %p180 = scmp.eq.s32.totalorder %s16, 1
    %p181 = scmp.ne.s32.totalorder %s176, %s178
    %p182 = scmp.eq.s32.totalorder %s16, 0
    %p183 = por %p181, %p182
    %p184 = scmp.ne.s32.totalorder %s176, %s178
    %p185 = scmp.eq.s32.totalorder %s21, 1
    %p186 = por %p184, %p185
    %p187 = scmp.ne.s32.totalorder %s178, %s179
    %p188 = scmp.eq.s32.totalorder %s21, 0
    %p189 = por %p187, %p188
    %p190 = scmp.ne.s32.totalorder %s178, %s179
    %p191 = scmp.eq.s32.totalorder %s22, 1
    %p192 = por %p190, %p191
    %p194 = scmp.ne.s32.totalorder %s179, %s193
    %p195 = scmp.eq.s32.totalorder %s22, 0
    %p196 = por %p194, %p195
    %s198 = sadd.s32 %s197, 1
    %p201 = scmp.eq.s32.totalorder %s16, 1
    %p202 = scmp.ne.s32.totalorder %s197, %s199
    %p203 = scmp.eq.s32.totalorder %s16, 0
    %p204 = por %p202, %p203
    %p205 = scmp.ne.s32.totalorder %s197, %s199
    %p206 = scmp.eq.s32.totalorder %s21, 1
    %p207 = por %p205, %p206
    %p208 = scmp.ne.s32.totalorder %s199, %s200
    %p209 = scmp.eq.s32.totalorder %s21, 0
    %p210 = por %p208, %p209
    %p211 = scmp.ne.s32.totalorder %s199, %s200
    %p212 = scmp.eq.s32.totalorder %s22, 1
    %p213 = por %p211, %p212
    %p215 = scmp.ne.s32.totalorder %s200, %s214
    %p216 = scmp.eq.s32.totalorder %s22, 0
    %p217 = por %p215, %p216
    %s219 = sadd.s32 %s218, 1
    %p222 = scmp.eq.s32.totalorder %s16, 1
    %p223 = scmp.ne.s32.totalorder %s218, %s220
    %p224 = scmp.eq.s32.totalorder %s16, 0
    %p225 = por %p223, %p224
    %p226 = scmp.ne.s32.totalorder %s218, %s220
    %p227 = scmp.eq.s32.totalorder %s21, 1
    %p228 = por %p226, %p227
    %p229 = scmp.ne.s32.totalorder %s220, %s221
    %p230 = scmp.eq.s32.totalorder %s21, 0
    %p231 = por %p229, %p230
    %p232 = scmp.ne.s32.totalorder %s220, %s221
    %p233 = scmp.eq.s32.totalorder %s22, 1
    %p234 = por %p232, %p233
    %p236 = scmp.ne.s32.totalorder %s221, %s235
    %p237 = scmp.eq.s32.totalorder %s22, 0
    %p238 = por %p236, %p237
    %s239 = ssub.s32 %s16, %s23
    %p240 = scmp.eq.s32.totalorder %s239, 0
    %s242 = sadd.s32 %s241, 1
    %s243 = scalar_select %p240, %s241, %s242
    %p246 = pneg %p240
    %p247 = scmp.eq.s32.totalorder %s16, 1
    %p248 = por %p246, %p247
    %p249 = scmp.ne.s32.totalorder %s241, %s244
    %p250 = scmp.eq.s32.totalorder %s16, 0
    %p251 = por %p249, %p250
    %p252 = scmp.ne.s32.totalorder %s241, %s244
    %p253 = scmp.eq.s32.totalorder %s21, 1
    %p254 = por %p252, %p253
    %p255 = scmp.ne.s32.totalorder %s244, %s245
    %p256 = scmp.eq.s32.totalorder %s21, 0
    %p257 = por %p255, %p256
    %p258 = scmp.ne.s32.totalorder %s244, %s245
    %p259 = scmp.eq.s32.totalorder %s22, 1
    %p260 = por %p258, %p259
    %p262 = scmp.ne.s32.totalorder %s245, %s261
    %p263 = scmp.eq.s32.totalorder %s22, 0
    %p264 = por %p262, %p263
    %p265 = scmp.le.s32.totalorder 1, %s16
    %p266 = scmp.lt.s32.totalorder %s16, 3
    %p267 = pnand %p265, %p266
    %p268 = pneg %p267
    // Predicated region
    $region9: #{sanet_core_forward.1} parent=5 // pred_check
      _
    $region10: #{sanet_core_forward.1} parent=5 // pred_check_branch
      %270 = sbr.rel (%p267) target = $region12
    $region11: #{sanet_core_forward.1} parent=5 // pred_region
      %s271 = ssub.s32 %s16, 1
      // Predicated region
      $region13: #{sanet_core_forward.1} parent=11 // pred_check
        %p272 = pneg %p63
      $region14: #{sanet_core_forward.1} parent=11 // pred_check_branch
        %274 = sbr.rel (%p272) target = $region16
      $region15: #{sanet_core_forward.1} parent=11 // pred_region
        _
      $region16: #{sanet_core_forward.1} parent=11 // pred_fallthru
        _
      // Predicated region
      $region17: #{sanet_core_forward.1} parent=11 // pred_check
        %p275 = pneg %p84
      $region18: #{sanet_core_forward.1} parent=11 // pred_check_branch
        %277 = sbr.rel (%p275) target = $region20
      $region19: #{sanet_core_forward.1} parent=11 // pred_region
        _
      $region20: #{sanet_core_forward.1} parent=11 // pred_fallthru
        _
      // Predicated region
      $region21: #{sanet_core_forward.1} parent=11 // pred_check
        %p278 = pneg %p105
      $region22: #{sanet_core_forward.1} parent=11 // pred_check_branch
        %280 = sbr.rel (%p278) target = $region24
      $region23: #{sanet_core_forward.1} parent=11 // pred_region
        _
      $region24: #{sanet_core_forward.1} parent=11 // pred_fallthru
        _
      // Predicated region
      $region25: #{sanet_core_forward.1} parent=11 // pred_check
        %p281 = pneg %p126
      $region26: #{sanet_core_forward.1} parent=11 // pred_check_branch
        %283 = sbr.rel (%p281) target = $region28
      $region27: #{sanet_core_forward.1} parent=11 // pred_region
        _
      $region28: #{sanet_core_forward.1} parent=11 // pred_fallthru
        _
      // Predicated region
      $region29: #{sanet_core_forward.1} parent=11 // pred_check
        %p284 = pneg %p147
      $region30: #{sanet_core_forward.1} parent=11 // pred_check_branch
        %286 = sbr.rel (%p284) target = $region32
      $region31: #{sanet_core_forward.1} parent=11 // pred_region
        _
      $region32: #{sanet_core_forward.1} parent=11 // pred_fallthru
        _
      // Predicated region
      $region33: #{sanet_core_forward.1} parent=11 // pred_check
        %p287 = pneg %p168
      $region34: #{sanet_core_forward.1} parent=11 // pred_check_branch
        %289 = sbr.rel (%p287) target = $region36
      $region35: #{sanet_core_forward.1} parent=11 // pred_region
        _
      $region36: #{sanet_core_forward.1} parent=11 // pred_fallthru
        _
      // Predicated region
      $region37: #{sanet_core_forward.1} parent=11 // pred_check
        %p290 = pneg %p189
      $region38: #{sanet_core_forward.1} parent=11 // pred_check_branch
        %292 = sbr.rel (%p290) target = $region40
      $region39: #{sanet_core_forward.1} parent=11 // pred_region
        _
      $region40: #{sanet_core_forward.1} parent=11 // pred_fallthru
        _
      // Predicated region
      $region41: #{sanet_core_forward.1} parent=11 // pred_check
        %p293 = pneg %p210
      $region42: #{sanet_core_forward.1} parent=11 // pred_check_branch
        %295 = sbr.rel (%p293) target = $region44
      $region43: #{sanet_core_forward.1} parent=11 // pred_region
        _
      $region44: #{sanet_core_forward.1} parent=11 // pred_fallthru
        _
      // Predicated region
      $region45: #{sanet_core_forward.1} parent=11 // pred_check
        %p296 = pneg %p231
      $region46: #{sanet_core_forward.1} parent=11 // pred_check_branch
        %298 = sbr.rel (%p296) target = $region48
      $region47: #{sanet_core_forward.1} parent=11 // pred_region
        _
      $region48: #{sanet_core_forward.1} parent=11 // pred_fallthru
        _
    $region12: #{sanet_core_forward.1} parent=5 // pred_fallthru
      _
    %p299 = scmp.lt.s32.totalorder %s16, 2
    // Predicated region
    $region49: #{sanet_core_forward.1} parent=5 // pred_check
      %p300 = pneg %p299
    $region50: #{sanet_core_forward.1} parent=5 // pred_check_branch
      %302 = sbr.rel (%p300) target = $region52
    $region51: #{sanet_core_forward.1} parent=5 // pred_region
      // Predicated region
      $region53: #{sanet_core_forward.1} parent=51 // pred_check
        %p303 = pneg %p36
      $region54: #{sanet_core_forward.1} parent=51 // pred_check_branch
        %305 = sbr.rel (%p303) target = $region56
      $region55: #{sanet_core_forward.1} parent=51 // pred_region
        %p306 = scmp.lt.s32.totalorder %s16, 1
        %s307 = scalar_select %p306, %s16, 1
        %s308 = smul.addr %s307, 2
        %s309 = smul.addr %s308, 2
        %s310 = scalar_lea.vmem %s0, %s309
      $region56: #{sanet_core_forward.1} parent=51 // pred_fallthru
        _
    $region52: #{sanet_core_forward.1} parent=5 // pred_fallthru
      _
    %p311 = scmp.le.s32.totalorder 1, %s16
    %p312 = scmp.lt.s32.totalorder %s16, 3
    %p313 = pnand %p311, %p312
    %p314 = pneg %p313
    // Predicated region
    $region57: #{sanet_core_forward.1} parent=5 // pred_check
      _
    $region58: #{sanet_core_forward.1} parent=5 // pred_check_branch
      %316 = sbr.rel (%p313) target = $region60
    $region59: #{sanet_core_forward.1} parent=5 // pred_region
      %s317 = ssub.s32 %s16, 1
      %p318 = scmp.lt.s32.totalorder %s21, 1
      %s319 = scalar_select %p318, %s21, 1
      %s320 = smul.addr %s319, 2
      %s321 = smul.addr %s320, 2
      %s322 = scalar_lea.vmem %s0, %s321
      %p323 = pneg %p42
      %p324 = pneg %p39
      %p325 = pneg %p63
      %p326 = pneg %p60
      %p327 = pneg %p84
      %p328 = pneg %p81
      %p329 = pneg %p105
      %p330 = pneg %p102
      %p331 = pneg %p126
      %p332 = pneg %p123
      %p333 = pneg %p147
      %p334 = pneg %p144
      %p335 = pneg %p168
      %p336 = pneg %p165
      %p337 = pneg %p189
      %p338 = pneg %p186
      %p339 = pneg %p210
      %p340 = pneg %p207
      %p341 = pneg %p231
      %p342 = pneg %p228
      %p343 = pneg %p257
      %p344 = pneg %p254
      %p345 = scmp.lt.s32.totalorder %s21, 1
      %s346 = scalar_select %p345, %s21, 1
      %s347 = smul.addr %s346, 8
      %s348 = smul.addr %s347, 8
      %s349 = scalar_lea.vmem %s10, %s348
      %p350 = scmp.lt.s32.totalorder %s21, 1
      %s351 = scalar_select %p350, %s21, 1
      %s352 = smul.addr %s351, 2
      %s353 = smul.addr %s352, 2
      %s354 = scalar_lea.vmem %s0, %s353
      %p355 = scmp.lt.s32.totalorder %s21, 1
      %s356 = scalar_select %p355, %s21, 1
      %s357 = smul.addr %s356, 8
      %s358 = smul.addr %s357, 8
      %s359 = scalar_lea.vmem %s10, %s358
      %v361 = vld [vmem:[%s354] sm:$0xf]
      %v362 = vld [vmem:[%s2] sm:$0xf]
      %v363 = vld [vmem:[%s2 + $0x4] sm:$0xf]
      %v364 = vld [vmem:[%s2 + $0x8] sm:$0xf]
      %v365 = vld [vmem:[%s2 + $0xc] sm:$0xf]
      %v366 = vld [vmem:[%s2 + $0x10] sm:$0xf]
      %v367 = vld [vmem:[%s2 + $0x14] sm:$0xf]
      %v368 = vld [vmem:[%s2 + $0x18] sm:$0xf]
      %v369 = vld [vmem:[%s3] sm:$0xff]
      %v370 = vld [vmem:[%s3 + $0x8] sm:$0xff]
      %v371 = vld [vmem:[%s3 + $0x10] sm:$0xff]
      %v372 = vld [vmem:[%s3 + $0x18] sm:$0xff]
      %v373 = vld [vmem:[%s3 + $0x20] sm:$0xff]
      %v374 = vld [vmem:[%s3 + $0x28] sm:$0xff]
      %v375 = vld [vmem:[%s3 + $0x30] sm:$0xff]
      %377 = vset.pattern.permute.xlu0 0
      %378 = vperm.xlu0 %377, %v369
      %v379 = vpop.permute.xlu0 %378
      %382 = vset.pattern.permute.xlu0 0
      %383 = vperm.xlu0 %382, %v370
      %v384 = vpop.permute.xlu0 %383
      %387 = vset.pattern.permute.xlu0 0
      %388 = vperm.xlu0 %387, %v371
      %v389 = vpop.permute.xlu0 %388
      %392 = vset.pattern.permute.xlu0 0
      %393 = vperm.xlu0 %392, %v372
      %v394 = vpop.permute.xlu0 %393
      %397 = vset.pattern.permute.xlu0 0
      %398 = vperm.xlu0 %397, %v373
      %v399 = vpop.permute.xlu0 %398
      %402 = vset.pattern.permute.xlu0 0
      %403 = vperm.xlu0 %402, %v374
      %v404 = vpop.permute.xlu0 %403
      %407 = vset.pattern.permute.xlu0 0
      %408 = vperm.xlu0 %407, %v375
      %v409 = vpop.permute.xlu0 %408
      %v418 = vunpack.c.l.b16 %v362
      %v419 = vunpack.c.l.b16 %v363
      %v420 = vunpack.c.l.b16 %v364
      %v421 = vunpack.c.l.b16 %v365
      %v422 = vunpack.c.l.b16 %v366
      %v423 = vunpack.c.l.b16 %v367
      %v424 = vunpack.c.l.b16 %v368
      %v425 = vpack.c.b16 %v419, %v418
      %v426 = vpack.c.b16 %v421, %v420
      %v427 = vpack.c.b16 %v423, %v422
      %v428 = vpack.c.b16 %v424, %v424
      %v431 = vunpack.c.l.s4 1983009808
      %v432 = vunpack.c.0.s8 %v431
      %v433 = vlaneseq
      %v434 = vshrl.u32 %v433, 7
      %v435 = vsub.s32 %v432, %v434
      %v436 = vrot.slane %v361, %v435
      %v437 = vcombine.high %v436, %v436
      %vm438 = vcmask 31744
      %v440 = vsel %vm438, %v425, 0
      %v443 = vsel %vm438, %v426, 0
      %v446 = vsel %vm438, %v427, 0
      %v449 = vsel %vm438, %v428, 0
      %vm451 = vcmask 1041408
      %v453 = vsel %vm451, %v436, 0
      %v456 = vsel %vm451, %v437, 0
      %458 = vmatprep.subr.bf16.mxu0 %v456
      %459 = vmatpush1.bf16.msra.mxu0 %v453
      %460 = vmatprep.subr.bf16.mxu0 0
      %461 = vmatpush1.bf16.msra.mxu0 0
      %462 = vmatprep.subr.bf16.mxu0 0
      %463 = vmatpush1.bf16.msra.mxu0 0
      %464 = vmatprep.subr.bf16.mxu0 0
      %465 = vmatpush1.bf16.msra.mxu0 0
      %466 = vmatprep.subr.bf16.mxu0 0
      %467 = vmatpush1.bf16.msra.mxu0 0
      %468 = vmatprep.subr.bf16.mxu0 0
      %469 = vmatpush1.bf16.msra.mxu0 0
      %470 = vmatprep.subr.bf16.mxu0 0
      %471 = vmatpush1.bf16.msra.mxu0 0
      %472 = vmatprep.subr.bf16.mxu0 0
      %473 = vmatpush1.bf16.msra.mxu0 0
      %474 = vmatprep.subr.bf16.mxu0 0
      %475 = vmatpush1.bf16.msra.mxu0 0
      %476 = vmatprep.subr.bf16.mxu0 0
      %477 = vmatpush1.bf16.msra.mxu0 0
      %478 = vmatprep.subr.bf16.mxu0 0
      %479 = vmatpush1.bf16.msra.mxu0 0
      %480 = vmatprep.subr.bf16.mxu0 0
      %481 = vmatpush1.bf16.msra.mxu0 0
      %482 = vmatprep.subr.bf16.mxu0 0
      %483 = vmatpush1.bf16.msra.mxu0 0
      %484 = vmatprep.subr.bf16.mxu0 0
      %485 = vmatpush1.bf16.msra.mxu0 0
      %486 = vmatprep.subr.bf16.mxu0 0
      %487 = vmatpush1.bf16.msra.mxu0 0
      %488 = vmatprep.subr.bf16.mxu0 0
      %489 = vmatpush1.bf16.msra.mxu0 0
      %490 = vmatprep.mubr.bf16.mxu0 0
      %491 = vmatmul.mubr.bf16.gmra.mrb[0].mxu0 %v440
      %v492 = vpop.f32.mrb[0].mxu0
      %v493 = vadd.f32 %v379, %v492
      %v494 = vpop.f32.mrb[0].mxu0
      %v495 = vadd.f32 %v379, %v494
      %v496 = vpop.f32.mrb[0].mxu0
      %v497 = vadd.f32 %v384, %v496
      %v498 = vpop.f32.mrb[0].mxu0
      %v499 = vadd.f32 %v384, %v498
      %500 = vmatprep.mubr.bf16.mxu0 0
      %501 = vmatmul.mubr.bf16.gmra.mrb[0].mxu0 %v443
      %v502 = vpop.f32.mrb[0].mxu0
      %v503 = vadd.f32 %v389, %v502
      %v504 = vpop.f32.mrb[0].mxu0
      %v505 = vadd.f32 %v389, %v504
      %v506 = vpop.f32.mrb[0].mxu0
      %v507 = vadd.f32 %v394, %v506
      %v508 = vpop.f32.mrb[0].mxu0
      %v509 = vadd.f32 %v394, %v508
      %510 = vmatprep.mubr.bf16.mxu0 0
      %511 = vmatmul.mubr.bf16.gmra.mrb[0].mxu0 %v446
      %v512 = vpop.f32.mrb[0].mxu0
      %v513 = vadd.f32 %v399, %v512
      %v514 = vpop.f32.mrb[0].mxu0
      %v515 = vadd.f32 %v399, %v514
      %v516 = vpop.f32.mrb[0].mxu0
      %v517 = vadd.f32 %v404, %v516
      %v518 = vpop.f32.mrb[0].mxu0
      %v519 = vadd.f32 %v404, %v518
      %520 = vmatprep.mubr.bf16.mxu0 0
      %521 = vmatmul.mubr.bf16.gmra.mrb[0].mxu0 %v449
      %v522 = vpop.f32.mrb[0].mxu0
      %v523 = vadd.f32 %v409, %v522
      %v524 = vpop.f32.mrb[0].mxu0
      %v525 = vadd.f32 %v409, %v524
      %v526 = vpop.f32.mrb[0].mxu0
      %v527 = vpop.f32.mrb[0].mxu0
      %528 = vdwg.mxu0
      %v529 = vmax.f32 %v493, 0.0
      %v530 = vmax.f32 %v495, 0.0
      %v531 = vmax.f32 %v497, 0.0
      %v532 = vmax.f32 %v499, 0.0
      %v533 = vmax.f32 %v503, 0.0
      %v534 = vmax.f32 %v505, 0.0
      %v535 = vmax.f32 %v507, 0.0
      %v536 = vmax.f32 %v509, 0.0
      %v537 = vmax.f32 %v513, 0.0
      %v538 = vmax.f32 %v515, 0.0
      %v539 = vmax.f32 %v517, 0.0
      %v540 = vmax.f32 %v519, 0.0
      %v541 = vmax.f32 %v523, 0.0
      %v542 = vmax.f32 %v525, 0.0
      %543 = vst [vmem:[%s359] sm:$0xff] %v529
      %544 = vst [vmem:[%s359 + $0x8] sm:$0xff] %v530
      %s545 = scalar_lea.vmem %s1, 32
      %v546 = vld [vmem:[%s545] ss:$8 sm:$0x3]
      %549 = vrot.lane.b32.xlu0 %v532, 17
      %v550 = vpop.permute.xlu0 %549
      %551 = vrot.lane.b32.xlu0 %v534, 17
      %v552 = vpop.permute.xlu0 %551
      %557 = vrot.lane.b32.xlu0 %v531, 17
      %v558 = vpop.permute.xlu0 %557
      %559 = vrot.lane.b32.xlu0 %v533, 17
      %v560 = vpop.permute.xlu0 %559
      %vm561 = vcmask 138240
      %v562 = vsel %vm561, %v558, %v550
      %v563 = vsel %vm561, %v560, %v552
      %v568 = vsel %vm561, %v550, %v558
      %v569 = vsel %vm561, %v552, %v560
      %v571 = vlaneseq
      %v572 = vshrl.u32 %v571, 7
      %v573 = vsub.s32 0, %v572
      %v574 = vrot.slane %v546, %v573
      %v575 = vlaneseq
      %v576 = vshrl.u32 %v575, 7
      %v577 = vsub.s32 1, %v576
      %v578 = vrot.slane %v546, %v577
      %v581 = vmul.f32 %v568, %v574
      %v582 = vmul.f32 %v562, %v578
      %v583 = vmul.f32 %v569, %v574
      %v584 = vmul.f32 %v563, %v578
      %v585 = vpack.c.bf16 %v583, %v581
      %v586 = vpack.c.bf16 %v584, %v582
      %587 = vst [vmem:[#allocation2] sm:$0xff] %v585
      %588 = vst [vmem:[#allocation2 + $0x8] sm:$0xff] %v586
      %s589 = scalar_lea.vmem %s1, 33
      %v590 = vld [vmem:[%s589] ss:$8 sm:$0x3]
      %591 = vrot.lane.b32.xlu0 %v532, 16
      %v592 = vpop.permute.xlu0 %591
      %593 = vrot.lane.b32.xlu0 %v534, 16
      %v594 = vpop.permute.xlu0 %593
      %597 = vrot.lane.b32.xlu0 %v531, 16
      %v598 = vpop.permute.xlu0 %597
      %599 = vrot.lane.b32.xlu0 %v533, 16
      %v600 = vpop.permute.xlu0 %599
      %vm601 = vcmask 130048
      %v602 = vsel %vm601, %v598, %v592
      %v603 = vsel %vm601, %v600, %v594
      %v608 = vsel %vm601, %v592, %v598
      %v609 = vsel %vm601, %v594, %v600
      %v611 = vlaneseq
      %v612 = vshrl.u32 %v611, 7
      %v613 = vsub.s32 0, %v612
      %v614 = vrot.slane %v590, %v613
      %v615 = vlaneseq
      %v616 = vshrl.u32 %v615, 7
      %v617 = vsub.s32 1, %v616
      %v618 = vrot.slane %v590, %v617
      %v621 = vmul.f32 %v608, %v614
      %v622 = vmul.f32 %v602, %v618
      %v623 = vmul.f32 %v609, %v614
      %v624 = vmul.f32 %v603, %v618
      %v625 = vpack.c.bf16 %v623, %v621
      %v626 = vpack.c.bf16 %v624, %v622
      %627 = vst [vmem:[#allocation2 + $0x10] sm:$0xff] %v625
      %628 = vst [vmem:[#allocation2 + $0x18] sm:$0xff] %v626
      %s629 = scalar_lea.vmem %s1, 34
      %v630 = vld [vmem:[%s629] ss:$8 sm:$0x3]
      %631 = vrot.lane.b32.xlu0 %v532, 15
      %v632 = vpop.permute.xlu0 %631
      %633 = vrot.lane.b32.xlu0 %v534, 15
      %v634 = vpop.permute.xlu0 %633
      %637 = vrot.lane.b32.xlu0 %v531, 15
      %v638 = vpop.permute.xlu0 %637
      %639 = vrot.lane.b32.xlu0 %v533, 15
      %v640 = vpop.permute.xlu0 %639
      %vm641 = vcmask 121856
      %v642 = vsel %vm641, %v638, %v632
      %v643 = vsel %vm641, %v640, %v634
      %v648 = vsel %vm641, %v632, %v638
      %v649 = vsel %vm641, %v634, %v640
      %v651 = vlaneseq
      %v652 = vshrl.u32 %v651, 7
      %v653 = vsub.s32 0, %v652
      %v654 = vrot.slane %v630, %v653
      %v655 = vlaneseq
      %v656 = vshrl.u32 %v655, 7
      %v657 = vsub.s32 1, %v656
      %v658 = vrot.slane %v630, %v657
      %v661 = vmul.f32 %v648, %v654
      %v662 = vmul.f32 %v642, %v658
      %v663 = vmul.f32 %v649, %v654
      %v664 = vmul.f32 %v643, %v658
      %v665 = vpack.c.bf16 %v663, %v661
      %v666 = vpack.c.bf16 %v664, %v662
      %667 = vst [vmem:[#allocation2 + $0x20] sm:$0xff] %v665
      %668 = vst [vmem:[#allocation2 + $0x28] sm:$0xff] %v666
      %s669 = scalar_lea.vmem %s1, 39
      %v670 = vld [vmem:[%s669] ss:$8 sm:$0x3]
      %671 = vrot.lane.b32.xlu0 %v532, 1
      %v672 = vpop.permute.xlu0 %671
      %673 = vrot.lane.b32.xlu0 %v534, 1
      %v674 = vpop.permute.xlu0 %673
      %677 = vrot.lane.b32.xlu0 %v531, 1
      %v678 = vpop.permute.xlu0 %677
      %679 = vrot.lane.b32.xlu0 %v533, 1
      %v680 = vpop.permute.xlu0 %679
      %vm681 = vcmask 7168
      %v682 = vsel %vm681, %v678, %v672
      %v683 = vsel %vm681, %v680, %v674
      %v688 = vsel %vm681, %v672, %v678
      %v689 = vsel %vm681, %v674, %v680
      %v691 = vlaneseq
      %v692 = vshrl.u32 %v691, 7
      %v693 = vsub.s32 0, %v692
      %v694 = vrot.slane %v670, %v693
      %v695 = vlaneseq
      %v696 = vshrl.u32 %v695, 7
      %v697 = vsub.s32 1, %v696
      %v698 = vrot.slane %v670, %v697
      %v701 = vmul.f32 %v688, %v694
      %v702 = vmul.f32 %v682, %v698
      %v703 = vmul.f32 %v689, %v694
      %v704 = vmul.f32 %v683, %v698
      %v705 = vpack.c.bf16 %v703, %v701
      %v706 = vpack.c.bf16 %v704, %v702
      %707 = vst [vmem:[#allocation2 + $0x30] sm:$0xff] %v705
      %708 = vst [vmem:[#allocation2 + $0x38] sm:$0xff] %v706
      %v709 = vpack.c.bf16 %v533, %v531
      %v710 = vpack.c.bf16 %v534, %v532
      %711 = vst [vmem:[#allocation2 + $0x40] sm:$0xff] %v709
      %712 = vst [vmem:[#allocation2 + $0x48] sm:$0xff] %v710
      %s713 = scalar_lea.vmem %s1, 49
      %v714 = vld [vmem:[%s713] ss:$8 sm:$0x3]
      %715 = vrot.lane.b32.xlu0 %v531, 127
      %v716 = vpop.permute.xlu0 %715
      %717 = vrot.lane.b32.xlu0 %v532, 127
      %v718 = vpop.permute.xlu0 %717
      %719 = vrot.lane.b32.xlu0 %v533, 127
      %v720 = vpop.permute.xlu0 %719
      %721 = vrot.lane.b32.xlu0 %v534, 127
      %v722 = vpop.permute.xlu0 %721
      %vm723 = vcmask 1039360
      %v724 = vsel %vm723, %v716, %v718
      %v725 = vsel %vm723, %v720, %v722
      %v732 = vsel %vm723, %v718, %v716
      %v733 = vsel %vm723, %v722, %v720
      %v735 = vlaneseq
      %v736 = vshrl.u32 %v735, 7
      %v737 = vsub.s32 0, %v736
      %v738 = vrot.slane %v714, %v737
      %v739 = vlaneseq
      %v740 = vshrl.u32 %v739, 7
      %v741 = vsub.s32 1, %v740
      %v742 = vrot.slane %v714, %v741
      %v745 = vmul.f32 %v724, %v738
      %v746 = vmul.f32 %v732, %v742
      %v747 = vmul.f32 %v725, %v738
      %v748 = vmul.f32 %v733, %v742
      %v749 = vpack.c.bf16 %v747, %v745
      %v750 = vpack.c.bf16 %v748, %v746
      %751 = vst [vmem:[#allocation2 + $0x50] sm:$0xff] %v749
      %752 = vst [vmem:[#allocation2 + $0x58] sm:$0xff] %v750
      %s753 = scalar_lea.vmem %s1, 54
      %v754 = vld [vmem:[%s753] ss:$8 sm:$0x3]
      %755 = vrot.lane.b32.xlu0 %v531, 113
      %v756 = vpop.permute.xlu0 %755
      %757 = vrot.lane.b32.xlu0 %v532, 113
      %v758 = vpop.permute.xlu0 %757
      %759 = vrot.lane.b32.xlu0 %v533, 113
      %v760 = vpop.permute.xlu0 %759
      %761 = vrot.lane.b32.xlu0 %v534, 113
      %v762 = vpop.permute.xlu0 %761
      %vm763 = vcmask 924672
      %v764 = vsel %vm763, %v756, %v758
      %v765 = vsel %vm763, %v760, %v762
      %v772 = vsel %vm763, %v758, %v756
      %v773 = vsel %vm763, %v762, %v760
      %v775 = vlaneseq
      %v776 = vshrl.u32 %v775, 7
      %v777 = vsub.s32 0, %v776
      %v778 = vrot.slane %v754, %v777
      %v779 = vlaneseq
      %v780 = vshrl.u32 %v779, 7
      %v781 = vsub.s32 1, %v780
      %v782 = vrot.slane %v754, %v781
      %v785 = vmul.f32 %v764, %v778
      %v786 = vmul.f32 %v772, %v782
      %v787 = vmul.f32 %v765, %v778
      %v788 = vmul.f32 %v773, %v782
      %v789 = vpack.c.bf16 %v787, %v785
      %v790 = vpack.c.bf16 %v788, %v786
      %791 = vst [vmem:[#allocation2 + $0x60] sm:$0xff] %v789
      %792 = vst [vmem:[#allocation2 + $0x68] sm:$0xff] %v790
      %s793 = scalar_lea.vmem %s1, 55
      %v794 = vld [vmem:[%s793] ss:$8 sm:$0x3]
      %795 = vrot.lane.b32.xlu0 %v531, 112
      %v796 = vpop.permute.xlu0 %795
      %797 = vrot.lane.b32.xlu0 %v532, 112
      %v798 = vpop.permute.xlu0 %797
      %799 = vrot.lane.b32.xlu0 %v533, 112
      %v800 = vpop.permute.xlu0 %799
      %801 = vrot.lane.b32.xlu0 %v534, 112
      %v802 = vpop.permute.xlu0 %801
      %vm803 = vcmask 916480
      %v804 = vsel %vm803, %v796, %v798
      %v805 = vsel %vm803, %v800, %v802
      %v812 = vsel %vm803, %v798, %v796
      %v813 = vsel %vm803, %v802, %v800
      %v815 = vlaneseq
      %v816 = vshrl.u32 %v815, 7
      %v817 = vsub.s32 0, %v816
      %v818 = vrot.slane %v794, %v817
      %v819 = vlaneseq
      %v820 = vshrl.u32 %v819, 7
      %v821 = vsub.s32 1, %v820
      %v822 = vrot.slane %v794, %v821
      %v825 = vmul.f32 %v804, %v818
      %v826 = vmul.f32 %v812, %v822
      %v827 = vmul.f32 %v805, %v818
      %v828 = vmul.f32 %v813, %v822
      %v829 = vpack.c.bf16 %v827, %v825
      %v830 = vpack.c.bf16 %v828, %v826
      %831 = vst [vmem:[#allocation2 + $0x70] sm:$0xff] %v829
      %832 = vst [vmem:[#allocation2 + $0x78] sm:$0xff] %v830
      %s833 = scalar_lea.vmem %s1, 64
      %v834 = vld [vmem:[%s833] ss:$8 sm:$0x3]
      %835 = vrot.lane.b32.xlu0 %v531, 111
      %v836 = vpop.permute.xlu0 %835
      %837 = vrot.lane.b32.xlu0 %v532, 111
      %v838 = vpop.permute.xlu0 %837
      %839 = vrot.lane.b32.xlu0 %v533, 111
      %v840 = vpop.permute.xlu0 %839
      %841 = vrot.lane.b32.xlu0 %v534, 111
      %v842 = vpop.permute.xlu0 %841
      %vm843 = vcmask 908288
      %v844 = vsel %vm843, %v836, %v838
      %v845 = vsel %vm843, %v840, %v842
      %v852 = vsel %vm843, %v838, %v836
      %v853 = vsel %vm843, %v842, %v840
      %v855 = vlaneseq
      %v856 = vshrl.u32 %v855, 7
      %v857 = vsub.s32 0, %v856
      %v858 = vrot.slane %v834, %v857
      %v859 = vlaneseq
      %v860 = vshrl.u32 %v859, 7
      %v861 = vsub.s32 1, %v860
      %v862 = vrot.slane %v834, %v861
      %v865 = vmul.f32 %v844, %v858
      %v866 = vmul.f32 %v852, %v862
      %v867 = vmul.f32 %v845, %v858
      %v868 = vmul.f32 %v853, %v862
      %v869 = vpack.c.bf16 %v867, %v865
      %v870 = vpack.c.bf16 %v868, %v866
      %871 = vst [vmem:[#allocation2 + $0x80] sm:$0xff] %v869
      %872 = vst [vmem:[#allocation2 + $0x88] sm:$0xff] %v870
      %v873 = vld [vmem:[#allocation2] sm:$0xff]
      %v874 = vld [vmem:[#allocation2 + $0x8] sm:$0xff]
      %v875 = vld [vmem:[#allocation2 + $0x10] sm:$0xff]
      %v876 = vld [vmem:[#allocation2 + $0x18] sm:$0xff]
      %v877 = vld [vmem:[#allocation2 + $0x20] sm:$0xff]
      %v878 = vld [vmem:[#allocation2 + $0x28] sm:$0xff]
      %v879 = vld [vmem:[#allocation2 + $0x30] sm:$0xff]
      %v880 = vld [vmem:[#allocation2 + $0x38] sm:$0xff]
      %v881 = vld [vmem:[#allocation2 + $0x40] sm:$0xff]
      %v882 = vld [vmem:[#allocation2 + $0x48] sm:$0xff]
      %v883 = vld [vmem:[#allocation2 + $0x50] sm:$0xff]
      %v884 = vld [vmem:[#allocation2 + $0x58] sm:$0xff]
      %v885 = vld [vmem:[#allocation2 + $0x60] sm:$0xff]
      %v886 = vld [vmem:[#allocation2 + $0x68] sm:$0xff]
      %v887 = vld [vmem:[#allocation2 + $0x70] sm:$0xff]
      %v888 = vld [vmem:[#allocation2 + $0x78] sm:$0xff]
      %v889 = vld [vmem:[#allocation2 + $0x80] sm:$0xff]
      %v890 = vld [vmem:[#allocation2 + $0x88] sm:$0xff]
      %v891 = vld [vmem:[%s4] sm:$0xff]
      %v892 = vld [vmem:[%s5] sm:$0xff]
      %894 = vset.pattern.permute.xlu0 0
      %895 = vperm.xlu0 %894, %v892
      %v896 = vpop.permute.xlu0 %895
      %v899 = vunpack.c.l.b16 %v891
      %v900 = vunpack.c.h.b16 %v891
      %v901 = vpack.c.b16 %v899, %v899
      %v902 = vpack.c.b16 %v900, %v900
      %v905 = vsel %vm601, %v902, 0
      %907 = vmatprep.subr.bf16.mxu0 %v874
      %908 = vmatpush1.bf16.msra.mxu0 %v873
      %909 = vmatprep.subr.bf16.mxu0 %v876
      %910 = vmatpush1.bf16.msra.mxu0 %v875
      %911 = vmatprep.subr.bf16.mxu0 %v878
      %912 = vmatpush1.bf16.msra.mxu0 %v877
      %913 = vmatprep.subr.bf16.mxu0 %v880
      %914 = vmatpush1.bf16.msra.mxu0 %v879
      %915 = vmatprep.subr.bf16.mxu0 %v882
      %916 = vmatpush1.bf16.msra.mxu0 %v881
      %917 = vmatprep.subr.bf16.mxu0 %v884
      %918 = vmatpush1.bf16.msra.mxu0 %v883
      %919 = vmatprep.subr.bf16.mxu0 %v886
      %920 = vmatpush1.bf16.msra.mxu0 %v885
      %921 = vmatprep.subr.bf16.mxu0 %v888
      %922 = vmatpush1.bf16.msra.mxu0 %v887
      %923 = vmatprep.subr.bf16.mxu0 %v890
      %924 = vmatpush1.bf16.msra.mxu0 %v889
      %925 = vmatprep.subr.bf16.mxu0 0
      %926 = vmatpush1.bf16.msra.mxu0 0
      %927 = vmatprep.subr.bf16.mxu0 0
      %928 = vmatpush1.bf16.msra.mxu0 0
      %929 = vmatprep.subr.bf16.mxu0 0
      %930 = vmatpush1.bf16.msra.mxu0 0
      %931 = vmatprep.subr.bf16.mxu0 0
      %932 = vmatpush1.bf16.msra.mxu0 0
      %933 = vmatprep.subr.bf16.mxu0 0
      %934 = vmatpush1.bf16.msra.mxu0 0
      %935 = vmatprep.subr.bf16.mxu0 0
      %936 = vmatpush1.bf16.msra.mxu0 0
      %937 = vmatprep.subr.bf16.mxu0 0
      %938 = vmatpush1.bf16.msra.mxu0 0
      %939 = vmatprep.mubr.bf16.mxu0 %v905
      %940 = vmatmul.mubr.bf16.gmra.mrb[0].mxu0 %v901
      %v941 = vpop.f32.mrb[0].mxu0
      %v942 = vadd.f32 %v896, %v941
      %v943 = vpop.f32.mrb[0].mxu0
      %v944 = vadd.f32 %v896, %v943
      %v945 = vpop.f32.mrb[0].mxu0
      %v946 = vpop.f32.mrb[0].mxu0
      %947 = vdwg.mxu0
      %v948 = vmax.f32 %v942, 0.0
      %v949 = vmax.f32 %v944, 0.0
      %950 = vst [vmem:[%s359 + $0x10] sm:$0xff] %v948
      %951 = vst [vmem:[%s359 + $0x18] sm:$0xff] %v949
      %s952 = scalar_lea.vmem %s1, 16
      %v953 = vld [vmem:[%s952] ss:$8 sm:$0x3]
      %956 = vrot.lane.b32.xlu0 %v536, 34
      %v957 = vpop.permute.xlu0 %956
      %958 = vrot.lane.b32.xlu0 %v538, 34
      %v959 = vpop.permute.xlu0 %958
      %964 = vrot.lane.b32.xlu0 %v535, 34
      %v965 = vpop.permute.xlu0 %964
      %966 = vrot.lane.b32.xlu0 %v537, 34
      %v967 = vpop.permute.xlu0 %966
      %vm968 = vcmask 277504
      %v969 = vsel %vm968, %v965, %v957
      %v970 = vsel %vm968, %v967, %v959
      %v975 = vsel %vm968, %v957, %v965
      %v976 = vsel %vm968, %v959, %v967
      %v978 = vlaneseq
      %v979 = vshrl.u32 %v978, 7
      %v980 = vsub.s32 0, %v979
      %v981 = vrot.slane %v953, %v980
      %v982 = vlaneseq
      %v983 = vshrl.u32 %v982, 7
      %v984 = vsub.s32 1, %v983
      %v985 = vrot.slane %v953, %v984
      %v988 = vmul.f32 %v975, %v981
      %v989 = vmul.f32 %v969, %v985
      %v990 = vmul.f32 %v976, %v981
      %v991 = vmul.f32 %v970, %v985
      %v992 = vpack.c.bf16 %v990, %v988
      %v993 = vpack.c.bf16 %v991, %v989
      %994 = vst [vmem:[#allocation2] sm:$0xff] %v992
      %995 = vst [vmem:[#allocation2 + $0x8] sm:$0xff] %v993
      %s996 = scalar_lea.vmem %s1, 17
      %v997 = vld [vmem:[%s996] ss:$8 sm:$0x3]
      %998 = vrot.lane.b32.xlu0 %v536, 33
      %v999 = vpop.permute.xlu0 %998
      %1000 = vrot.lane.b32.xlu0 %v538, 33
      %v1001 = vpop.permute.xlu0 %1000
      %1004 = vrot.lane.b32.xlu0 %v535, 33
      %v1005 = vpop.permute.xlu0 %1004
      %1006 = vrot.lane.b32.xlu0 %v537, 33
      %v1007 = vpop.permute.xlu0 %1006
      %vm1008 = vcmask 269312
      %v1009 = vsel %vm1008, %v1005, %v999
      %v1010 = vsel %vm1008, %v1007, %v1001
      %v1015 = vsel %vm1008, %v999, %v1005
      %v1016 = vsel %vm1008, %v1001, %v1007
      %v1018 = vlaneseq
      %v1019 = vshrl.u32 %v1018, 7
      %v1020 = vsub.s32 0, %v1019
      %v1021 = vrot.slane %v997, %v1020
      %v1022 = vlaneseq
      %v1023 = vshrl.u32 %v1022, 7
      %v1024 = vsub.s32 1, %v1023
      %v1025 = vrot.slane %v997, %v1024
      %v1028 = vmul.f32 %v1015, %v1021
      %v1029 = vmul.f32 %v1009, %v1025
      %v1030 = vmul.f32 %v1016, %v1021
      %v1031 = vmul.f32 %v1010, %v1025
      %v1032 = vpack.c.bf16 %v1030, %v1028
      %v1033 = vpack.c.bf16 %v1031, %v1029
      %1034 = vst [vmem:[#allocation2 + $0x10] sm:$0xff] %v1032
      %1035 = vst [vmem:[#allocation2 + $0x18] sm:$0xff] %v1033
      %s1036 = scalar_lea.vmem %s1, 18
      %v1037 = vld [vmem:[%s1036] ss:$8 sm:$0x3]
      %1038 = vrot.lane.b32.xlu0 %v536, 32
      %v1039 = vpop.permute.xlu0 %1038
      %1040 = vrot.lane.b32.xlu0 %v538, 32
      %v1041 = vpop.permute.xlu0 %1040
      %1044 = vrot.lane.b32.xlu0 %v535, 32
      %v1045 = vpop.permute.xlu0 %1044
      %1046 = vrot.lane.b32.xlu0 %v537, 32
      %v1047 = vpop.permute.xlu0 %1046
      %vm1048 = vcmask 261120
      %v1049 = vsel %vm1048, %v1045, %v1039
      %v1050 = vsel %vm1048, %v1047, %v1041
      %v1055 = vsel %vm1048, %v1039, %v1045
      %v1056 = vsel %vm1048, %v1041, %v1047
      %v1058 = vlaneseq
      %v1059 = vshrl.u32 %v1058, 7
      %v1060 = vsub.s32 0, %v1059
      %v1061 = vrot.slane %v1037, %v1060
      %v1062 = vlaneseq
      %v1063 = vshrl.u32 %v1062, 7
      %v1064 = vsub.s32 1, %v1063
      %v1065 = vrot.slane %v1037, %v1064
      %v1068 = vmul.f32 %v1055, %v1061
      %v1069 = vmul.f32 %v1049, %v1065
      %v1070 = vmul.f32 %v1056, %v1061
      %v1071 = vmul.f32 %v1050, %v1065
      %v1072 = vpack.c.bf16 %v1070, %v1068
      %v1073 = vpack.c.bf16 %v1071, %v1069
      %1074 = vst [vmem:[#allocation2 + $0x20] sm:$0xff] %v1072
      %1075 = vst [vmem:[#allocation2 + $0x28] sm:$0xff] %v1073
      %s1076 = scalar_lea.vmem %s1, 19
      %v1077 = vld [vmem:[%s1076] ss:$8 sm:$0x3]
      %1078 = vrot.lane.b32.xlu0 %v536, 31
      %v1079 = vpop.permute.xlu0 %1078
      %1080 = vrot.lane.b32.xlu0 %v538, 31
      %v1081 = vpop.permute.xlu0 %1080
      %1084 = vrot.lane.b32.xlu0 %v535, 31
      %v1085 = vpop.permute.xlu0 %1084
      %1086 = vrot.lane.b32.xlu0 %v537, 31
      %v1087 = vpop.permute.xlu0 %1086
      %vm1088 = vcmask 252928
      %v1089 = vsel %vm1088, %v1085, %v1079
      %v1090 = vsel %vm1088, %v1087, %v1081
      %v1095 = vsel %vm1088, %v1079, %v1085
      %v1096 = vsel %vm1088, %v1081, %v1087
      %v1098 = vlaneseq
      %v1099 = vshrl.u32 %v1098, 7
      %v1100 = vsub.s32 0, %v1099
      %v1101 = vrot.slane %v1077, %v1100
      %v1102 = vlaneseq
      %v1103 = vshrl.u32 %v1102, 7
      %v1104 = vsub.s32 1, %v1103
      %v1105 = vrot.slane %v1077, %v1104
      %v1108 = vmul.f32 %v1095, %v1101
      %v1109 = vmul.f32 %v1089, %v1105
      %v1110 = vmul.f32 %v1096, %v1101
      %v1111 = vmul.f32 %v1090, %v1105
      %v1112 = vpack.c.bf16 %v1110, %v1108
      %v1113 = vpack.c.bf16 %v1111, %v1109
      %1114 = vst [vmem:[#allocation2 + $0x30] sm:$0xff] %v1112
      %1115 = vst [vmem:[#allocation2 + $0x38] sm:$0xff] %v1113
      %s1116 = scalar_lea.vmem %s1, 20
      %v1117 = vld [vmem:[%s1116] ss:$8 sm:$0x3]
      %1118 = vrot.lane.b32.xlu0 %v536, 30
      %v1119 = vpop.permute.xlu0 %1118
      %1120 = vrot.lane.b32.xlu0 %v538, 30
      %v1121 = vpop.permute.xlu0 %1120
      %1124 = vrot.lane.b32.xlu0 %v535, 30
      %v1125 = vpop.permute.xlu0 %1124
      %1126 = vrot.lane.b32.xlu0 %v537, 30
      %v1127 = vpop.permute.xlu0 %1126
      %vm1128 = vcmask 244736
      %v1129 = vsel %vm1128, %v1125, %v1119
      %v1130 = vsel %vm1128, %v1127, %v1121
      %v1135 = vsel %vm1128, %v1119, %v1125
      %v1136 = vsel %vm1128, %v1121, %v1127
      %v1138 = vlaneseq
      %v1139 = vshrl.u32 %v1138, 7
      %v1140 = vsub.s32 0, %v1139
      %v1141 = vrot.slane %v1117, %v1140
      %v1142 = vlaneseq
      %v1143 = vshrl.u32 %v1142, 7
      %v1144 = vsub.s32 1, %v1143
      %v1145 = vrot.slane %v1117, %v1144
      %v1148 = vmul.f32 %v1135, %v1141
      %v1149 = vmul.f32 %v1129, %v1145
      %v1150 = vmul.f32 %v1136, %v1141
      %v1151 = vmul.f32 %v1130, %v1145
      %v1152 = vpack.c.bf16 %v1150, %v1148
      %v1153 = vpack.c.bf16 %v1151, %v1149
      %1154 = vst [vmem:[#allocation2 + $0x40] sm:$0xff] %v1152
      %1155 = vst [vmem:[#allocation2 + $0x48] sm:$0xff] %v1153
      %s1156 = scalar_lea.vmem %s1, 23
      %v1157 = vld [vmem:[%s1156] ss:$8 sm:$0x3]
      %1158 = vrot.lane.b32.xlu0 %v536, 18
      %v1159 = vpop.permute.xlu0 %1158
      %1160 = vrot.lane.b32.xlu0 %v538, 18
      %v1161 = vpop.permute.xlu0 %1160
      %1164 = vrot.lane.b32.xlu0 %v535, 18
      %v1165 = vpop.permute.xlu0 %1164
      %1166 = vrot.lane.b32.xlu0 %v537, 18
      %v1167 = vpop.permute.xlu0 %1166
      %vm1168 = vcmask 146432
      %v1169 = vsel %vm1168, %v1165, %v1159
      %v1170 = vsel %vm1168, %v1167, %v1161
      %v1175 = vsel %vm1168, %v1159, %v1165
      %v1176 = vsel %vm1168, %v1161, %v1167
      %v1178 = vlaneseq
      %v1179 = vshrl.u32 %v1178, 7
      %v1180 = vsub.s32 0, %v1179
      %v1181 = vrot.slane %v1157, %v1180
      %v1182 = vlaneseq
      %v1183 = vshrl.u32 %v1182, 7
      %v1184 = vsub.s32 1, %v1183
      %v1185 = vrot.slane %v1157, %v1184
      %v1188 = vmul.f32 %v1175, %v1181
      %v1189 = vmul.f32 %v1169, %v1185
      %v1190 = vmul.f32 %v1176, %v1181
      %v1191 = vmul.f32 %v1170, %v1185
      %v1192 = vpack.c.bf16 %v1190, %v1188
      %v1193 = vpack.c.bf16 %v1191, %v1189
      %1194 = vst [vmem:[#allocation2 + $0x50] sm:$0xff] %v1192
      %1195 = vst [vmem:[#allocation2 + $0x58] sm:$0xff] %v1193
      %v1196 = vld [vmem:[%s545] ss:$8 sm:$0x3]
      %1197 = vrot.lane.b32.xlu0 %v536, 17
      %v1198 = vpop.permute.xlu0 %1197
      %1199 = vrot.lane.b32.xlu0 %v538, 17
      %v1200 = vpop.permute.xlu0 %1199
      %1203 = vrot.lane.b32.xlu0 %v535, 17
      %v1204 = vpop.permute.xlu0 %1203
      %1205 = vrot.lane.b32.xlu0 %v537, 17
      %v1206 = vpop.permute.xlu0 %1205
      %v1207 = vsel %vm561, %v1204, %v1198
      %v1208 = vsel %vm561, %v1206, %v1200
      %v1213 = vsel %vm561, %v1198, %v1204
      %v1214 = vsel %vm561, %v1200, %v1206
      %v1216 = vlaneseq
      %v1217 = vshrl.u32 %v1216, 7
      %v1218 = vsub.s32 0, %v1217
      %v1219 = vrot.slane %v1196, %v1218
      %v1220 = vlaneseq
      %v1221 = vshrl.u32 %v1220, 7
      %v1222 = vsub.s32 1, %v1221
      %v1223 = vrot.slane %v1196, %v1222
      %v1226 = vmul.f32 %v1213, %v1219
      %v1227 = vmul.f32 %v1207, %v1223
      %v1228 = vmul.f32 %v1214, %v1219
      %v1229 = vmul.f32 %v1208, %v1223
      %v1230 = vpack.c.bf16 %v1228, %v1226
      %v1231 = vpack.c.bf16 %v1229, %v1227
      %1232 = vst [vmem:[#allocation2 + $0x60] sm:$0xff] %v1230
      %1233 = vst [vmem:[#allocation2 + $0x68] sm:$0xff] %v1231
      %v1234 = vld [vmem:[%s589] ss:$8 sm:$0x3]
      %1235 = vrot.lane.b32.xlu0 %v536, 16
      %v1236 = vpop.permute.xlu0 %1235
      %1237 = vrot.lane.b32.xlu0 %v538, 16
      %v1238 = vpop.permute.xlu0 %1237
      %1241 = vrot.lane.b32.xlu0 %v535, 16
      %v1242 = vpop.permute.xlu0 %1241
      %1243 = vrot.lane.b32.xlu0 %v537, 16
      %v1244 = vpop.permute.xlu0 %1243
      %v1245 = vsel %vm601, %v1242, %v1236
      %v1246 = vsel %vm601, %v1244, %v1238
      %v1251 = vsel %vm601, %v1236, %v1242
      %v1252 = vsel %vm601, %v1238, %v1244
      %v1254 = vlaneseq
      %v1255 = vshrl.u32 %v1254, 7
      %v1256 = vsub.s32 0, %v1255
      %v1257 = vrot.slane %v1234, %v1256
      %v1258 = vlaneseq
      %v1259 = vshrl.u32 %v1258, 7
      %v1260 = vsub.s32 1, %v1259
      %v1261 = vrot.slane %v1234, %v1260
      %v1264 = vmul.f32 %v1251, %v1257
      %v1265 = vmul.f32 %v1245, %v1261
      %v1266 = vmul.f32 %v1252, %v1257
      %v1267 = vmul.f32 %v1246, %v1261
      %v1268 = vpack.c.bf16 %v1266, %v1264
      %v1269 = vpack.c.bf16 %v1267, %v1265
      %1270 = vst [vmem:[#allocation2 + $0x70] sm:$0xff] %v1268
      %1271 = vst [vmem:[#allocation2 + $0x78] sm:$0xff] %v1269
      %v1272 = vld [vmem:[%s629] ss:$8 sm:$0x3]
      %1273 = vrot.lane.b32.xlu0 %v536, 15
      %v1274 = vpop.permute.xlu0 %1273
      %1275 = vrot.lane.b32.xlu0 %v538, 15
      %v1276 = vpop.permute.xlu0 %1275
      %1279 = vrot.lane.b32.xlu0 %v535, 15
      %v1280 = vpop.permute.xlu0 %1279
      %1281 = vrot.lane.b32.xlu0 %v537, 15
      %v1282 = vpop.permute.xlu0 %1281
      %v1283 = vsel %vm641, %v1280, %v1274
      %v1284 = vsel %vm641, %v1282, %v1276
      %v1289 = vsel %vm641, %v1274, %v1280
      %v1290 = vsel %vm641, %v1276, %v1282
      %v1292 = vlaneseq
      %v1293 = vshrl.u32 %v1292, 7
      %v1294 = vsub.s32 0, %v1293
      %v1295 = vrot.slane %v1272, %v1294
      %v1296 = vlaneseq
      %v1297 = vshrl.u32 %v1296, 7
      %v1298 = vsub.s32 1, %v1297
      %v1299 = vrot.slane %v1272, %v1298
      %v1302 = vmul.f32 %v1289, %v1295
      %v1303 = vmul.f32 %v1283, %v1299
      %v1304 = vmul.f32 %v1290, %v1295
      %v1305 = vmul.f32 %v1284, %v1299
      %v1306 = vpack.c.bf16 %v1304, %v1302
      %v1307 = vpack.c.bf16 %v1305, %v1303
      %1308 = vst [vmem:[#allocation2 + $0x80] sm:$0xff] %v1306
      %1309 = vst [vmem:[#allocation2 + $0x88] sm:$0xff] %v1307
      %s1310 = scalar_lea.vmem %s1, 35
      %v1311 = vld [vmem:[%s1310] ss:$8 sm:$0x3]
      %1312 = vrot.lane.b32.xlu0 %v536, 14
      %v1313 = vpop.permute.xlu0 %1312
      %1314 = vrot.lane.b32.xlu0 %v538, 14
      %v1315 = vpop.permute.xlu0 %1314
      %1318 = vrot.lane.b32.xlu0 %v535, 14
      %v1319 = vpop.permute.xlu0 %1318
      %1320 = vrot.lane.b32.xlu0 %v537, 14
      %v1321 = vpop.permute.xlu0 %1320
      %vm1322 = vcmask 113664
      %v1323 = vsel %vm1322, %v1319, %v1313
      %v1324 = vsel %vm1322, %v1321, %v1315
      %v1329 = vsel %vm1322, %v1313, %v1319
      %v1330 = vsel %vm1322, %v1315, %v1321
      %v1332 = vlaneseq
      %v1333 = vshrl.u32 %v1332, 7
      %v1334 = vsub.s32 0, %v1333
      %v1335 = vrot.slane %v1311, %v1334
      %v1336 = vlaneseq
      %v1337 = vshrl.u32 %v1336, 7
      %v1338 = vsub.s32 1, %v1337
      %v1339 = vrot.slane %v1311, %v1338
      %v1342 = vmul.f32 %v1329, %v1335
      %v1343 = vmul.f32 %v1323, %v1339
      %v1344 = vmul.f32 %v1330, %v1335
      %v1345 = vmul.f32 %v1324, %v1339
      %v1346 = vpack.c.bf16 %v1344, %v1342
      %v1347 = vpack.c.bf16 %v1345, %v1343
      %1348 = vst [vmem:[#allocation2 + $0x90] sm:$0xff] %v1346
      %1349 = vst [vmem:[#allocation2 + $0x98] sm:$0xff] %v1347
      %s1350 = scalar_lea.vmem %s1, 38
      %v1351 = vld [vmem:[%s1350] ss:$8 sm:$0x3]
      %1352 = vrot.lane.b32.xlu0 %v536, 2
      %v1353 = vpop.permute.xlu0 %1352
      %1354 = vrot.lane.b32.xlu0 %v538, 2
      %v1355 = vpop.permute.xlu0 %1354
      %1358 = vrot.lane.b32.xlu0 %v535, 2
      %v1359 = vpop.permute.xlu0 %1358
      %1360 = vrot.lane.b32.xlu0 %v537, 2
      %v1361 = vpop.permute.xlu0 %1360
      %vm1362 = vcmask 15360
      %v1363 = vsel %vm1362, %v1359, %v1353
      %v1364 = vsel %vm1362, %v1361, %v1355
      %v1369 = vsel %vm1362, %v1353, %v1359
      %v1370 = vsel %vm1362, %v1355, %v1361
      %v1372 = vlaneseq
      %v1373 = vshrl.u32 %v1372, 7
      %v1374 = vsub.s32 0, %v1373
      %v1375 = vrot.slane %v1351, %v1374
      %v1376 = vlaneseq
      %v1377 = vshrl.u32 %v1376, 7
      %v1378 = vsub.s32 1, %v1377
      %v1379 = vrot.slane %v1351, %v1378
      %v1382 = vmul.f32 %v1369, %v1375
      %v1383 = vmul.f32 %v1363, %v1379
      %v1384 = vmul.f32 %v1370, %v1375
      %v1385 = vmul.f32 %v1364, %v1379
      %v1386 = vpack.c.bf16 %v1384, %v1382
      %v1387 = vpack.c.bf16 %v1385, %v1383
      %1388 = vst [vmem:[#allocation2 + $0xa0] sm:$0xff] %v1386
      %1389 = vst [vmem:[#allocation2 + $0xa8] sm:$0xff] %v1387
      %v1390 = vld [vmem:[%s669] ss:$8 sm:$0x3]
      %1391 = vrot.lane.b32.xlu0 %v536, 1
      %v1392 = vpop.permute.xlu0 %1391
      %1393 = vrot.lane.b32.xlu0 %v538, 1
      %v1394 = vpop.permute.xlu0 %1393
      %1397 = vrot.lane.b32.xlu0 %v535, 1
      %v1398 = vpop.permute.xlu0 %1397
      %1399 = vrot.lane.b32.xlu0 %v537, 1
      %v1400 = vpop.permute.xlu0 %1399
      %v1401 = vsel %vm681, %v1398, %v1392
      %v1402 = vsel %vm681, %v1400, %v1394
      %v1407 = vsel %vm681, %v1392, %v1398
      %v1408 = vsel %vm681, %v1394, %v1400
      %v1410 = vlaneseq
      %v1411 = vshrl.u32 %v1410, 7
      %v1412 = vsub.s32 0, %v1411
      %v1413 = vrot.slane %v1390, %v1412
      %v1414 = vlaneseq
      %v1415 = vshrl.u32 %v1414, 7
      %v1416 = vsub.s32 1, %v1415
      %v1417 = vrot.slane %v1390, %v1416
      %v1420 = vmul.f32 %v1407, %v1413
      %v1421 = vmul.f32 %v1401, %v1417
      %v1422 = vmul.f32 %v1408, %v1413
      %v1423 = vmul.f32 %v1402, %v1417
      %v1424 = vpack.c.bf16 %v1422, %v1420
      %v1425 = vpack.c.bf16 %v1423, %v1421
      %1426 = vst [vmem:[#allocation2 + $0xb0] sm:$0xff] %v1424
      %1427 = vst [vmem:[#allocation2 + $0xb8] sm:$0xff] %v1425
      %v1428 = vpack.c.bf16 %v537, %v535
      %v1429 = vpack.c.bf16 %v538, %v536
      %1430 = vst [vmem:[#allocation2 + $0xc0] sm:$0xff] %v1428
      %1431 = vst [vmem:[#allocation2 + $0xc8] sm:$0xff] %v1429
      %v1432 = vld [vmem:[%s713] ss:$8 sm:$0x3]
      %1433 = vrot.lane.b32.xlu0 %v535, 127
      %v1434 = vpop.permute.xlu0 %1433
      %1435 = vrot.lane.b32.xlu0 %v536, 127
      %v1436 = vpop.permute.xlu0 %1435
      %1437 = vrot.lane.b32.xlu0 %v537, 127
      %v1438 = vpop.permute.xlu0 %1437
      %1439 = vrot.lane.b32.xlu0 %v538, 127
      %v1440 = vpop.permute.xlu0 %1439
      %v1441 = vsel %vm723, %v1434, %v1436
      %v1442 = vsel %vm723, %v1438, %v1440
      %v1449 = vsel %vm723, %v1436, %v1434
      %v1450 = vsel %vm723, %v1440, %v1438
      %v1452 = vlaneseq
      %v1453 = vshrl.u32 %v1452, 7
      %v1454 = vsub.s32 0, %v1453
      %v1455 = vrot.slane %v1432, %v1454
      %v1456 = vlaneseq
      %v1457 = vshrl.u32 %v1456, 7
      %v1458 = vsub.s32 1, %v1457
      %v1459 = vrot.slane %v1432, %v1458
      %v1462 = vmul.f32 %v1441, %v1455
      %v1463 = vmul.f32 %v1449, %v1459
      %v1464 = vmul.f32 %v1442, %v1455
      %v1465 = vmul.f32 %v1450, %v1459
      %v1466 = vpack.c.bf16 %v1464, %v1462
      %v1467 = vpack.c.bf16 %v1465, %v1463
      %1468 = vst [vmem:[#allocation2 + $0xd0] sm:$0xff] %v1466
      %1469 = vst [vmem:[#allocation2 + $0xd8] sm:$0xff] %v1467
      %s1470 = scalar_lea.vmem %s1, 50
      %v1471 = vld [vmem:[%s1470] ss:$8 sm:$0x3]
      %1472 = vrot.lane.b32.xlu0 %v535, 126
      %v1473 = vpop.permute.xlu0 %1472
      %1474 = vrot.lane.b32.xlu0 %v536, 126
      %v1475 = vpop.permute.xlu0 %1474
      %1476 = vrot.lane.b32.xlu0 %v537, 126
      %v1477 = vpop.permute.xlu0 %1476
      %1478 = vrot.lane.b32.xlu0 %v538, 126
      %v1479 = vpop.permute.xlu0 %1478
      %vm1480 = vcmask 1031168
      %v1481 = vsel %vm1480, %v1473, %v1475
      %v1482 = vsel %vm1480, %v1477, %v1479
      %v1489 = vsel %vm1480, %v1475, %v1473
      %v1490 = vsel %vm1480, %v1479, %v1477
      %v1492 = vlaneseq
      %v1493 = vshrl.u32 %v1492, 7
      %v1494 = vsub.s32 0, %v1493
      %v1495 = vrot.slane %v1471, %v1494
      %v1496 = vlaneseq
      %v1497 = vshrl.u32 %v1496, 7
      %v1498 = vsub.s32 1, %v1497
      %v1499 = vrot.slane %v1471, %v1498
      %v1502 = vmul.f32 %v1481, %v1495
      %v1503 = vmul.f32 %v1489, %v1499
      %v1504 = vmul.f32 %v1482, %v1495
      %v1505 = vmul.f32 %v1490, %v1499
      %v1506 = vpack.c.bf16 %v1504, %v1502
      %v1507 = vpack.c.bf16 %v1505, %v1503
      %1508 = vst [vmem:[#allocation2 + $0xe0] sm:$0xff] %v1506
      %1509 = vst [vmem:[#allocation2 + $0xe8] sm:$0xff] %v1507
      %s1510 = scalar_lea.vmem %s1, 53
      %v1511 = vld [vmem:[%s1510] ss:$8 sm:$0x3]
      %1512 = vrot.lane.b32.xlu0 %v535, 114
      %v1513 = vpop.permute.xlu0 %1512
      %1514 = vrot.lane.b32.xlu0 %v536, 114
      %v1515 = vpop.permute.xlu0 %1514
      %1516 = vrot.lane.b32.xlu0 %v537, 114
      %v1517 = vpop.permute.xlu0 %1516
      %1518 = vrot.lane.b32.xlu0 %v538, 114
      %v1519 = vpop.permute.xlu0 %1518
      %vm1520 = vcmask 932864
      %v1521 = vsel %vm1520, %v1513, %v1515
      %v1522 = vsel %vm1520, %v1517, %v1519
      %v1529 = vsel %vm1520, %v1515, %v1513
      %v1530 = vsel %vm1520, %v1519, %v1517
      %v1532 = vlaneseq
      %v1533 = vshrl.u32 %v1532, 7
      %v1534 = vsub.s32 0, %v1533
      %v1535 = vrot.slane %v1511, %v1534
      %v1536 = vlaneseq
      %v1537 = vshrl.u32 %v1536, 7
      %v1538 = vsub.s32 1, %v1537
      %v1539 = vrot.slane %v1511, %v1538
      %v1542 = vmul.f32 %v1521, %v1535
      %v1543 = vmul.f32 %v1529, %v1539
      %v1544 = vmul.f32 %v1522, %v1535
      %v1545 = vmul.f32 %v1530, %v1539
      %v1546 = vpack.c.bf16 %v1544, %v1542
      %v1547 = vpack.c.bf16 %v1545, %v1543
      %1548 = vst [vmem:[#allocation2 + $0xf0] sm:$0xff] %v1546
      %1549 = vst [vmem:[#allocation2 + $0xf8] sm:$0xff] %v1547
      %v1550 = vld [vmem:[%s753] ss:$8 sm:$0x3]
      %1551 = vrot.lane.b32.xlu0 %v535, 113
      %v1552 = vpop.permute.xlu0 %1551
      %1553 = vrot.lane.b32.xlu0 %v536, 113
      %v1554 = vpop.permute.xlu0 %1553
      %1555 = vrot.lane.b32.xlu0 %v537, 113
      %v1556 = vpop.permute.xlu0 %1555
      %1557 = vrot.lane.b32.xlu0 %v538, 113
      %v1558 = vpop.permute.xlu0 %1557
      %v1559 = vsel %vm763, %v1552, %v1554
      %v1560 = vsel %vm763, %v1556, %v1558
      %v1567 = vsel %vm763, %v1554, %v1552
      %v1568 = vsel %vm763, %v1558, %v1556
      %v1570 = vlaneseq
      %v1571 = vshrl.u32 %v1570, 7
      %v1572 = vsub.s32 0, %v1571
      %v1573 = vrot.slane %v1550, %v1572
      %v1574 = vlaneseq
      %v1575 = vshrl.u32 %v1574, 7
      %v1576 = vsub.s32 1, %v1575
      %v1577 = vrot.slane %v1550, %v1576
      %v1580 = vmul.f32 %v1559, %v1573
      %v1581 = vmul.f32 %v1567, %v1577
      %v1582 = vmul.f32 %v1560, %v1573
      %v1583 = vmul.f32 %v1568, %v1577
      %v1584 = vpack.c.bf16 %v1582, %v1580
      %v1585 = vpack.c.bf16 %v1583, %v1581
      %1586 = vst [vmem:[#allocation2 + $0x100] sm:$0xff] %v1584
      %1587 = vst [vmem:[#allocation2 + $0x108] sm:$0xff] %v1585
      %v1588 = vld [vmem:[%s793] ss:$8 sm:$0x3]
      %1589 = vrot.lane.b32.xlu0 %v535, 112
      %v1590 = vpop.permute.xlu0 %1589
      %1591 = vrot.lane.b32.xlu0 %v536, 112
      %v1592 = vpop.permute.xlu0 %1591
      %1593 = vrot.lane.b32.xlu0 %v537, 112
      %v1594 = vpop.permute.xlu0 %1593
      %1595 = vrot.lane.b32.xlu0 %v538, 112
      %v1596 = vpop.permute.xlu0 %1595
      %v1597 = vsel %vm803, %v1590, %v1592
      %v1598 = vsel %vm803, %v1594, %v1596
      %v1605 = vsel %vm803, %v1592, %v1590
      %v1606 = vsel %vm803, %v1596, %v1594
      %v1608 = vlaneseq
      %v1609 = vshrl.u32 %v1608, 7
      %v1610 = vsub.s32 0, %v1609
      %v1611 = vrot.slane %v1588, %v1610
      %v1612 = vlaneseq
      %v1613 = vshrl.u32 %v1612, 7
      %v1614 = vsub.s32 1, %v1613
      %v1615 = vrot.slane %v1588, %v1614
      %v1618 = vmul.f32 %v1597, %v1611
      %v1619 = vmul.f32 %v1605, %v1615
      %v1620 = vmul.f32 %v1598, %v1611
      %v1621 = vmul.f32 %v1606, %v1615
      %v1622 = vpack.c.bf16 %v1620, %v1618
      %v1623 = vpack.c.bf16 %v1621, %v1619
      %1624 = vst [vmem:[#allocation2 + $0x110] sm:$0xff] %v1622
      %1625 = vst [vmem:[#allocation2 + $0x118] sm:$0xff] %v1623
      %v1626 = vld [vmem:[%s833] ss:$8 sm:$0x3]
      %1627 = vrot.lane.b32.xlu0 %v535, 111
      %v1628 = vpop.permute.xlu0 %1627
      %1629 = vrot.lane.b32.xlu0 %v536, 111
      %v1630 = vpop.permute.xlu0 %1629
      %1631 = vrot.lane.b32.xlu0 %v537, 111
      %v1632 = vpop.permute.xlu0 %1631
      %1633 = vrot.lane.b32.xlu0 %v538, 111
      %v1634 = vpop.permute.xlu0 %1633
      %v1635 = vsel %vm843, %v1628, %v1630
      %v1636 = vsel %vm843, %v1632, %v1634
      %v1643 = vsel %vm843, %v1630, %v1628
      %v1644 = vsel %vm843, %v1634, %v1632
      %v1646 = vlaneseq
      %v1647 = vshrl.u32 %v1646, 7
      %v1648 = vsub.s32 0, %v1647
      %v1649 = vrot.slane %v1626, %v1648
      %v1650 = vlaneseq
      %v1651 = vshrl.u32 %v1650, 7
      %v1652 = vsub.s32 1, %v1651
      %v1653 = vrot.slane %v1626, %v1652
      %v1656 = vmul.f32 %v1635, %v1649
      %v1657 = vmul.f32 %v1643, %v1653
      %v1658 = vmul.f32 %v1636, %v1649
      %v1659 = vmul.f32 %v1644, %v1653
      %v1660 = vpack.c.bf16 %v1658, %v1656
      %v1661 = vpack.c.bf16 %v1659, %v1657
      %1662 = vst [vmem:[#allocation2 + $0x120] sm:$0xff] %v1660
      %1663 = vst [vmem:[#allocation2 + $0x128] sm:$0xff] %v1661
      %s1664 = scalar_lea.vmem %s1, 65
      %v1665 = vld [vmem:[%s1664] ss:$8 sm:$0x3]
      %1666 = vrot.lane.b32.xlu0 %v535, 110
      %v1667 = vpop.permute.xlu0 %1666
      %1668 = vrot.lane.b32.xlu0 %v536, 110
      %v1669 = vpop.permute.xlu0 %1668
      %1670 = vrot.lane.b32.xlu0 %v537, 110
      %v1671 = vpop.permute.xlu0 %1670
      %1672 = vrot.lane.b32.xlu0 %v538, 110
      %v1673 = vpop.permute.xlu0 %1672
      %vm1674 = vcmask 900096
      %v1675 = vsel %vm1674, %v1667, %v1669
      %v1676 = vsel %vm1674, %v1671, %v1673
      %v1683 = vsel %vm1674, %v1669, %v1667
      %v1684 = vsel %vm1674, %v1673, %v1671
      %v1686 = vlaneseq
      %v1687 = vshrl.u32 %v1686, 7
      %v1688 = vsub.s32 0, %v1687
      %v1689 = vrot.slane %v1665, %v1688
      %v1690 = vlaneseq
      %v1691 = vshrl.u32 %v1690, 7
      %v1692 = vsub.s32 1, %v1691
      %v1693 = vrot.slane %v1665, %v1692
      %v1696 = vmul.f32 %v1675, %v1689
      %v1697 = vmul.f32 %v1683, %v1693
      %v1698 = vmul.f32 %v1676, %v1689
      %v1699 = vmul.f32 %v1684, %v1693
      %v1700 = vpack.c.bf16 %v1698, %v1696
      %v1701 = vpack.c.bf16 %v1699, %v1697
      %1702 = vst [vmem:[#allocation2 + $0x130] sm:$0xff] %v1700
      %1703 = vst [vmem:[#allocation2 + $0x138] sm:$0xff] %v1701
      %s1704 = scalar_lea.vmem %s1, 68
      %v1705 = vld [vmem:[%s1704] ss:$8 sm:$0x3]
      %1706 = vrot.lane.b32.xlu0 %v535, 98
      %v1707 = vpop.permute.xlu0 %1706
      %1708 = vrot.lane.b32.xlu0 %v536, 98
      %v1709 = vpop.permute.xlu0 %1708
      %1710 = vrot.lane.b32.xlu0 %v537, 98
      %v1711 = vpop.permute.xlu0 %1710
      %1712 = vrot.lane.b32.xlu0 %v538, 98
      %v1713 = vpop.permute.xlu0 %1712
      %vm1714 = vcmask 801792
      %v1715 = vsel %vm1714, %v1707, %v1709
      %v1716 = vsel %vm1714, %v1711, %v1713
      %v1723 = vsel %vm1714, %v1709, %v1707
      %v1724 = vsel %vm1714, %v1713, %v1711
      %v1726 = vlaneseq
      %v1727 = vshrl.u32 %v1726, 7
      %v1728 = vsub.s32 0, %v1727
      %v1729 = vrot.slane %v1705, %v1728
      %v1730 = vlaneseq
      %v1731 = vshrl.u32 %v1730, 7
      %v1732 = vsub.s32 1, %v1731
      %v1733 = vrot.slane %v1705, %v1732
      %v1736 = vmul.f32 %v1715, %v1729
      %v1737 = vmul.f32 %v1723, %v1733
      %v1738 = vmul.f32 %v1716, %v1729
      %v1739 = vmul.f32 %v1724, %v1733
      %v1740 = vpack.c.bf16 %v1738, %v1736
      %v1741 = vpack.c.bf16 %v1739, %v1737
      %1742 = vst [vmem:[#allocation2 + $0x140] sm:$0xff] %v1740
      %1743 = vst [vmem:[#allocation2 + $0x148] sm:$0xff] %v1741
      %s1744 = scalar_lea.vmem %s1, 69
      %v1745 = vld [vmem:[%s1744] ss:$8 sm:$0x3]
      %1746 = vrot.lane.b32.xlu0 %v535, 97
      %v1747 = vpop.permute.xlu0 %1746
      %1748 = vrot.lane.b32.xlu0 %v536, 97
      %v1749 = vpop.permute.xlu0 %1748
      %1750 = vrot.lane.b32.xlu0 %v537, 97
      %v1751 = vpop.permute.xlu0 %1750
      %1752 = vrot.lane.b32.xlu0 %v538, 97
      %v1753 = vpop.permute.xlu0 %1752
      %vm1754 = vcmask 793600
      %v1755 = vsel %vm1754, %v1747, %v1749
      %v1756 = vsel %vm1754, %v1751, %v1753
      %v1763 = vsel %vm1754, %v1749, %v1747
      %v1764 = vsel %vm1754, %v1753, %v1751
      %v1766 = vlaneseq
      %v1767 = vshrl.u32 %v1766, 7
      %v1768 = vsub.s32 0, %v1767
      %v1769 = vrot.slane %v1745, %v1768
      %v1770 = vlaneseq
      %v1771 = vshrl.u32 %v1770, 7
      %v1772 = vsub.s32 1, %v1771
      %v1773 = vrot.slane %v1745, %v1772
      %v1776 = vmul.f32 %v1755, %v1769
      %v1777 = vmul.f32 %v1763, %v1773
      %v1778 = vmul.f32 %v1756, %v1769
      %v1779 = vmul.f32 %v1764, %v1773
      %v1780 = vpack.c.bf16 %v1778, %v1776
      %v1781 = vpack.c.bf16 %v1779, %v1777
      %1782 = vst [vmem:[#allocation2 + $0x150] sm:$0xff] %v1780
      %1783 = vst [vmem:[#allocation2 + $0x158] sm:$0xff] %v1781
      %s1784 = scalar_lea.vmem %s1, 70
      %v1785 = vld [vmem:[%s1784] ss:$8 sm:$0x3]
      %1786 = vrot.lane.b32.xlu0 %v535, 96
      %v1787 = vpop.permute.xlu0 %1786
      %1788 = vrot.lane.b32.xlu0 %v536, 96
      %v1789 = vpop.permute.xlu0 %1788
      %1790 = vrot.lane.b32.xlu0 %v537, 96
      %v1791 = vpop.permute.xlu0 %1790
      %1792 = vrot.lane.b32.xlu0 %v538, 96
      %v1793 = vpop.permute.xlu0 %1792
      %vm1794 = vcmask 785408
      %v1795 = vsel %vm1794, %v1787, %v1789
      %v1796 = vsel %vm1794, %v1791, %v1793
      %v1803 = vsel %vm1794, %v1789, %v1787
      %v1804 = vsel %vm1794, %v1793, %v1791
      %v1806 = vlaneseq
      %v1807 = vshrl.u32 %v1806, 7
      %v1808 = vsub.s32 0, %v1807
      %v1809 = vrot.slane %v1785, %v1808
      %v1810 = vlaneseq
      %v1811 = vshrl.u32 %v1810, 7
      %v1812 = vsub.s32 1, %v1811
      %v1813 = vrot.slane %v1785, %v1812
      %v1816 = vmul.f32 %v1795, %v1809
      %v1817 = vmul.f32 %v1803, %v1813
      %v1818 = vmul.f32 %v1796, %v1809
      %v1819 = vmul.f32 %v1804, %v1813
      %v1820 = vpack.c.bf16 %v1818, %v1816
      %v1821 = vpack.c.bf16 %v1819, %v1817
      %1822 = vst [vmem:[#allocation2 + $0x160] sm:$0xff] %v1820
      %1823 = vst [vmem:[#allocation2 + $0x168] sm:$0xff] %v1821
      %s1824 = scalar_lea.vmem %s1, 71
      %v1825 = vld [vmem:[%s1824] ss:$8 sm:$0x3]
      %1826 = vrot.lane.b32.xlu0 %v535, 95
      %v1827 = vpop.permute.xlu0 %1826
      %1828 = vrot.lane.b32.xlu0 %v536, 95
      %v1829 = vpop.permute.xlu0 %1828
      %1830 = vrot.lane.b32.xlu0 %v537, 95
      %v1831 = vpop.permute.xlu0 %1830
      %1832 = vrot.lane.b32.xlu0 %v538, 95
      %v1833 = vpop.permute.xlu0 %1832
      %vm1834 = vcmask 777216
      %v1835 = vsel %vm1834, %v1827, %v1829
      %v1836 = vsel %vm1834, %v1831, %v1833
      %v1843 = vsel %vm1834, %v1829, %v1827
      %v1844 = vsel %vm1834, %v1833, %v1831
      %v1846 = vlaneseq
      %v1847 = vshrl.u32 %v1846, 7
      %v1848 = vsub.s32 0, %v1847
      %v1849 = vrot.slane %v1825, %v1848
      %v1850 = vlaneseq
      %v1851 = vshrl.u32 %v1850, 7
      %v1852 = vsub.s32 1, %v1851
      %v1853 = vrot.slane %v1825, %v1852
      %v1856 = vmul.f32 %v1835, %v1849
      %v1857 = vmul.f32 %v1843, %v1853
      %v1858 = vmul.f32 %v1836, %v1849
      %v1859 = vmul.f32 %v1844, %v1853
      %v1860 = vpack.c.bf16 %v1858, %v1856
      %v1861 = vpack.c.bf16 %v1859, %v1857
      %1862 = vst [vmem:[#allocation2 + $0x170] sm:$0xff] %v1860
      %1863 = vst [vmem:[#allocation2 + $0x178] sm:$0xff] %v1861
      %s1864 = scalar_lea.vmem %s1, 80
      %v1865 = vld [vmem:[%s1864] ss:$8 sm:$0x3]
      %1866 = vrot.lane.b32.xlu0 %v535, 94
      %v1867 = vpop.permute.xlu0 %1866
      %1868 = vrot.lane.b32.xlu0 %v536, 94
      %v1869 = vpop.permute.xlu0 %1868
      %1870 = vrot.lane.b32.xlu0 %v537, 94
      %v1871 = vpop.permute.xlu0 %1870
      %1872 = vrot.lane.b32.xlu0 %v538, 94
      %v1873 = vpop.permute.xlu0 %1872
      %vm1874 = vcmask 769024
      %v1875 = vsel %vm1874, %v1867, %v1869
      %v1876 = vsel %vm1874, %v1871, %v1873
      %v1883 = vsel %vm1874, %v1869, %v1867
      %v1884 = vsel %vm1874, %v1873, %v1871
      %v1886 = vlaneseq
      %v1887 = vshrl.u32 %v1886, 7
      %v1888 = vsub.s32 0, %v1887
      %v1889 = vrot.slane %v1865, %v1888
      %v1890 = vlaneseq
      %v1891 = vshrl.u32 %v1890, 7
      %v1892 = vsub.s32 1, %v1891
      %v1893 = vrot.slane %v1865, %v1892
      %v1896 = vmul.f32 %v1875, %v1889
      %v1897 = vmul.f32 %v1883, %v1893
      %v1898 = vmul.f32 %v1876, %v1889
      %v1899 = vmul.f32 %v1884, %v1893
      %v1900 = vpack.c.bf16 %v1898, %v1896
      %v1901 = vpack.c.bf16 %v1899, %v1897
      %1902 = vst [vmem:[#allocation2 + $0x180] sm:$0xff] %v1900
      %1903 = vst [vmem:[#allocation2 + $0x188] sm:$0xff] %v1901
      %v1904 = vld [vmem:[#allocation2] sm:$0xff]
      %v1905 = vld [vmem:[#allocation2 + $0x8] sm:$0xff]
      %v1906 = vld [vmem:[#allocation2 + $0x10] sm:$0xff]
      %v1907 = vld [vmem:[#allocation2 + $0x18] sm:$0xff]
      %v1908 = vld [vmem:[#allocation2 + $0x20] sm:$0xff]
      %v1909 = vld [vmem:[#allocation2 + $0x28] sm:$0xff]
      %v1910 = vld [vmem:[#allocation2 + $0x30] sm:$0xff]
      %v1911 = vld [vmem:[#allocation2 + $0x38] sm:$0xff]
      %v1912 = vld [vmem:[#allocation2 + $0x40] sm:$0xff]
      %v1913 = vld [vmem:[#allocation2 + $0x48] sm:$0xff]
      %v1914 = vld [vmem:[#allocation2 + $0x50] sm:$0xff]
      %v1915 = vld [vmem:[#allocation2 + $0x58] sm:$0xff]
      %v1916 = vld [vmem:[#allocation2 + $0x60] sm:$0xff]
      %v1917 = vld [vmem:[#allocation2 + $0x68] sm:$0xff]
      %v1918 = vld [vmem:[#allocation2 + $0x70] sm:$0xff]
      %v1919 = vld [vmem:[#allocation2 + $0x78] sm:$0xff]
      %v1920 = vld [vmem:[#allocation2 + $0x80] sm:$0xff]
      %v1921 = vld [vmem:[#allocation2 + $0x88] sm:$0xff]
      %v1922 = vld [vmem:[#allocation2 + $0x90] sm:$0xff]
      %v1923 = vld [vmem:[#allocation2 + $0x98] sm:$0xff]
      %v1924 = vld [vmem:[#allocation2 + $0xa0] sm:$0xff]
      %v1925 = vld [vmem:[#allocation2 + $0xa8] sm:$0xff]
      %v1926 = vld [vmem:[#allocation2 + $0xb0] sm:$0xff]
      %v1927 = vld [vmem:[#allocation2 + $0xb8] sm:$0xff]
      %v1928 = vld [vmem:[#allocation2 + $0xc0] sm:$0xff]
      %v1929 = vld [vmem:[#allocation2 + $0xc8] sm:$0xff]
      %v1930 = vld [vmem:[#allocation2 + $0xd0] sm:$0xff]
      %v1931 = vld [vmem:[#allocation2 + $0xd8] sm:$0xff]
      %v1932 = vld [vmem:[#allocation2 + $0xe0] sm:$0xff]
      %v1933 = vld [vmem:[#allocation2 + $0xe8] sm:$0xff]
      %v1934 = vld [vmem:[#allocation2 + $0xf0] sm:$0xff]
      %v1935 = vld [vmem:[#allocation2 + $0xf8] sm:$0xff]
      %v1936 = vld [vmem:[#allocation2 + $0x100] sm:$0xff]
      %v1937 = vld [vmem:[#allocation2 + $0x108] sm:$0xff]
      %v1938 = vld [vmem:[#allocation2 + $0x110] sm:$0xff]
      %v1939 = vld [vmem:[#allocation2 + $0x118] sm:$0xff]
      %v1940 = vld [vmem:[#allocation2 + $0x120] sm:$0xff]
      %v1941 = vld [vmem:[#allocation2 + $0x128] sm:$0xff]
      %v1942 = vld [vmem:[#allocation2 + $0x130] sm:$0xff]
      %v1943 = vld [vmem:[#allocation2 + $0x138] sm:$0xff]
      %v1944 = vld [vmem:[#allocation2 + $0x140] sm:$0xff]
      %v1945 = vld [vmem:[#allocation2 + $0x148] sm:$0xff]
      %v1946 = vld [vmem:[#allocation2 + $0x150] sm:$0xff]
      %v1947 = vld [vmem:[#allocation2 + $0x158] sm:$0xff]
      %v1948 = vld [vmem:[#allocation2 + $0x160] sm:$0xff]
      %v1949 = vld [vmem:[#allocation2 + $0x168] sm:$0xff]
      %v1950 = vld [vmem:[#allocation2 + $0x170] sm:$0xff]
      %v1951 = vld [vmem:[#allocation2 + $0x178] sm:$0xff]
      %v1952 = vld [vmem:[#allocation2 + $0x180] sm:$0xff]
      %v1953 = vld [vmem:[#allocation2 + $0x188] sm:$0xff]
      %v1954 = vld [vmem:[%s6] sm:$0xff]
      %v1955 = vld [vmem:[%s6 + $0x8] sm:$0xff]
      %v1956 = vld [vmem:[%s7] sm:$0xff]
      %1958 = vset.pattern.permute.xlu0 0
      %1959 = vperm.xlu0 %1958, %v1956
      %v1960 = vpop.permute.xlu0 %1959
      %v1964 = vunpack.c.l.b16 %v1954
      %v1965 = vunpack.c.h.b16 %v1954
      %v1966 = vunpack.c.l.b16 %v1955
      %v1967 = vunpack.c.h.b16 %v1955
      %v1968 = vpack.c.b16 %v1964, %v1964
      %v1969 = vpack.c.b16 %v1965, %v1965
      %v1970 = vpack.c.b16 %v1966, %v1966
      %v1971 = vpack.c.b16 %v1967, %v1967
      %v1976 = vsel %vm601, %v1971, 0
      %1978 = vmatprep.subr.bf16.mxu0 %v1905
      %1979 = vmatpush1.bf16.msra.mxu0 %v1904
      %1980 = vmatprep.subr.bf16.mxu0 %v1907
      %1981 = vmatpush1.bf16.msra.mxu0 %v1906
      %1982 = vmatprep.subr.bf16.mxu0 %v1909
      %1983 = vmatpush1.bf16.msra.mxu0 %v1908
      %1984 = vmatprep.subr.bf16.mxu0 %v1911
      %1985 = vmatpush1.bf16.msra.mxu0 %v1910
      %1986 = vmatprep.subr.bf16.mxu0 %v1913
      %1987 = vmatpush1.bf16.msra.mxu0 %v1912
      %1988 = vmatprep.subr.bf16.mxu0 %v1915
      %1989 = vmatpush1.bf16.msra.mxu0 %v1914
      %1990 = vmatprep.subr.bf16.mxu0 %v1917
      %1991 = vmatpush1.bf16.msra.mxu0 %v1916
      %1992 = vmatprep.subr.bf16.mxu0 %v1919
      %1993 = vmatpush1.bf16.msra.mxu0 %v1918
      %1994 = vmatprep.subr.bf16.mxu0 %v1921
      %1995 = vmatpush1.bf16.msra.mxu0 %v1920
      %1996 = vmatprep.subr.bf16.mxu0 %v1923
      %1997 = vmatpush1.bf16.msra.mxu0 %v1922
      %1998 = vmatprep.subr.bf16.mxu0 %v1925
      %1999 = vmatpush1.bf16.msra.mxu0 %v1924
      %2000 = vmatprep.subr.bf16.mxu0 %v1927
      %2001 = vmatpush1.bf16.msra.mxu0 %v1926
      %2002 = vmatprep.subr.bf16.mxu0 %v1929
      %2003 = vmatpush1.bf16.msra.mxu0 %v1928
      %2004 = vmatprep.subr.bf16.mxu0 %v1931
      %2005 = vmatpush1.bf16.msra.mxu0 %v1930
      %2006 = vmatprep.subr.bf16.mxu0 %v1933
      %2007 = vmatpush1.bf16.msra.mxu0 %v1932
      %2008 = vmatprep.subr.bf16.mxu0 %v1935
      %2009 = vmatpush1.bf16.msra.mxu0 %v1934
      %2010 = vmatprep.mubr.bf16.mxu0 %v1969
      %2011 = vmatmul.mubr.bf16.gmra.mrb[0].mxu0 %v1968
      %v2012 = vpop.f32.mrb[0].mxu0
      %v2013 = vadd.f32 %v1960, %v2012
      %v2014 = vpop.f32.mrb[0].mxu0
      %v2015 = vadd.f32 %v1960, %v2014
      %v2016 = vpop.f32.mrb[0].mxu0
      %v2017 = vpop.f32.mrb[0].mxu0
      %2018 = vdwg.mxu0
      %2019 = vmatprep.subr.bf16.mxu0 %v1937
      %2020 = vmatpush1.bf16.msra.mxu0 %v1936
      %2021 = vmatprep.subr.bf16.mxu0 %v1939
      %2022 = vmatpush1.bf16.msra.mxu0 %v1938
      %2023 = vmatprep.subr.bf16.mxu0 %v1941
      %2024 = vmatpush1.bf16.msra.mxu0 %v1940
      %2025 = vmatprep.subr.bf16.mxu0 %v1943
      %2026 = vmatpush1.bf16.msra.mxu0 %v1942
      %2027 = vmatprep.subr.bf16.mxu0 %v1945
      %2028 = vmatpush1.bf16.msra.mxu0 %v1944
      %2029 = vmatprep.subr.bf16.mxu0 %v1947
      %2030 = vmatpush1.bf16.msra.mxu0 %v1946
      %2031 = vmatprep.subr.bf16.mxu0 %v1949
      %2032 = vmatpush1.bf16.msra.mxu0 %v1948
      %2033 = vmatprep.subr.bf16.mxu0 %v1951
      %2034 = vmatpush1.bf16.msra.mxu0 %v1950
      %2035 = vmatprep.subr.bf16.mxu0 %v1953
      %2036 = vmatpush1.bf16.msra.mxu0 %v1952
      %2037 = vmatprep.subr.bf16.mxu0 0
      %2038 = vmatpush1.bf16.msra.mxu0 0
      %2039 = vmatprep.subr.bf16.mxu0 0
      %2040 = vmatpush1.bf16.msra.mxu0 0
      %2041 = vmatprep.subr.bf16.mxu0 0
      %2042 = vmatpush1.bf16.msra.mxu0 0
      %2043 = vmatprep.subr.bf16.mxu0 0
      %2044 = vmatpush1.bf16.msra.mxu0 0
      %2045 = vmatprep.subr.bf16.mxu0 0
      %2046 = vmatpush1.bf16.msra.mxu0 0
      %2047 = vmatprep.subr.bf16.mxu0 0
      %2048 = vmatpush1.bf16.msra.mxu0 0
      %2049 = vmatprep.subr.bf16.mxu0 0
      %2050 = vmatpush1.bf16.msra.mxu0 0
      %2051 = vmatprep.mubr.bf16.mxu0 %v1976
      %2052 = vmatmul.mubr.bf16.gmra.mrb[0].mxu0 %v1970
      %v2053 = vpop.f32.mrb[0].mxu0
      %v2054 = vadd.f32 %v2013, %v2053
      %v2055 = vpop.f32.mrb[0].mxu0
      %v2056 = vadd.f32 %v2015, %v2055
      %v2057 = vpop.f32.mrb[0].mxu0
      %v2058 = vpop.f32.mrb[0].mxu0
      %2059 = vdwg.mxu0
      %v2060 = vmax.f32 %v2054, 0.0
      %v2061 = vmax.f32 %v2056, 0.0
      %2062 = vst [vmem:[%s359 + $0x20] sm:$0xff] %v2060
      %2063 = vst [vmem:[%s359 + $0x28] sm:$0xff] %v2061
      %v2064 = vld [vmem:[%s1] ss:$8 sm:$0x3]
      %2067 = vrot.lane.b32.xlu0 %v540, 51
      %v2068 = vpop.permute.xlu0 %2067
      %2069 = vrot.lane.b32.xlu0 %v542, 51
      %v2070 = vpop.permute.xlu0 %2069
      %2075 = vrot.lane.b32.xlu0 %v539, 51
      %v2076 = vpop.permute.xlu0 %2075
      %2077 = vrot.lane.b32.xlu0 %v541, 51
      %v2078 = vpop.permute.xlu0 %2077
      %vm2079 = vcmask 416768
      %v2080 = vsel %vm2079, %v2076, %v2068
      %v2081 = vsel %vm2079, %v2078, %v2070
      %v2086 = vsel %vm2079, %v2068, %v2076
      %v2087 = vsel %vm2079, %v2070, %v2078
      %v2089 = vlaneseq
      %v2090 = vshrl.u32 %v2089, 7
      %v2091 = vsub.s32 0, %v2090
      %v2092 = vrot.slane %v2064, %v2091
      %v2093 = vlaneseq
      %v2094 = vshrl.u32 %v2093, 7
      %v2095 = vsub.s32 1, %v2094
      %v2096 = vrot.slane %v2064, %v2095
      %v2099 = vmul.f32 %v2086, %v2092
      %v2100 = vmul.f32 %v2080, %v2096
      %v2101 = vmul.f32 %v2087, %v2092
      %v2102 = vmul.f32 %v2081, %v2096
      %v2103 = vpack.c.bf16 %v2101, %v2099
      %v2104 = vpack.c.bf16 %v2102, %v2100
      %2105 = vst [vmem:[#allocation2] sm:$0xff] %v2103
      %2106 = vst [vmem:[#allocation2 + $0x8] sm:$0xff] %v2104
      %s2107 = scalar_lea.vmem %s1, 1
      %v2108 = vld [vmem:[%s2107] ss:$8 sm:$0x3]
      %2109 = vrot.lane.b32.xlu0 %v540, 50
      %v2110 = vpop.permute.xlu0 %2109
      %2111 = vrot.lane.b32.xlu0 %v542, 50
      %v2112 = vpop.permute.xlu0 %2111
      %2115 = vrot.lane.b32.xlu0 %v539, 50
      %v2116 = vpop.permute.xlu0 %2115
      %2117 = vrot.lane.b32.xlu0 %v541, 50
      %v2118 = vpop.permute.xlu0 %2117
      %vm2119 = vcmask 408576
      %v2120 = vsel %vm2119, %v2116, %v2110
      %v2121 = vsel %vm2119, %v2118, %v2112
      %v2126 = vsel %vm2119, %v2110, %v2116
      %v2127 = vsel %vm2119, %v2112, %v2118
      %v2129 = vlaneseq
      %v2130 = vshrl.u32 %v2129, 7
      %v2131 = vsub.s32 0, %v2130
      %v2132 = vrot.slane %v2108, %v2131
      %v2133 = vlaneseq
      %v2134 = vshrl.u32 %v2133, 7
      %v2135 = vsub.s32 1, %v2134
      %v2136 = vrot.slane %v2108, %v2135
      %v2139 = vmul.f32 %v2126, %v2132
      %v2140 = vmul.f32 %v2120, %v2136
      %v2141 = vmul.f32 %v2127, %v2132
      %v2142 = vmul.f32 %v2121, %v2136
      %v2143 = vpack.c.bf16 %v2141, %v2139
      %v2144 = vpack.c.bf16 %v2142, %v2140
      %2145 = vst [vmem:[#allocation2 + $0x10] sm:$0xff] %v2143
      %2146 = vst [vmem:[#allocation2 + $0x18] sm:$0xff] %v2144
      %s2147 = scalar_lea.vmem %s1, 2
      %v2148 = vld [vmem:[%s2147] ss:$8 sm:$0x3]
      %2149 = vrot.lane.b32.xlu0 %v540, 49
      %v2150 = vpop.permute.xlu0 %2149
      %2151 = vrot.lane.b32.xlu0 %v542, 49
      %v2152 = vpop.permute.xlu0 %2151
      %2155 = vrot.lane.b32.xlu0 %v539, 49
      %v2156 = vpop.permute.xlu0 %2155
      %2157 = vrot.lane.b32.xlu0 %v541, 49
      %v2158 = vpop.permute.xlu0 %2157
      %vm2159 = vcmask 400384
      %v2160 = vsel %vm2159, %v2156, %v2150
      %v2161 = vsel %vm2159, %v2158, %v2152
      %v2166 = vsel %vm2159, %v2150, %v2156
      %v2167 = vsel %vm2159, %v2152, %v2158
      %v2169 = vlaneseq
      %v2170 = vshrl.u32 %v2169, 7
      %v2171 = vsub.s32 0, %v2170
      %v2172 = vrot.slane %v2148, %v2171
      %v2173 = vlaneseq
      %v2174 = vshrl.u32 %v2173, 7
      %v2175 = vsub.s32 1, %v2174
      %v2176 = vrot.slane %v2148, %v2175
      %v2179 = vmul.f32 %v2166, %v2172
      %v2180 = vmul.f32 %v2160, %v2176
      %v2181 = vmul.f32 %v2167, %v2172
      %v2182 = vmul.f32 %v2161, %v2176
      %v2183 = vpack.c.bf16 %v2181, %v2179
      %v2184 = vpack.c.bf16 %v2182, %v2180
      %2185 = vst [vmem:[#allocation2 + $0x20] sm:$0xff] %v2183
      %2186 = vst [vmem:[#allocation2 + $0x28] sm:$0xff] %v2184
      %s2187 = scalar_lea.vmem %s1, 3
      %v2188 = vld [vmem:[%s2187] ss:$8 sm:$0x3]
      %2189 = vrot.lane.b32.xlu0 %v540, 48
      %v2190 = vpop.permute.xlu0 %2189
      %2191 = vrot.lane.b32.xlu0 %v542, 48
      %v2192 = vpop.permute.xlu0 %2191
      %2195 = vrot.lane.b32.xlu0 %v539, 48
      %v2196 = vpop.permute.xlu0 %2195
      %2197 = vrot.lane.b32.xlu0 %v541, 48
      %v2198 = vpop.permute.xlu0 %2197
      %vm2199 = vcmask 392192
      %v2200 = vsel %vm2199, %v2196, %v2190
      %v2201 = vsel %vm2199, %v2198, %v2192
      %v2206 = vsel %vm2199, %v2190, %v2196
      %v2207 = vsel %vm2199, %v2192, %v2198
      %v2209 = vlaneseq
      %v2210 = vshrl.u32 %v2209, 7
      %v2211 = vsub.s32 0, %v2210
      %v2212 = vrot.slane %v2188, %v2211
      %v2213 = vlaneseq
      %v2214 = vshrl.u32 %v2213, 7
      %v2215 = vsub.s32 1, %v2214
      %v2216 = vrot.slane %v2188, %v2215
      %v2219 = vmul.f32 %v2206, %v2212
      %v2220 = vmul.f32 %v2200, %v2216
      %v2221 = vmul.f32 %v2207, %v2212
      %v2222 = vmul.f32 %v2201, %v2216
      %v2223 = vpack.c.bf16 %v2221, %v2219
      %v2224 = vpack.c.bf16 %v2222, %v2220
      %2225 = vst [vmem:[#allocation2 + $0x30] sm:$0xff] %v2223
      %2226 = vst [vmem:[#allocation2 + $0x38] sm:$0xff] %v2224
      %s2227 = scalar_lea.vmem %s1, 4
      %v2228 = vld [vmem:[%s2227] ss:$8 sm:$0x3]
      %2229 = vrot.lane.b32.xlu0 %v540, 47
      %v2230 = vpop.permute.xlu0 %2229
      %2231 = vrot.lane.b32.xlu0 %v542, 47
      %v2232 = vpop.permute.xlu0 %2231
      %2235 = vrot.lane.b32.xlu0 %v539, 47
      %v2236 = vpop.permute.xlu0 %2235
      %2237 = vrot.lane.b32.xlu0 %v541, 47
      %v2238 = vpop.permute.xlu0 %2237
      %vm2239 = vcmask 384000
      %v2240 = vsel %vm2239, %v2236, %v2230
      %v2241 = vsel %vm2239, %v2238, %v2232
      %v2246 = vsel %vm2239, %v2230, %v2236
      %v2247 = vsel %vm2239, %v2232, %v2238
      %v2249 = vlaneseq
      %v2250 = vshrl.u32 %v2249, 7
      %v2251 = vsub.s32 0, %v2250
      %v2252 = vrot.slane %v2228, %v2251
      %v2253 = vlaneseq
      %v2254 = vshrl.u32 %v2253, 7
      %v2255 = vsub.s32 1, %v2254
      %v2256 = vrot.slane %v2228, %v2255
      %v2259 = vmul.f32 %v2246, %v2252
      %v2260 = vmul.f32 %v2240, %v2256
      %v2261 = vmul.f32 %v2247, %v2252
      %v2262 = vmul.f32 %v2241, %v2256
      %v2263 = vpack.c.bf16 %v2261, %v2259
      %v2264 = vpack.c.bf16 %v2262, %v2260
      %2265 = vst [vmem:[#allocation2 + $0x40] sm:$0xff] %v2263
      %2266 = vst [vmem:[#allocation2 + $0x48] sm:$0xff] %v2264
      %s2267 = scalar_lea.vmem %s1, 5
      %v2268 = vld [vmem:[%s2267] ss:$8 sm:$0x3]
      %2269 = vrot.lane.b32.xlu0 %v540, 46
      %v2270 = vpop.permute.xlu0 %2269
      %2271 = vrot.lane.b32.xlu0 %v542, 46
      %v2272 = vpop.permute.xlu0 %2271
      %2275 = vrot.lane.b32.xlu0 %v539, 46
      %v2276 = vpop.permute.xlu0 %2275
      %2277 = vrot.lane.b32.xlu0 %v541, 46
      %v2278 = vpop.permute.xlu0 %2277
      %vm2279 = vcmask 375808
      %v2280 = vsel %vm2279, %v2276, %v2270
      %v2281 = vsel %vm2279, %v2278, %v2272
      %v2286 = vsel %vm2279, %v2270, %v2276
      %v2287 = vsel %vm2279, %v2272, %v2278
      %v2289 = vlaneseq
      %v2290 = vshrl.u32 %v2289, 7
      %v2291 = vsub.s32 0, %v2290
      %v2292 = vrot.slane %v2268, %v2291
      %v2293 = vlaneseq
      %v2294 = vshrl.u32 %v2293, 7
      %v2295 = vsub.s32 1, %v2294
      %v2296 = vrot.slane %v2268, %v2295
      %v2299 = vmul.f32 %v2286, %v2292
      %v2300 = vmul.f32 %v2280, %v2296
      %v2301 = vmul.f32 %v2287, %v2292
      %v2302 = vmul.f32 %v2281, %v2296
      %v2303 = vpack.c.bf16 %v2301, %v2299
      %v2304 = vpack.c.bf16 %v2302, %v2300
      %2305 = vst [vmem:[#allocation2 + $0x50] sm:$0xff] %v2303
      %2306 = vst [vmem:[#allocation2 + $0x58] sm:$0xff] %v2304
      %s2307 = scalar_lea.vmem %s1, 6
      %v2308 = vld [vmem:[%s2307] ss:$8 sm:$0x3]
      %2309 = vrot.lane.b32.xlu0 %v540, 45
      %v2310 = vpop.permute.xlu0 %2309
      %2311 = vrot.lane.b32.xlu0 %v542, 45
      %v2312 = vpop.permute.xlu0 %2311
      %2315 = vrot.lane.b32.xlu0 %v539, 45
      %v2316 = vpop.permute.xlu0 %2315
      %2317 = vrot.lane.b32.xlu0 %v541, 45
      %v2318 = vpop.permute.xlu0 %2317
      %vm2319 = vcmask 367616
      %v2320 = vsel %vm2319, %v2316, %v2310
      %v2321 = vsel %vm2319, %v2318, %v2312
      %v2326 = vsel %vm2319, %v2310, %v2316
      %v2327 = vsel %vm2319, %v2312, %v2318
      %v2329 = vlaneseq
      %v2330 = vshrl.u32 %v2329, 7
      %v2331 = vsub.s32 0, %v2330
      %v2332 = vrot.slane %v2308, %v2331
      %v2333 = vlaneseq
      %v2334 = vshrl.u32 %v2333, 7
      %v2335 = vsub.s32 1, %v2334
      %v2336 = vrot.slane %v2308, %v2335
      %v2339 = vmul.f32 %v2326, %v2332
      %v2340 = vmul.f32 %v2320, %v2336
      %v2341 = vmul.f32 %v2327, %v2332
      %v2342 = vmul.f32 %v2321, %v2336
      %v2343 = vpack.c.bf16 %v2341, %v2339
      %v2344 = vpack.c.bf16 %v2342, %v2340
      %2345 = vst [vmem:[#allocation2 + $0x60] sm:$0xff] %v2343
      %2346 = vst [vmem:[#allocation2 + $0x68] sm:$0xff] %v2344
      %s2347 = scalar_lea.vmem %s1, 7
      %v2348 = vld [vmem:[%s2347] ss:$8 sm:$0x3]
      %2349 = vrot.lane.b32.xlu0 %v540, 35
      %v2350 = vpop.permute.xlu0 %2349
      %2351 = vrot.lane.b32.xlu0 %v542, 35
      %v2352 = vpop.permute.xlu0 %2351
      %2355 = vrot.lane.b32.xlu0 %v539, 35
      %v2356 = vpop.permute.xlu0 %2355
      %2357 = vrot.lane.b32.xlu0 %v541, 35
      %v2358 = vpop.permute.xlu0 %2357
      %vm2359 = vcmask 285696
      %v2360 = vsel %vm2359, %v2356, %v2350
      %v2361 = vsel %vm2359, %v2358, %v2352
      %v2366 = vsel %vm2359, %v2350, %v2356
      %v2367 = vsel %vm2359, %v2352, %v2358
      %v2369 = vlaneseq
      %v2370 = vshrl.u32 %v2369, 7
      %v2371 = vsub.s32 0, %v2370
      %v2372 = vrot.slane %v2348, %v2371
      %v2373 = vlaneseq
      %v2374 = vshrl.u32 %v2373, 7
      %v2375 = vsub.s32 1, %v2374
      %v2376 = vrot.slane %v2348, %v2375
      %v2379 = vmul.f32 %v2366, %v2372
      %v2380 = vmul.f32 %v2360, %v2376
      %v2381 = vmul.f32 %v2367, %v2372
      %v2382 = vmul.f32 %v2361, %v2376
      %v2383 = vpack.c.bf16 %v2381, %v2379
      %v2384 = vpack.c.bf16 %v2382, %v2380
      %2385 = vst [vmem:[#allocation2 + $0x70] sm:$0xff] %v2383
      %2386 = vst [vmem:[#allocation2 + $0x78] sm:$0xff] %v2384
      %v2387 = vld [vmem:[%s952] ss:$8 sm:$0x3]
      %2388 = vrot.lane.b32.xlu0 %v540, 34
      %v2389 = vpop.permute.xlu0 %2388
      %2390 = vrot.lane.b32.xlu0 %v542, 34
      %v2391 = vpop.permute.xlu0 %2390
      %2394 = vrot.lane.b32.xlu0 %v539, 34
      %v2395 = vpop.permute.xlu0 %2394
      %2396 = vrot.lane.b32.xlu0 %v541, 34
      %v2397 = vpop.permute.xlu0 %2396
      %v2398 = vsel %vm968, %v2395, %v2389
      %v2399 = vsel %vm968, %v2397, %v2391
      %v2404 = vsel %vm968, %v2389, %v2395
      %v2405 = vsel %vm968, %v2391, %v2397
      %v2407 = vlaneseq
      %v2408 = vshrl.u32 %v2407, 7
      %v2409 = vsub.s32 0, %v2408
      %v2410 = vrot.slane %v2387, %v2409
      %v2411 = vlaneseq
      %v2412 = vshrl.u32 %v2411, 7
      %v2413 = vsub.s32 1, %v2412
      %v2414 = vrot.slane %v2387, %v2413
      %v2417 = vmul.f32 %v2404, %v2410
      %v2418 = vmul.f32 %v2398, %v2414
      %v2419 = vmul.f32 %v2405, %v2410
      %v2420 = vmul.f32 %v2399, %v2414
      %v2421 = vpack.c.bf16 %v2419, %v2417
      %v2422 = vpack.c.bf16 %v2420, %v2418
      %2423 = vst [vmem:[#allocation2 + $0x80] sm:$0xff] %v2421
      %2424 = vst [vmem:[#allocation2 + $0x88] sm:$0xff] %v2422
      %v2425 = vld [vmem:[%s996] ss:$8 sm:$0x3]
      %2426 = vrot.lane.b32.xlu0 %v540, 33
      %v2427 = vpop.permute.xlu0 %2426
      %2428 = vrot.lane.b32.xlu0 %v542, 33
      %v2429 = vpop.permute.xlu0 %2428
      %2432 = vrot.lane.b32.xlu0 %v539, 33
      %v2433 = vpop.permute.xlu0 %2432
      %2434 = vrot.lane.b32.xlu0 %v541, 33
      %v2435 = vpop.permute.xlu0 %2434
      %v2436 = vsel %vm1008, %v2433, %v2427
      %v2437 = vsel %vm1008, %v2435, %v2429
      %v2442 = vsel %vm1008, %v2427, %v2433
      %v2443 = vsel %vm1008, %v2429, %v2435
      %v2445 = vlaneseq
      %v2446 = vshrl.u32 %v2445, 7
      %v2447 = vsub.s32 0, %v2446
      %v2448 = vrot.slane %v2425, %v2447
      %v2449 = vlaneseq
      %v2450 = vshrl.u32 %v2449, 7
      %v2451 = vsub.s32 1, %v2450
      %v2452 = vrot.slane %v2425, %v2451
      %v2455 = vmul.f32 %v2442, %v2448
      %v2456 = vmul.f32 %v2436, %v2452
      %v2457 = vmul.f32 %v2443, %v2448
      %v2458 = vmul.f32 %v2437, %v2452
      %v2459 = vpack.c.bf16 %v2457, %v2455
      %v2460 = vpack.c.bf16 %v2458, %v2456
      %2461 = vst [vmem:[#allocation2 + $0x90] sm:$0xff] %v2459
      %2462 = vst [vmem:[#allocation2 + $0x98] sm:$0xff] %v2460
      %v2463 = vld [vmem:[%s1036] ss:$8 sm:$0x3]
      %2464 = vrot.lane.b32.xlu0 %v540, 32
      %v2465 = vpop.permute.xlu0 %2464
      %2466 = vrot.lane.b32.xlu0 %v542, 32
      %v2467 = vpop.permute.xlu0 %2466
      %2470 = vrot.lane.b32.xlu0 %v539, 32
      %v2471 = vpop.permute.xlu0 %2470
      %2472 = vrot.lane.b32.xlu0 %v541, 32
      %v2473 = vpop.permute.xlu0 %2472
      %v2474 = vsel %vm1048, %v2471, %v2465
      %v2475 = vsel %vm1048, %v2473, %v2467
      %v2480 = vsel %vm1048, %v2465, %v2471
      %v2481 = vsel %vm1048, %v2467, %v2473
      %v2483 = vlaneseq
      %v2484 = vshrl.u32 %v2483, 7
      %v2485 = vsub.s32 0, %v2484
      %v2486 = vrot.slane %v2463, %v2485
      %v2487 = vlaneseq
      %v2488 = vshrl.u32 %v2487, 7
      %v2489 = vsub.s32 1, %v2488
      %v2490 = vrot.slane %v2463, %v2489
      %v2493 = vmul.f32 %v2480, %v2486
      %v2494 = vmul.f32 %v2474, %v2490
      %v2495 = vmul.f32 %v2481, %v2486
      %v2496 = vmul.f32 %v2475, %v2490
      %v2497 = vpack.c.bf16 %v2495, %v2493
      %v2498 = vpack.c.bf16 %v2496, %v2494
      %2499 = vst [vmem:[#allocation2 + $0xa0] sm:$0xff] %v2497
      %2500 = vst [vmem:[#allocation2 + $0xa8] sm:$0xff] %v2498
      %v2501 = vld [vmem:[%s1076] ss:$8 sm:$0x3]
      %2502 = vrot.lane.b32.xlu0 %v540, 31
      %v2503 = vpop.permute.xlu0 %2502
      %2504 = vrot.lane.b32.xlu0 %v542, 31
      %v2505 = vpop.permute.xlu0 %2504
      %2508 = vrot.lane.b32.xlu0 %v539, 31
      %v2509 = vpop.permute.xlu0 %2508
      %2510 = vrot.lane.b32.xlu0 %v541, 31
      %v2511 = vpop.permute.xlu0 %2510
      %v2512 = vsel %vm1088, %v2509, %v2503
      %v2513 = vsel %vm1088, %v2511, %v2505
      %v2518 = vsel %vm1088, %v2503, %v2509
      %v2519 = vsel %vm1088, %v2505, %v2511
      %v2521 = vlaneseq
      %v2522 = vshrl.u32 %v2521, 7
      %v2523 = vsub.s32 0, %v2522
      %v2524 = vrot.slane %v2501, %v2523
      %v2525 = vlaneseq
      %v2526 = vshrl.u32 %v2525, 7
      %v2527 = vsub.s32 1, %v2526
      %v2528 = vrot.slane %v2501, %v2527
      %v2531 = vmul.f32 %v2518, %v2524
      %v2532 = vmul.f32 %v2512, %v2528
      %v2533 = vmul.f32 %v2519, %v2524
      %v2534 = vmul.f32 %v2513, %v2528
      %v2535 = vpack.c.bf16 %v2533, %v2531
      %v2536 = vpack.c.bf16 %v2534, %v2532
      %2537 = vst [vmem:[#allocation2 + $0xb0] sm:$0xff] %v2535
      %2538 = vst [vmem:[#allocation2 + $0xb8] sm:$0xff] %v2536
      %v2539 = vld [vmem:[%s1116] ss:$8 sm:$0x3]
      %2540 = vrot.lane.b32.xlu0 %v540, 30
      %v2541 = vpop.permute.xlu0 %2540
      %2542 = vrot.lane.b32.xlu0 %v542, 30
      %v2543 = vpop.permute.xlu0 %2542
      %2546 = vrot.lane.b32.xlu0 %v539, 30
      %v2547 = vpop.permute.xlu0 %2546
      %2548 = vrot.lane.b32.xlu0 %v541, 30
      %v2549 = vpop.permute.xlu0 %2548
      %v2550 = vsel %vm1128, %v2547, %v2541
      %v2551 = vsel %vm1128, %v2549, %v2543
      %v2556 = vsel %vm1128, %v2541, %v2547
      %v2557 = vsel %vm1128, %v2543, %v2549
      %v2559 = vlaneseq
      %v2560 = vshrl.u32 %v2559, 7
      %v2561 = vsub.s32 0, %v2560
      %v2562 = vrot.slane %v2539, %v2561
      %v2563 = vlaneseq
      %v2564 = vshrl.u32 %v2563, 7
      %v2565 = vsub.s32 1, %v2564
      %v2566 = vrot.slane %v2539, %v2565
      %v2569 = vmul.f32 %v2556, %v2562
      %v2570 = vmul.f32 %v2550, %v2566
      %v2571 = vmul.f32 %v2557, %v2562
      %v2572 = vmul.f32 %v2551, %v2566
      %v2573 = vpack.c.bf16 %v2571, %v2569
      %v2574 = vpack.c.bf16 %v2572, %v2570
      %2575 = vst [vmem:[#allocation2 + $0xc0] sm:$0xff] %v2573
      %2576 = vst [vmem:[#allocation2 + $0xc8] sm:$0xff] %v2574
      %s2577 = scalar_lea.vmem %s1, 21
      %v2578 = vld [vmem:[%s2577] ss:$8 sm:$0x3]
      %2579 = vrot.lane.b32.xlu0 %v540, 29
      %v2580 = vpop.permute.xlu0 %2579
      %2581 = vrot.lane.b32.xlu0 %v542, 29
      %v2582 = vpop.permute.xlu0 %2581
      %2585 = vrot.lane.b32.xlu0 %v539, 29
      %v2586 = vpop.permute.xlu0 %2585
      %2587 = vrot.lane.b32.xlu0 %v541, 29
      %v2588 = vpop.permute.xlu0 %2587
      %vm2589 = vcmask 236544
      %v2590 = vsel %vm2589, %v2586, %v2580
      %v2591 = vsel %vm2589, %v2588, %v2582
      %v2596 = vsel %vm2589, %v2580, %v2586
      %v2597 = vsel %vm2589, %v2582, %v2588
      %v2599 = vlaneseq
      %v2600 = vshrl.u32 %v2599, 7
      %v2601 = vsub.s32 0, %v2600
      %v2602 = vrot.slane %v2578, %v2601
      %v2603 = vlaneseq
      %v2604 = vshrl.u32 %v2603, 7
      %v2605 = vsub.s32 1, %v2604
      %v2606 = vrot.slane %v2578, %v2605
      %v2609 = vmul.f32 %v2596, %v2602
      %v2610 = vmul.f32 %v2590, %v2606
      %v2611 = vmul.f32 %v2597, %v2602
      %v2612 = vmul.f32 %v2591, %v2606
      %v2613 = vpack.c.bf16 %v2611, %v2609
      %v2614 = vpack.c.bf16 %v2612, %v2610
      %2615 = vst [vmem:[#allocation2 + $0xd0] sm:$0xff] %v2613
      %2616 = vst [vmem:[#allocation2 + $0xd8] sm:$0xff] %v2614
      %s2617 = scalar_lea.vmem %s1, 22
      %v2618 = vld [vmem:[%s2617] ss:$8 sm:$0x3]
      %2619 = vrot.lane.b32.xlu0 %v540, 19
      %v2620 = vpop.permute.xlu0 %2619
      %2621 = vrot.lane.b32.xlu0 %v542, 19
      %v2622 = vpop.permute.xlu0 %2621
      %2625 = vrot.lane.b32.xlu0 %v539, 19
      %v2626 = vpop.permute.xlu0 %2625
      %2627 = vrot.lane.b32.xlu0 %v541, 19
      %v2628 = vpop.permute.xlu0 %2627
      %vm2629 = vcmask 154624
      %v2630 = vsel %vm2629, %v2626, %v2620
      %v2631 = vsel %vm2629, %v2628, %v2622
      %v2636 = vsel %vm2629, %v2620, %v2626
      %v2637 = vsel %vm2629, %v2622, %v2628
      %v2639 = vlaneseq
      %v2640 = vshrl.u32 %v2639, 7
      %v2641 = vsub.s32 0, %v2640
      %v2642 = vrot.slane %v2618, %v2641
      %v2643 = vlaneseq
      %v2644 = vshrl.u32 %v2643, 7
      %v2645 = vsub.s32 1, %v2644
      %v2646 = vrot.slane %v2618, %v2645
      %v2649 = vmul.f32 %v2636, %v2642
      %v2650 = vmul.f32 %v2630, %v2646
      %v2651 = vmul.f32 %v2637, %v2642
      %v2652 = vmul.f32 %v2631, %v2646
      %v2653 = vpack.c.bf16 %v2651, %v2649
      %v2654 = vpack.c.bf16 %v2652, %v2650
      %2655 = vst [vmem:[#allocation2 + $0xe0] sm:$0xff] %v2653
      %2656 = vst [vmem:[#allocation2 + $0xe8] sm:$0xff] %v2654
      %v2657 = vld [vmem:[%s1156] ss:$8 sm:$0x3]
      %2658 = vrot.lane.b32.xlu0 %v540, 18
      %v2659 = vpop.permute.xlu0 %2658
      %2660 = vrot.lane.b32.xlu0 %v542, 18
      %v2661 = vpop.permute.xlu0 %2660
      %2664 = vrot.lane.b32.xlu0 %v539, 18
      %v2665 = vpop.permute.xlu0 %2664
      %2666 = vrot.lane.b32.xlu0 %v541, 18
      %v2667 = vpop.permute.xlu0 %2666
      %v2668 = vsel %vm1168, %v2665, %v2659
      %v2669 = vsel %vm1168, %v2667, %v2661
      %v2674 = vsel %vm1168, %v2659, %v2665
      %v2675 = vsel %vm1168, %v2661, %v2667
      %v2677 = vlaneseq
      %v2678 = vshrl.u32 %v2677, 7
      %v2679 = vsub.s32 0, %v2678
      %v2680 = vrot.slane %v2657, %v2679
      %v2681 = vlaneseq
      %v2682 = vshrl.u32 %v2681, 7
      %v2683 = vsub.s32 1, %v2682
      %v2684 = vrot.slane %v2657, %v2683
      %v2687 = vmul.f32 %v2674, %v2680
      %v2688 = vmul.f32 %v2668, %v2684
      %v2689 = vmul.f32 %v2675, %v2680
      %v2690 = vmul.f32 %v2669, %v2684
      %v2691 = vpack.c.bf16 %v2689, %v2687
      %v2692 = vpack.c.bf16 %v2690, %v2688
      %2693 = vst [vmem:[#allocation2 + $0xf0] sm:$0xff] %v2691
      %2694 = vst [vmem:[#allocation2 + $0xf8] sm:$0xff] %v2692
      %v2695 = vld [vmem:[%s545] ss:$8 sm:$0x3]
      %2696 = vrot.lane.b32.xlu0 %v540, 17
      %v2697 = vpop.permute.xlu0 %2696
      %2698 = vrot.lane.b32.xlu0 %v542, 17
      %v2699 = vpop.permute.xlu0 %2698
      %2702 = vrot.lane.b32.xlu0 %v539, 17
      %v2703 = vpop.permute.xlu0 %2702
      %2704 = vrot.lane.b32.xlu0 %v541, 17
      %v2705 = vpop.permute.xlu0 %2704
      %v2706 = vsel %vm561, %v2703, %v2697
      %v2707 = vsel %vm561, %v2705, %v2699
      %v2712 = vsel %vm561, %v2697, %v2703
      %v2713 = vsel %vm561, %v2699, %v2705
      %v2715 = vlaneseq
      %v2716 = vshrl.u32 %v2715, 7
      %v2717 = vsub.s32 0, %v2716
      %v2718 = vrot.slane %v2695, %v2717
      %v2719 = vlaneseq
      %v2720 = vshrl.u32 %v2719, 7
      %v2721 = vsub.s32 1, %v2720
      %v2722 = vrot.slane %v2695, %v2721
      %v2725 = vmul.f32 %v2712, %v2718
      %v2726 = vmul.f32 %v2706, %v2722
      %v2727 = vmul.f32 %v2713, %v2718
      %v2728 = vmul.f32 %v2707, %v2722
      %v2729 = vpack.c.bf16 %v2727, %v2725
      %v2730 = vpack.c.bf16 %v2728, %v2726
      %2731 = vst [vmem:[#allocation2 + $0x100] sm:$0xff] %v2729
      %2732 = vst [vmem:[#allocation2 + $0x108] sm:$0xff] %v2730
      %v2733 = vld [vmem:[%s589] ss:$8 sm:$0x3]
      %2734 = vrot.lane.b32.xlu0 %v540, 16
      %v2735 = vpop.permute.xlu0 %2734
      %2736 = vrot.lane.b32.xlu0 %v542, 16
      %v2737 = vpop.permute.xlu0 %2736
      %2740 = vrot.lane.b32.xlu0 %v539, 16
      %v2741 = vpop.permute.xlu0 %2740
      %2742 = vrot.lane.b32.xlu0 %v541, 16
      %v2743 = vpop.permute.xlu0 %2742
      %v2744 = vsel %vm601, %v2741, %v2735
      %v2745 = vsel %vm601, %v2743, %v2737
      %v2750 = vsel %vm601, %v2735, %v2741
      %v2751 = vsel %vm601, %v2737, %v2743
      %v2753 = vlaneseq
      %v2754 = vshrl.u32 %v2753, 7
      %v2755 = vsub.s32 0, %v2754
      %v2756 = vrot.slane %v2733, %v2755
      %v2757 = vlaneseq
      %v2758 = vshrl.u32 %v2757, 7
      %v2759 = vsub.s32 1, %v2758
      %v2760 = vrot.slane %v2733, %v2759
      %v2763 = vmul.f32 %v2750, %v2756
      %v2764 = vmul.f32 %v2744, %v2760
      %v2765 = vmul.f32 %v2751, %v2756
      %v2766 = vmul.f32 %v2745, %v2760
      %v2767 = vpack.c.bf16 %v2765, %v2763
      %v2768 = vpack.c.bf16 %v2766, %v2764
      %2769 = vst [vmem:[#allocation2 + $0x110] sm:$0xff] %v2767
      %2770 = vst [vmem:[#allocation2 + $0x118] sm:$0xff] %v2768
      %v2771 = vld [vmem:[%s629] ss:$8 sm:$0x3]
      %2772 = vrot.lane.b32.xlu0 %v540, 15
      %v2773 = vpop.permute.xlu0 %2772
      %2774 = vrot.lane.b32.xlu0 %v542, 15
      %v2775 = vpop.permute.xlu0 %2774
      %2778 = vrot.lane.b32.xlu0 %v539, 15
      %v2779 = vpop.permute.xlu0 %2778
      %2780 = vrot.lane.b32.xlu0 %v541, 15
      %v2781 = vpop.permute.xlu0 %2780
      %v2782 = vsel %vm641, %v2779, %v2773
      %v2783 = vsel %vm641, %v2781, %v2775
      %v2788 = vsel %vm641, %v2773, %v2779
      %v2789 = vsel %vm641, %v2775, %v2781
      %v2791 = vlaneseq
      %v2792 = vshrl.u32 %v2791, 7
      %v2793 = vsub.s32 0, %v2792
      %v2794 = vrot.slane %v2771, %v2793
      %v2795 = vlaneseq
      %v2796 = vshrl.u32 %v2795, 7
      %v2797 = vsub.s32 1, %v2796
      %v2798 = vrot.slane %v2771, %v2797
      %v2801 = vmul.f32 %v2788, %v2794
      %v2802 = vmul.f32 %v2782, %v2798
      %v2803 = vmul.f32 %v2789, %v2794
      %v2804 = vmul.f32 %v2783, %v2798
      %v2805 = vpack.c.bf16 %v2803, %v2801
      %v2806 = vpack.c.bf16 %v2804, %v2802
      %2807 = vst [vmem:[#allocation2 + $0x120] sm:$0xff] %v2805
      %2808 = vst [vmem:[#allocation2 + $0x128] sm:$0xff] %v2806
      %v2809 = vld [vmem:[%s1310] ss:$8 sm:$0x3]
      %2810 = vrot.lane.b32.xlu0 %v540, 14
      %v2811 = vpop.permute.xlu0 %2810
      %2812 = vrot.lane.b32.xlu0 %v542, 14
      %v2813 = vpop.permute.xlu0 %2812
      %2816 = vrot.lane.b32.xlu0 %v539, 14
      %v2817 = vpop.permute.xlu0 %2816
      %2818 = vrot.lane.b32.xlu0 %v541, 14
      %v2819 = vpop.permute.xlu0 %2818
      %v2820 = vsel %vm1322, %v2817, %v2811
      %v2821 = vsel %vm1322, %v2819, %v2813
      %v2826 = vsel %vm1322, %v2811, %v2817
      %v2827 = vsel %vm1322, %v2813, %v2819
      %v2829 = vlaneseq
      %v2830 = vshrl.u32 %v2829, 7
      %v2831 = vsub.s32 0, %v2830
      %v2832 = vrot.slane %v2809, %v2831
      %v2833 = vlaneseq
      %v2834 = vshrl.u32 %v2833, 7
      %v2835 = vsub.s32 1, %v2834
      %v2836 = vrot.slane %v2809, %v2835
      %v2839 = vmul.f32 %v2826, %v2832
      %v2840 = vmul.f32 %v2820, %v2836
      %v2841 = vmul.f32 %v2827, %v2832
      %v2842 = vmul.f32 %v2821, %v2836
      %v2843 = vpack.c.bf16 %v2841, %v2839
      %v2844 = vpack.c.bf16 %v2842, %v2840
      %2845 = vst [vmem:[#allocation2 + $0x130] sm:$0xff] %v2843
      %2846 = vst [vmem:[#allocation2 + $0x138] sm:$0xff] %v2844
      %s2847 = scalar_lea.vmem %s1, 36
      %v2848 = vld [vmem:[%s2847] ss:$8 sm:$0x3]
      %2849 = vrot.lane.b32.xlu0 %v540, 13
      %v2850 = vpop.permute.xlu0 %2849
      %2851 = vrot.lane.b32.xlu0 %v542, 13
      %v2852 = vpop.permute.xlu0 %2851
      %2855 = vrot.lane.b32.xlu0 %v539, 13
      %v2856 = vpop.permute.xlu0 %2855
      %2857 = vrot.lane.b32.xlu0 %v541, 13
      %v2858 = vpop.permute.xlu0 %2857
      %vm2859 = vcmask 105472
      %v2860 = vsel %vm2859, %v2856, %v2850
      %v2861 = vsel %vm2859, %v2858, %v2852
      %v2866 = vsel %vm2859, %v2850, %v2856
      %v2867 = vsel %vm2859, %v2852, %v2858
      %v2869 = vlaneseq
      %v2870 = vshrl.u32 %v2869, 7
      %v2871 = vsub.s32 0, %v2870
      %v2872 = vrot.slane %v2848, %v2871
      %v2873 = vlaneseq
      %v2874 = vshrl.u32 %v2873, 7
      %v2875 = vsub.s32 1, %v2874
      %v2876 = vrot.slane %v2848, %v2875
      %v2879 = vmul.f32 %v2866, %v2872
      %v2880 = vmul.f32 %v2860, %v2876
      %v2881 = vmul.f32 %v2867, %v2872
      %v2882 = vmul.f32 %v2861, %v2876
      %v2883 = vpack.c.bf16 %v2881, %v2879
      %v2884 = vpack.c.bf16 %v2882, %v2880
      %2885 = vst [vmem:[#allocation2 + $0x140] sm:$0xff] %v2883
      %2886 = vst [vmem:[#allocation2 + $0x148] sm:$0xff] %v2884
      %s2887 = scalar_lea.vmem %s1, 37
      %v2888 = vld [vmem:[%s2887] ss:$8 sm:$0x3]
      %2889 = vrot.lane.b32.xlu0 %v540, 3
      %v2890 = vpop.permute.xlu0 %2889
      %2891 = vrot.lane.b32.xlu0 %v542, 3
      %v2892 = vpop.permute.xlu0 %2891
      %2895 = vrot.lane.b32.xlu0 %v539, 3
      %v2896 = vpop.permute.xlu0 %2895
      %2897 = vrot.lane.b32.xlu0 %v541, 3
      %v2898 = vpop.permute.xlu0 %2897
      %vm2899 = vcmask 23552
      %v2900 = vsel %vm2899, %v2896, %v2890
      %v2901 = vsel %vm2899, %v2898, %v2892
      %v2906 = vsel %vm2899, %v2890, %v2896
      %v2907 = vsel %vm2899, %v2892, %v2898
      %v2909 = vlaneseq
      %v2910 = vshrl.u32 %v2909, 7
      %v2911 = vsub.s32 0, %v2910
      %v2912 = vrot.slane %v2888, %v2911
      %v2913 = vlaneseq
      %v2914 = vshrl.u32 %v2913, 7
      %v2915 = vsub.s32 1, %v2914
      %v2916 = vrot.slane %v2888, %v2915
      %v2919 = vmul.f32 %v2906, %v2912
      %v2920 = vmul.f32 %v2900, %v2916
      %v2921 = vmul.f32 %v2907, %v2912
      %v2922 = vmul.f32 %v2901, %v2916
      %v2923 = vpack.c.bf16 %v2921, %v2919
      %v2924 = vpack.c.bf16 %v2922, %v2920
      %2925 = vst [vmem:[#allocation2 + $0x150] sm:$0xff] %v2923
      %2926 = vst [vmem:[#allocation2 + $0x158] sm:$0xff] %v2924
      %v2927 = vld [vmem:[%s1350] ss:$8 sm:$0x3]
      %2928 = vrot.lane.b32.xlu0 %v540, 2
      %v2929 = vpop.permute.xlu0 %2928
      %2930 = vrot.lane.b32.xlu0 %v542, 2
      %v2931 = vpop.permute.xlu0 %2930
      %2934 = vrot.lane.b32.xlu0 %v539, 2
      %v2935 = vpop.permute.xlu0 %2934
      %2936 = vrot.lane.b32.xlu0 %v541, 2
      %v2937 = vpop.permute.xlu0 %2936
      %v2938 = vsel %vm1362, %v2935, %v2929
      %v2939 = vsel %vm1362, %v2937, %v2931
      %v2944 = vsel %vm1362, %v2929, %v2935
      %v2945 = vsel %vm1362, %v2931, %v2937
      %v2947 = vlaneseq
      %v2948 = vshrl.u32 %v2947, 7
      %v2949 = vsub.s32 0, %v2948
      %v2950 = vrot.slane %v2927, %v2949
      %v2951 = vlaneseq
      %v2952 = vshrl.u32 %v2951, 7
      %v2953 = vsub.s32 1, %v2952
      %v2954 = vrot.slane %v2927, %v2953
      %v2957 = vmul.f32 %v2944, %v2950
      %v2958 = vmul.f32 %v2938, %v2954
      %v2959 = vmul.f32 %v2945, %v2950
      %v2960 = vmul.f32 %v2939, %v2954
      %v2961 = vpack.c.bf16 %v2959, %v2957
      %v2962 = vpack.c.bf16 %v2960, %v2958
      %2963 = vst [vmem:[#allocation2 + $0x160] sm:$0xff] %v2961
      %2964 = vst [vmem:[#allocation2 + $0x168] sm:$0xff] %v2962
      %v2965 = vld [vmem:[%s669] ss:$8 sm:$0x3]
      %2966 = vrot.lane.b32.xlu0 %v540, 1
      %v2967 = vpop.permute.xlu0 %2966
      %2968 = vrot.lane.b32.xlu0 %v542, 1
      %v2969 = vpop.permute.xlu0 %2968
      %2972 = vrot.lane.b32.xlu0 %v539, 1
      %v2973 = vpop.permute.xlu0 %2972
      %2974 = vrot.lane.b32.xlu0 %v541, 1
      %v2975 = vpop.permute.xlu0 %2974
      %v2976 = vsel %vm681, %v2973, %v2967
      %v2977 = vsel %vm681, %v2975, %v2969
      %v2982 = vsel %vm681, %v2967, %v2973
      %v2983 = vsel %vm681, %v2969, %v2975
      %v2985 = vlaneseq
      %v2986 = vshrl.u32 %v2985, 7
      %v2987 = vsub.s32 0, %v2986
      %v2988 = vrot.slane %v2965, %v2987
      %v2989 = vlaneseq
      %v2990 = vshrl.u32 %v2989, 7
      %v2991 = vsub.s32 1, %v2990
      %v2992 = vrot.slane %v2965, %v2991
      %v2995 = vmul.f32 %v2982, %v2988
      %v2996 = vmul.f32 %v2976, %v2992
      %v2997 = vmul.f32 %v2983, %v2988
      %v2998 = vmul.f32 %v2977, %v2992
      %v2999 = vpack.c.bf16 %v2997, %v2995
      %v3000 = vpack.c.bf16 %v2998, %v2996
      %3001 = vst [vmem:[#allocation2 + $0x170] sm:$0xff] %v2999
      %3002 = vst [vmem:[#allocation2 + $0x178] sm:$0xff] %v3000
      %v3003 = vpack.c.bf16 %v541, %v539
      %v3004 = vpack.c.bf16 %v542, %v540
      %3005 = vst [vmem:[#allocation2 + $0x180] sm:$0xff] %v3003
      %3006 = vst [vmem:[#allocation2 + $0x188] sm:$0xff] %v3004
      %v3007 = vld [vmem:[%s713] ss:$8 sm:$0x3]
      %3008 = vrot.lane.b32.xlu0 %v539, 127
      %v3009 = vpop.permute.xlu0 %3008
      %3010 = vrot.lane.b32.xlu0 %v540, 127
      %v3011 = vpop.permute.xlu0 %3010
      %3012 = vrot.lane.b32.xlu0 %v541, 127
      %v3013 = vpop.permute.xlu0 %3012
      %3014 = vrot.lane.b32.xlu0 %v542, 127
      %v3015 = vpop.permute.xlu0 %3014
      %v3016 = vsel %vm723, %v3009, %v3011
      %v3017 = vsel %vm723, %v3013, %v3015
      %v3024 = vsel %vm723, %v3011, %v3009
      %v3025 = vsel %vm723, %v3015, %v3013
      %v3027 = vlaneseq
      %v3028 = vshrl.u32 %v3027, 7
      %v3029 = vsub.s32 0, %v3028
      %v3030 = vrot.slane %v3007, %v3029
      %v3031 = vlaneseq
      %v3032 = vshrl.u32 %v3031, 7
      %v3033 = vsub.s32 1, %v3032
      %v3034 = vrot.slane %v3007, %v3033
      %v3037 = vmul.f32 %v3016, %v3030
      %v3038 = vmul.f32 %v3024, %v3034
      %v3039 = vmul.f32 %v3017, %v3030
      %v3040 = vmul.f32 %v3025, %v3034
      %v3041 = vpack.c.bf16 %v3039, %v3037
      %v3042 = vpack.c.bf16 %v3040, %v3038
      %3043 = vst [vmem:[#allocation2 + $0x190] sm:$0xff] %v3041
      %3044 = vst [vmem:[#allocation2 + $0x198] sm:$0xff] %v3042
      %v3045 = vld [vmem:[%s1470] ss:$8 sm:$0x3]
      %3046 = vrot.lane.b32.xlu0 %v539, 126
      %v3047 = vpop.permute.xlu0 %3046
      %3048 = vrot.lane.b32.xlu0 %v540, 126
      %v3049 = vpop.permute.xlu0 %3048
      %3050 = vrot.lane.b32.xlu0 %v541, 126
      %v3051 = vpop.permute.xlu0 %3050
      %3052 = vrot.lane.b32.xlu0 %v542, 126
      %v3053 = vpop.permute.xlu0 %3052
      %v3054 = vsel %vm1480, %v3047, %v3049
      %v3055 = vsel %vm1480, %v3051, %v3053
      %v3062 = vsel %vm1480, %v3049, %v3047
      %v3063 = vsel %vm1480, %v3053, %v3051
      %v3065 = vlaneseq
      %v3066 = vshrl.u32 %v3065, 7
      %v3067 = vsub.s32 0, %v3066
      %v3068 = vrot.slane %v3045, %v3067
      %v3069 = vlaneseq
      %v3070 = vshrl.u32 %v3069, 7
      %v3071 = vsub.s32 1, %v3070
      %v3072 = vrot.slane %v3045, %v3071
      %v3075 = vmul.f32 %v3054, %v3068
      %v3076 = vmul.f32 %v3062, %v3072
      %v3077 = vmul.f32 %v3055, %v3068
      %v3078 = vmul.f32 %v3063, %v3072
      %v3079 = vpack.c.bf16 %v3077, %v3075
      %v3080 = vpack.c.bf16 %v3078, %v3076
      %3081 = vst [vmem:[#allocation2 + $0x1a0] sm:$0xff] %v3079
      %3082 = vst [vmem:[#allocation2 + $0x1a8] sm:$0xff] %v3080
      %s3083 = scalar_lea.vmem %s1, 51
      %v3084 = vld [vmem:[%s3083] ss:$8 sm:$0x3]
      %3085 = vrot.lane.b32.xlu0 %v539, 125
      %v3086 = vpop.permute.xlu0 %3085
      %3087 = vrot.lane.b32.xlu0 %v540, 125
      %v3088 = vpop.permute.xlu0 %3087
      %3089 = vrot.lane.b32.xlu0 %v541, 125
      %v3090 = vpop.permute.xlu0 %3089
      %3091 = vrot.lane.b32.xlu0 %v542, 125
      %v3092 = vpop.permute.xlu0 %3091
      %vm3093 = vcmask 1022976
      %v3094 = vsel %vm3093, %v3086, %v3088
      %v3095 = vsel %vm3093, %v3090, %v3092
      %v3102 = vsel %vm3093, %v3088, %v3086
      %v3103 = vsel %vm3093, %v3092, %v3090
      %v3105 = vlaneseq
      %v3106 = vshrl.u32 %v3105, 7
      %v3107 = vsub.s32 0, %v3106
      %v3108 = vrot.slane %v3084, %v3107
      %v3109 = vlaneseq
      %v3110 = vshrl.u32 %v3109, 7
      %v3111 = vsub.s32 1, %v3110
      %v3112 = vrot.slane %v3084, %v3111
      %v3115 = vmul.f32 %v3094, %v3108
      %v3116 = vmul.f32 %v3102, %v3112
      %v3117 = vmul.f32 %v3095, %v3108
      %v3118 = vmul.f32 %v3103, %v3112
      %v3119 = vpack.c.bf16 %v3117, %v3115
      %v3120 = vpack.c.bf16 %v3118, %v3116
      %3121 = vst [vmem:[#allocation2 + $0x1b0] sm:$0xff] %v3119
      %3122 = vst [vmem:[#allocation2 + $0x1b8] sm:$0xff] %v3120
      %s3123 = scalar_lea.vmem %s1, 52
      %v3124 = vld [vmem:[%s3123] ss:$8 sm:$0x3]
      %3125 = vrot.lane.b32.xlu0 %v539, 115
      %v3126 = vpop.permute.xlu0 %3125
      %3127 = vrot.lane.b32.xlu0 %v540, 115
      %v3128 = vpop.permute.xlu0 %3127
      %3129 = vrot.lane.b32.xlu0 %v541, 115
      %v3130 = vpop.permute.xlu0 %3129
      %3131 = vrot.lane.b32.xlu0 %v542, 115
      %v3132 = vpop.permute.xlu0 %3131
      %vm3133 = vcmask 941056
      %v3134 = vsel %vm3133, %v3126, %v3128
      %v3135 = vsel %vm3133, %v3130, %v3132
      %v3142 = vsel %vm3133, %v3128, %v3126
      %v3143 = vsel %vm3133, %v3132, %v3130
      %v3145 = vlaneseq
      %v3146 = vshrl.u32 %v3145, 7
      %v3147 = vsub.s32 0, %v3146
      %v3148 = vrot.slane %v3124, %v3147
      %v3149 = vlaneseq
      %v3150 = vshrl.u32 %v3149, 7
      %v3151 = vsub.s32 1, %v3150
      %v3152 = vrot.slane %v3124, %v3151
      %v3155 = vmul.f32 %v3134, %v3148
      %v3156 = vmul.f32 %v3142, %v3152
      %v3157 = vmul.f32 %v3135, %v3148
      %v3158 = vmul.f32 %v3143, %v3152
      %v3159 = vpack.c.bf16 %v3157, %v3155
      %v3160 = vpack.c.bf16 %v3158, %v3156
      %3161 = vst [vmem:[#allocation2 + $0x1c0] sm:$0xff] %v3159
      %3162 = vst [vmem:[#allocation2 + $0x1c8] sm:$0xff] %v3160
      %v3163 = vld [vmem:[%s1510] ss:$8 sm:$0x3]
      %3164 = vrot.lane.b32.xlu0 %v539, 114
      %v3165 = vpop.permute.xlu0 %3164
      %3166 = vrot.lane.b32.xlu0 %v540, 114
      %v3167 = vpop.permute.xlu0 %3166
      %3168 = vrot.lane.b32.xlu0 %v541, 114
      %v3169 = vpop.permute.xlu0 %3168
      %3170 = vrot.lane.b32.xlu0 %v542, 114
      %v3171 = vpop.permute.xlu0 %3170
      %v3172 = vsel %vm1520, %v3165, %v3167
      %v3173 = vsel %vm1520, %v3169, %v3171
      %v3180 = vsel %vm1520, %v3167, %v3165
      %v3181 = vsel %vm1520, %v3171, %v3169
      %v3183 = vlaneseq
      %v3184 = vshrl.u32 %v3183, 7
      %v3185 = vsub.s32 0, %v3184
      %v3186 = vrot.slane %v3163, %v3185
      %v3187 = vlaneseq
      %v3188 = vshrl.u32 %v3187, 7
      %v3189 = vsub.s32 1, %v3188
      %v3190 = vrot.slane %v3163, %v3189
      %v3193 = vmul.f32 %v3172, %v3186
      %v3194 = vmul.f32 %v3180, %v3190
      %v3195 = vmul.f32 %v3173, %v3186
      %v3196 = vmul.f32 %v3181, %v3190
      %v3197 = vpack.c.bf16 %v3195, %v3193
      %v3198 = vpack.c.bf16 %v3196, %v3194
      %3199 = vst [vmem:[#allocation2 + $0x1d0] sm:$0xff] %v3197
      %3200 = vst [vmem:[#allocation2 + $0x1d8] sm:$0xff] %v3198
      %v3201 = vld [vmem:[%s753] ss:$8 sm:$0x3]
      %3202 = vrot.lane.b32.xlu0 %v539, 113
      %v3203 = vpop.permute.xlu0 %3202
      %3204 = vrot.lane.b32.xlu0 %v540, 113
      %v3205 = vpop.permute.xlu0 %3204
      %3206 = vrot.lane.b32.xlu0 %v541, 113
      %v3207 = vpop.permute.xlu0 %3206
      %3208 = vrot.lane.b32.xlu0 %v542, 113
      %v3209 = vpop.permute.xlu0 %3208
      %v3210 = vsel %vm763, %v3203, %v3205
      %v3211 = vsel %vm763, %v3207, %v3209
      %v3218 = vsel %vm763, %v3205, %v3203
      %v3219 = vsel %vm763, %v3209, %v3207
      %v3221 = vlaneseq
      %v3222 = vshrl.u32 %v3221, 7
      %v3223 = vsub.s32 0, %v3222
      %v3224 = vrot.slane %v3201, %v3223
      %v3225 = vlaneseq
      %v3226 = vshrl.u32 %v3225, 7
      %v3227 = vsub.s32 1, %v3226
      %v3228 = vrot.slane %v3201, %v3227
      %v3231 = vmul.f32 %v3210, %v3224
      %v3232 = vmul.f32 %v3218, %v3228
      %v3233 = vmul.f32 %v3211, %v3224
      %v3234 = vmul.f32 %v3219, %v3228
      %v3235 = vpack.c.bf16 %v3233, %v3231
      %v3236 = vpack.c.bf16 %v3234, %v3232
      %3237 = vst [vmem:[#allocation2 + $0x1e0] sm:$0xff] %v3235
      %3238 = vst [vmem:[#allocation2 + $0x1e8] sm:$0xff] %v3236
      %v3239 = vld [vmem:[%s793] ss:$8 sm:$0x3]
      %3240 = vrot.lane.b32.xlu0 %v539, 112
      %v3241 = vpop.permute.xlu0 %3240
      %3242 = vrot.lane.b32.xlu0 %v540, 112
      %v3243 = vpop.permute.xlu0 %3242
      %3244 = vrot.lane.b32.xlu0 %v541, 112
      %v3245 = vpop.permute.xlu0 %3244
      %3246 = vrot.lane.b32.xlu0 %v542, 112
      %v3247 = vpop.permute.xlu0 %3246
      %v3248 = vsel %vm803, %v3241, %v3243
      %v3249 = vsel %vm803, %v3245, %v3247
      %v3256 = vsel %vm803, %v3243, %v3241
      %v3257 = vsel %vm803, %v3247, %v3245
      %v3259 = vlaneseq
      %v3260 = vshrl.u32 %v3259, 7
      %v3261 = vsub.s32 0, %v3260
      %v3262 = vrot.slane %v3239, %v3261
      %v3263 = vlaneseq
      %v3264 = vshrl.u32 %v3263, 7
      %v3265 = vsub.s32 1, %v3264
      %v3266 = vrot.slane %v3239, %v3265
      %v3269 = vmul.f32 %v3248, %v3262
      %v3270 = vmul.f32 %v3256, %v3266
      %v3271 = vmul.f32 %v3249, %v3262
      %v3272 = vmul.f32 %v3257, %v3266
      %v3273 = vpack.c.bf16 %v3271, %v3269
      %v3274 = vpack.c.bf16 %v3272, %v3270
      %3275 = vst [vmem:[#allocation2 + $0x1f0] sm:$0xff] %v3273
      %3276 = vst [vmem:[#allocation2 + $0x1f8] sm:$0xff] %v3274
      %v3277 = vld [vmem:[%s833] ss:$8 sm:$0x3]
      %3278 = vrot.lane.b32.xlu0 %v539, 111
      %v3279 = vpop.permute.xlu0 %3278
      %3280 = vrot.lane.b32.xlu0 %v540, 111
      %v3281 = vpop.permute.xlu0 %3280
      %3282 = vrot.lane.b32.xlu0 %v541, 111
      %v3283 = vpop.permute.xlu0 %3282
      %3284 = vrot.lane.b32.xlu0 %v542, 111
      %v3285 = vpop.permute.xlu0 %3284
      %v3286 = vsel %vm843, %v3279, %v3281
      %v3287 = vsel %vm843, %v3283, %v3285
      %v3294 = vsel %vm843, %v3281, %v3279
      %v3295 = vsel %vm843, %v3285, %v3283
      %v3297 = vlaneseq
      %v3298 = vshrl.u32 %v3297, 7
      %v3299 = vsub.s32 0, %v3298
      %v3300 = vrot.slane %v3277, %v3299
      %v3301 = vlaneseq
      %v3302 = vshrl.u32 %v3301, 7
      %v3303 = vsub.s32 1, %v3302
      %v3304 = vrot.slane %v3277, %v3303
      %v3307 = vmul.f32 %v3286, %v3300
      %v3308 = vmul.f32 %v3294, %v3304
      %v3309 = vmul.f32 %v3287, %v3300
      %v3310 = vmul.f32 %v3295, %v3304
      %v3311 = vpack.c.bf16 %v3309, %v3307
      %v3312 = vpack.c.bf16 %v3310, %v3308
      %3313 = vst [vmem:[#allocation2 + $0x200] sm:$0xff] %v3311
      %3314 = vst [vmem:[#allocation2 + $0x208] sm:$0xff] %v3312
      %v3315 = vld [vmem:[%s1664] ss:$8 sm:$0x3]
      %3316 = vrot.lane.b32.xlu0 %v539, 110
      %v3317 = vpop.permute.xlu0 %3316
      %3318 = vrot.lane.b32.xlu0 %v540, 110
      %v3319 = vpop.permute.xlu0 %3318
      %3320 = vrot.lane.b32.xlu0 %v541, 110
      %v3321 = vpop.permute.xlu0 %3320
      %3322 = vrot.lane.b32.xlu0 %v542, 110
      %v3323 = vpop.permute.xlu0 %3322
      %v3324 = vsel %vm1674, %v3317, %v3319
      %v3325 = vsel %vm1674, %v3321, %v3323
      %v3332 = vsel %vm1674, %v3319, %v3317
      %v3333 = vsel %vm1674, %v3323, %v3321
      %v3335 = vlaneseq
      %v3336 = vshrl.u32 %v3335, 7
      %v3337 = vsub.s32 0, %v3336
      %v3338 = vrot.slane %v3315, %v3337
      %v3339 = vlaneseq
      %v3340 = vshrl.u32 %v3339, 7
      %v3341 = vsub.s32 1, %v3340
      %v3342 = vrot.slane %v3315, %v3341
      %v3345 = vmul.f32 %v3324, %v3338
      %v3346 = vmul.f32 %v3332, %v3342
      %v3347 = vmul.f32 %v3325, %v3338
      %v3348 = vmul.f32 %v3333, %v3342
      %v3349 = vpack.c.bf16 %v3347, %v3345
      %v3350 = vpack.c.bf16 %v3348, %v3346
      %3351 = vst [vmem:[#allocation2 + $0x210] sm:$0xff] %v3349
      %3352 = vst [vmem:[#allocation2 + $0x218] sm:$0xff] %v3350
      %s3353 = scalar_lea.vmem %s1, 66
      %v3354 = vld [vmem:[%s3353] ss:$8 sm:$0x3]
      %3355 = vrot.lane.b32.xlu0 %v539, 109
      %v3356 = vpop.permute.xlu0 %3355
      %3357 = vrot.lane.b32.xlu0 %v540, 109
      %v3358 = vpop.permute.xlu0 %3357
      %3359 = vrot.lane.b32.xlu0 %v541, 109
      %v3360 = vpop.permute.xlu0 %3359
      %3361 = vrot.lane.b32.xlu0 %v542, 109
      %v3362 = vpop.permute.xlu0 %3361
      %vm3363 = vcmask 891904
      %v3364 = vsel %vm3363, %v3356, %v3358
      %v3365 = vsel %vm3363, %v3360, %v3362
      %v3372 = vsel %vm3363, %v3358, %v3356
      %v3373 = vsel %vm3363, %v3362, %v3360
      %v3375 = vlaneseq
      %v3376 = vshrl.u32 %v3375, 7
      %v3377 = vsub.s32 0, %v3376
      %v3378 = vrot.slane %v3354, %v3377
      %v3379 = vlaneseq
      %v3380 = vshrl.u32 %v3379, 7
      %v3381 = vsub.s32 1, %v3380
      %v3382 = vrot.slane %v3354, %v3381
      %v3385 = vmul.f32 %v3364, %v3378
      %v3386 = vmul.f32 %v3372, %v3382
      %v3387 = vmul.f32 %v3365, %v3378
      %v3388 = vmul.f32 %v3373, %v3382
      %v3389 = vpack.c.bf16 %v3387, %v3385
      %v3390 = vpack.c.bf16 %v3388, %v3386
      %3391 = vst [vmem:[#allocation2 + $0x220] sm:$0xff] %v3389
      %3392 = vst [vmem:[#allocation2 + $0x228] sm:$0xff] %v3390
      %s3393 = scalar_lea.vmem %s1, 67
      %v3394 = vld [vmem:[%s3393] ss:$8 sm:$0x3]
      %3395 = vrot.lane.b32.xlu0 %v539, 99
      %v3396 = vpop.permute.xlu0 %3395
      %3397 = vrot.lane.b32.xlu0 %v540, 99
      %v3398 = vpop.permute.xlu0 %3397
      %3399 = vrot.lane.b32.xlu0 %v541, 99
      %v3400 = vpop.permute.xlu0 %3399
      %3401 = vrot.lane.b32.xlu0 %v542, 99
      %v3402 = vpop.permute.xlu0 %3401
      %vm3403 = vcmask 809984
      %v3404 = vsel %vm3403, %v3396, %v3398
      %v3405 = vsel %vm3403, %v3400, %v3402
      %v3412 = vsel %vm3403, %v3398, %v3396
      %v3413 = vsel %vm3403, %v3402, %v3400
      %v3415 = vlaneseq
      %v3416 = vshrl.u32 %v3415, 7
      %v3417 = vsub.s32 0, %v3416
      %v3418 = vrot.slane %v3394, %v3417
      %v3419 = vlaneseq
      %v3420 = vshrl.u32 %v3419, 7
      %v3421 = vsub.s32 1, %v3420
      %v3422 = vrot.slane %v3394, %v3421
      %v3425 = vmul.f32 %v3404, %v3418
      %v3426 = vmul.f32 %v3412, %v3422
      %v3427 = vmul.f32 %v3405, %v3418
      %v3428 = vmul.f32 %v3413, %v3422
      %v3429 = vpack.c.bf16 %v3427, %v3425
      %v3430 = vpack.c.bf16 %v3428, %v3426
      %3431 = vst [vmem:[#allocation2 + $0x230] sm:$0xff] %v3429
      %3432 = vst [vmem:[#allocation2 + $0x238] sm:$0xff] %v3430
      %v3433 = vld [vmem:[%s1704] ss:$8 sm:$0x3]
      %3434 = vrot.lane.b32.xlu0 %v539, 98
      %v3435 = vpop.permute.xlu0 %3434
      %3436 = vrot.lane.b32.xlu0 %v540, 98
      %v3437 = vpop.permute.xlu0 %3436
      %3438 = vrot.lane.b32.xlu0 %v541, 98
      %v3439 = vpop.permute.xlu0 %3438
      %3440 = vrot.lane.b32.xlu0 %v542, 98
      %v3441 = vpop.permute.xlu0 %3440
      %v3442 = vsel %vm1714, %v3435, %v3437
      %v3443 = vsel %vm1714, %v3439, %v3441
      %v3450 = vsel %vm1714, %v3437, %v3435
      %v3451 = vsel %vm1714, %v3441, %v3439
      %v3453 = vlaneseq
      %v3454 = vshrl.u32 %v3453, 7
      %v3455 = vsub.s32 0, %v3454
      %v3456 = vrot.slane %v3433, %v3455
      %v3457 = vlaneseq
      %v3458 = vshrl.u32 %v3457, 7
      %v3459 = vsub.s32 1, %v3458
      %v3460 = vrot.slane %v3433, %v3459
      %v3463 = vmul.f32 %v3442, %v3456
      %v3464 = vmul.f32 %v3450, %v3460
      %v3465 = vmul.f32 %v3443, %v3456
      %v3466 = vmul.f32 %v3451, %v3460
      %v3467 = vpack.c.bf16 %v3465, %v3463
      %v3468 = vpack.c.bf16 %v3466, %v3464
      %3469 = vst [vmem:[#allocation2 + $0x240] sm:$0xff] %v3467
      %3470 = vst [vmem:[#allocation2 + $0x248] sm:$0xff] %v3468
      %v3471 = vld [vmem:[%s1744] ss:$8 sm:$0x3]
      %3472 = vrot.lane.b32.xlu0 %v539, 97
      %v3473 = vpop.permute.xlu0 %3472
      %3474 = vrot.lane.b32.xlu0 %v540, 97
      %v3475 = vpop.permute.xlu0 %3474
      %3476 = vrot.lane.b32.xlu0 %v541, 97
      %v3477 = vpop.permute.xlu0 %3476
      %3478 = vrot.lane.b32.xlu0 %v542, 97
      %v3479 = vpop.permute.xlu0 %3478
      %v3480 = vsel %vm1754, %v3473, %v3475
      %v3481 = vsel %vm1754, %v3477, %v3479
      %v3488 = vsel %vm1754, %v3475, %v3473
      %v3489 = vsel %vm1754, %v3479, %v3477
      %v3491 = vlaneseq
      %v3492 = vshrl.u32 %v3491, 7
      %v3493 = vsub.s32 0, %v3492
      %v3494 = vrot.slane %v3471, %v3493
      %v3495 = vlaneseq
      %v3496 = vshrl.u32 %v3495, 7
      %v3497 = vsub.s32 1, %v3496
      %v3498 = vrot.slane %v3471, %v3497
      %v3501 = vmul.f32 %v3480, %v3494
      %v3502 = vmul.f32 %v3488, %v3498
      %v3503 = vmul.f32 %v3481, %v3494
      %v3504 = vmul.f32 %v3489, %v3498
      %v3505 = vpack.c.bf16 %v3503, %v3501
      %v3506 = vpack.c.bf16 %v3504, %v3502
      %3507 = vst [vmem:[#allocation2 + $0x250] sm:$0xff] %v3505
      %3508 = vst [vmem:[#allocation2 + $0x258] sm:$0xff] %v3506
      %v3509 = vld [vmem:[%s1784] ss:$8 sm:$0x3]
      %3510 = vrot.lane.b32.xlu0 %v539, 96
      %v3511 = vpop.permute.xlu0 %3510
      %3512 = vrot.lane.b32.xlu0 %v540, 96
      %v3513 = vpop.permute.xlu0 %3512
      %3514 = vrot.lane.b32.xlu0 %v541, 96
      %v3515 = vpop.permute.xlu0 %3514
      %3516 = vrot.lane.b32.xlu0 %v542, 96
      %v3517 = vpop.permute.xlu0 %3516
      %v3518 = vsel %vm1794, %v3511, %v3513
      %v3519 = vsel %vm1794, %v3515, %v3517
      %v3526 = vsel %vm1794, %v3513, %v3511
      %v3527 = vsel %vm1794, %v3517, %v3515
      %v3529 = vlaneseq
      %v3530 = vshrl.u32 %v3529, 7
      %v3531 = vsub.s32 0, %v3530
      %v3532 = vrot.slane %v3509, %v3531
      %v3533 = vlaneseq
      %v3534 = vshrl.u32 %v3533, 7
      %v3535 = vsub.s32 1, %v3534
      %v3536 = vrot.slane %v3509, %v3535
      %v3539 = vmul.f32 %v3518, %v3532
      %v3540 = vmul.f32 %v3526, %v3536
      %v3541 = vmul.f32 %v3519, %v3532
      %v3542 = vmul.f32 %v3527, %v3536
      %v3543 = vpack.c.bf16 %v3541, %v3539
      %v3544 = vpack.c.bf16 %v3542, %v3540
      %3545 = vst [vmem:[#allocation2 + $0x260] sm:$0xff] %v3543
      %3546 = vst [vmem:[#allocation2 + $0x268] sm:$0xff] %v3544
      %v3547 = vld [vmem:[%s1824] ss:$8 sm:$0x3]
      %3548 = vrot.lane.b32.xlu0 %v539, 95
      %v3549 = vpop.permute.xlu0 %3548
      %3550 = vrot.lane.b32.xlu0 %v540, 95
      %v3551 = vpop.permute.xlu0 %3550
      %3552 = vrot.lane.b32.xlu0 %v541, 95
      %v3553 = vpop.permute.xlu0 %3552
      %3554 = vrot.lane.b32.xlu0 %v542, 95
      %v3555 = vpop.permute.xlu0 %3554
      %v3556 = vsel %vm1834, %v3549, %v3551
      %v3557 = vsel %vm1834, %v3553, %v3555
      %v3564 = vsel %vm1834, %v3551, %v3549
      %v3565 = vsel %vm1834, %v3555, %v3553
      %v3567 = vlaneseq
      %v3568 = vshrl.u32 %v3567, 7
      %v3569 = vsub.s32 0, %v3568
      %v3570 = vrot.slane %v3547, %v3569
      %v3571 = vlaneseq
      %v3572 = vshrl.u32 %v3571, 7
      %v3573 = vsub.s32 1, %v3572
      %v3574 = vrot.slane %v3547, %v3573
      %v3577 = vmul.f32 %v3556, %v3570
      %v3578 = vmul.f32 %v3564, %v3574
      %v3579 = vmul.f32 %v3557, %v3570
      %v3580 = vmul.f32 %v3565, %v3574
      %v3581 = vpack.c.bf16 %v3579, %v3577
      %v3582 = vpack.c.bf16 %v3580, %v3578
      %3583 = vst [vmem:[#allocation2 + $0x270] sm:$0xff] %v3581
      %3584 = vst [vmem:[#allocation2 + $0x278] sm:$0xff] %v3582
      %v3585 = vld [vmem:[%s1864] ss:$8 sm:$0x3]
      %3586 = vrot.lane.b32.xlu0 %v539, 94
      %v3587 = vpop.permute.xlu0 %3586
      %3588 = vrot.lane.b32.xlu0 %v540, 94
      %v3589 = vpop.permute.xlu0 %3588
      %3590 = vrot.lane.b32.xlu0 %v541, 94
      %v3591 = vpop.permute.xlu0 %3590
      %3592 = vrot.lane.b32.xlu0 %v542, 94
      %v3593 = vpop.permute.xlu0 %3592
      %v3594 = vsel %vm1874, %v3587, %v3589
      %v3595 = vsel %vm1874, %v3591, %v3593
      %v3602 = vsel %vm1874, %v3589, %v3587
      %v3603 = vsel %vm1874, %v3593, %v3591
      %v3605 = vlaneseq
      %v3606 = vshrl.u32 %v3605, 7
      %v3607 = vsub.s32 0, %v3606
      %v3608 = vrot.slane %v3585, %v3607
      %v3609 = vlaneseq
      %v3610 = vshrl.u32 %v3609, 7
      %v3611 = vsub.s32 1, %v3610
      %v3612 = vrot.slane %v3585, %v3611
      %v3615 = vmul.f32 %v3594, %v3608
      %v3616 = vmul.f32 %v3602, %v3612
      %v3617 = vmul.f32 %v3595, %v3608
      %v3618 = vmul.f32 %v3603, %v3612
      %v3619 = vpack.c.bf16 %v3617, %v3615
      %v3620 = vpack.c.bf16 %v3618, %v3616
      %3621 = vst [vmem:[#allocation2 + $0x280] sm:$0xff] %v3619
      %3622 = vst [vmem:[#allocation2 + $0x288] sm:$0xff] %v3620
      %s3623 = scalar_lea.vmem %s1, 81
      %v3624 = vld [vmem:[%s3623] ss:$8 sm:$0x3]
      %3625 = vrot.lane.b32.xlu0 %v539, 93
      %v3626 = vpop.permute.xlu0 %3625
      %3627 = vrot.lane.b32.xlu0 %v540, 93
      %v3628 = vpop.permute.xlu0 %3627
      %3629 = vrot.lane.b32.xlu0 %v541, 93
      %v3630 = vpop.permute.xlu0 %3629
      %3631 = vrot.lane.b32.xlu0 %v542, 93
      %v3632 = vpop.permute.xlu0 %3631
      %vm3633 = vcmask 760832
      %v3634 = vsel %vm3633, %v3626, %v3628
      %v3635 = vsel %vm3633, %v3630, %v3632
      %v3642 = vsel %vm3633, %v3628, %v3626
      %v3643 = vsel %vm3633, %v3632, %v3630
      %v3645 = vlaneseq
      %v3646 = vshrl.u32 %v3645, 7
      %v3647 = vsub.s32 0, %v3646
      %v3648 = vrot.slane %v3624, %v3647
      %v3649 = vlaneseq
      %v3650 = vshrl.u32 %v3649, 7
      %v3651 = vsub.s32 1, %v3650
      %v3652 = vrot.slane %v3624, %v3651
      %v3655 = vmul.f32 %v3634, %v3648
      %v3656 = vmul.f32 %v3642, %v3652
      %v3657 = vmul.f32 %v3635, %v3648
      %v3658 = vmul.f32 %v3643, %v3652
      %v3659 = vpack.c.bf16 %v3657, %v3655
      %v3660 = vpack.c.bf16 %v3658, %v3656
      %3661 = vst [vmem:[#allocation2 + $0x290] sm:$0xff] %v3659
      %3662 = vst [vmem:[#allocation2 + $0x298] sm:$0xff] %v3660
      %s3663 = scalar_lea.vmem %s1, 82
      %v3664 = vld [vmem:[%s3663] ss:$8 sm:$0x3]
      %3665 = vrot.lane.b32.xlu0 %v539, 83
      %v3666 = vpop.permute.xlu0 %3665
      %3667 = vrot.lane.b32.xlu0 %v540, 83
      %v3668 = vpop.permute.xlu0 %3667
      %3669 = vrot.lane.b32.xlu0 %v541, 83
      %v3670 = vpop.permute.xlu0 %3669
      %3671 = vrot.lane.b32.xlu0 %v542, 83
      %v3672 = vpop.permute.xlu0 %3671
      %vm3673 = vcmask 678912
      %v3674 = vsel %vm3673, %v3666, %v3668
      %v3675 = vsel %vm3673, %v3670, %v3672
      %v3682 = vsel %vm3673, %v3668, %v3666
      %v3683 = vsel %vm3673, %v3672, %v3670
      %v3685 = vlaneseq
      %v3686 = vshrl.u32 %v3685, 7
      %v3687 = vsub.s32 0, %v3686
      %v3688 = vrot.slane %v3664, %v3687
      %v3689 = vlaneseq
      %v3690 = vshrl.u32 %v3689, 7
      %v3691 = vsub.s32 1, %v3690
      %v3692 = vrot.slane %v3664, %v3691
      %v3695 = vmul.f32 %v3674, %v3688
      %v3696 = vmul.f32 %v3682, %v3692
      %v3697 = vmul.f32 %v3675, %v3688
      %v3698 = vmul.f32 %v3683, %v3692
      %v3699 = vpack.c.bf16 %v3697, %v3695
      %v3700 = vpack.c.bf16 %v3698, %v3696
      %3701 = vst [vmem:[#allocation2 + $0x2a0] sm:$0xff] %v3699
      %3702 = vst [vmem:[#allocation2 + $0x2a8] sm:$0xff] %v3700
      %s3703 = scalar_lea.vmem %s1, 83
      %v3704 = vld [vmem:[%s3703] ss:$8 sm:$0x3]
      %3705 = vrot.lane.b32.xlu0 %v539, 82
      %v3706 = vpop.permute.xlu0 %3705
      %3707 = vrot.lane.b32.xlu0 %v540, 82
      %v3708 = vpop.permute.xlu0 %3707
      %3709 = vrot.lane.b32.xlu0 %v541, 82
      %v3710 = vpop.permute.xlu0 %3709
      %3711 = vrot.lane.b32.xlu0 %v542, 82
      %v3712 = vpop.permute.xlu0 %3711
      %vm3713 = vcmask 670720
      %v3714 = vsel %vm3713, %v3706, %v3708
      %v3715 = vsel %vm3713, %v3710, %v3712
      %v3722 = vsel %vm3713, %v3708, %v3706
      %v3723 = vsel %vm3713, %v3712, %v3710
      %v3725 = vlaneseq
      %v3726 = vshrl.u32 %v3725, 7
      %v3727 = vsub.s32 0, %v3726
      %v3728 = vrot.slane %v3704, %v3727
      %v3729 = vlaneseq
      %v3730 = vshrl.u32 %v3729, 7
      %v3731 = vsub.s32 1, %v3730
      %v3732 = vrot.slane %v3704, %v3731
      %v3735 = vmul.f32 %v3714, %v3728
      %v3736 = vmul.f32 %v3722, %v3732
      %v3737 = vmul.f32 %v3715, %v3728
      %v3738 = vmul.f32 %v3723, %v3732
      %v3739 = vpack.c.bf16 %v3737, %v3735
      %v3740 = vpack.c.bf16 %v3738, %v3736
      %3741 = vst [vmem:[#allocation2 + $0x2b0] sm:$0xff] %v3739
      %3742 = vst [vmem:[#allocation2 + $0x2b8] sm:$0xff] %v3740
      %s3743 = scalar_lea.vmem %s1, 84
      %v3744 = vld [vmem:[%s3743] ss:$8 sm:$0x3]
      %3745 = vrot.lane.b32.xlu0 %v539, 81
      %v3746 = vpop.permute.xlu0 %3745
      %3747 = vrot.lane.b32.xlu0 %v540, 81
      %v3748 = vpop.permute.xlu0 %3747
      %3749 = vrot.lane.b32.xlu0 %v541, 81
      %v3750 = vpop.permute.xlu0 %3749
      %3751 = vrot.lane.b32.xlu0 %v542, 81
      %v3752 = vpop.permute.xlu0 %3751
      %vm3753 = vcmask 662528
      %v3754 = vsel %vm3753, %v3746, %v3748
      %v3755 = vsel %vm3753, %v3750, %v3752
      %v3762 = vsel %vm3753, %v3748, %v3746
      %v3763 = vsel %vm3753, %v3752, %v3750
      %v3765 = vlaneseq
      %v3766 = vshrl.u32 %v3765, 7
      %v3767 = vsub.s32 0, %v3766
      %v3768 = vrot.slane %v3744, %v3767
      %v3769 = vlaneseq
      %v3770 = vshrl.u32 %v3769, 7
      %v3771 = vsub.s32 1, %v3770
      %v3772 = vrot.slane %v3744, %v3771
      %v3775 = vmul.f32 %v3754, %v3768
      %v3776 = vmul.f32 %v3762, %v3772
      %v3777 = vmul.f32 %v3755, %v3768
      %v3778 = vmul.f32 %v3763, %v3772
      %v3779 = vpack.c.bf16 %v3777, %v3775
      %v3780 = vpack.c.bf16 %v3778, %v3776
      %3781 = vst [vmem:[#allocation2 + $0x2c0] sm:$0xff] %v3779
      %3782 = vst [vmem:[#allocation2 + $0x2c8] sm:$0xff] %v3780
      %s3783 = scalar_lea.vmem %s1, 85
      %v3784 = vld [vmem:[%s3783] ss:$8 sm:$0x3]
      %3785 = vrot.lane.b32.xlu0 %v539, 80
      %v3786 = vpop.permute.xlu0 %3785
      %3787 = vrot.lane.b32.xlu0 %v540, 80
      %v3788 = vpop.permute.xlu0 %3787
      %3789 = vrot.lane.b32.xlu0 %v541, 80
      %v3790 = vpop.permute.xlu0 %3789
      %3791 = vrot.lane.b32.xlu0 %v542, 80
      %v3792 = vpop.permute.xlu0 %3791
      %vm3793 = vcmask 654336
      %v3794 = vsel %vm3793, %v3786, %v3788
      %v3795 = vsel %vm3793, %v3790, %v3792
      %v3802 = vsel %vm3793, %v3788, %v3786
      %v3803 = vsel %vm3793, %v3792, %v3790
      %v3805 = vlaneseq
      %v3806 = vshrl.u32 %v3805, 7
      %v3807 = vsub.s32 0, %v3806
      %v3808 = vrot.slane %v3784, %v3807
      %v3809 = vlaneseq
      %v3810 = vshrl.u32 %v3809, 7
      %v3811 = vsub.s32 1, %v3810
      %v3812 = vrot.slane %v3784, %v3811
      %v3815 = vmul.f32 %v3794, %v3808
      %v3816 = vmul.f32 %v3802, %v3812
      %v3817 = vmul.f32 %v3795, %v3808
      %v3818 = vmul.f32 %v3803, %v3812
      %v3819 = vpack.c.bf16 %v3817, %v3815
      %v3820 = vpack.c.bf16 %v3818, %v3816
      %3821 = vst [vmem:[#allocation2 + $0x2d0] sm:$0xff] %v3819
      %3822 = vst [vmem:[#allocation2 + $0x2d8] sm:$0xff] %v3820
      %s3823 = scalar_lea.vmem %s1, 86
      %v3824 = vld [vmem:[%s3823] ss:$8 sm:$0x3]
      %3825 = vrot.lane.b32.xlu0 %v539, 79
      %v3826 = vpop.permute.xlu0 %3825
      %3827 = vrot.lane.b32.xlu0 %v540, 79
      %v3828 = vpop.permute.xlu0 %3827
      %3829 = vrot.lane.b32.xlu0 %v541, 79
      %v3830 = vpop.permute.xlu0 %3829
      %3831 = vrot.lane.b32.xlu0 %v542, 79
      %v3832 = vpop.permute.xlu0 %3831
      %vm3833 = vcmask 646144
      %v3834 = vsel %vm3833, %v3826, %v3828
      %v3835 = vsel %vm3833, %v3830, %v3832
      %v3842 = vsel %vm3833, %v3828, %v3826
      %v3843 = vsel %vm3833, %v3832, %v3830
      %v3845 = vlaneseq
      %v3846 = vshrl.u32 %v3845, 7
      %v3847 = vsub.s32 0, %v3846
      %v3848 = vrot.slane %v3824, %v3847
      %v3849 = vlaneseq
      %v3850 = vshrl.u32 %v3849, 7
      %v3851 = vsub.s32 1, %v3850
      %v3852 = vrot.slane %v3824, %v3851
      %v3855 = vmul.f32 %v3834, %v3848
      %v3856 = vmul.f32 %v3842, %v3852
      %v3857 = vmul.f32 %v3835, %v3848
      %v3858 = vmul.f32 %v3843, %v3852
      %v3859 = vpack.c.bf16 %v3857, %v3855
      %v3860 = vpack.c.bf16 %v3858, %v3856
      %3861 = vst [vmem:[#allocation2 + $0x2e0] sm:$0xff] %v3859
      %3862 = vst [vmem:[#allocation2 + $0x2e8] sm:$0xff] %v3860
      %s3863 = scalar_lea.vmem %s1, 87
      %v3864 = vld [vmem:[%s3863] ss:$8 sm:$0x3]
      %3865 = vrot.lane.b32.xlu0 %v539, 78
      %v3866 = vpop.permute.xlu0 %3865
      %3867 = vrot.lane.b32.xlu0 %v540, 78
      %v3868 = vpop.permute.xlu0 %3867
      %3869 = vrot.lane.b32.xlu0 %v541, 78
      %v3870 = vpop.permute.xlu0 %3869
      %3871 = vrot.lane.b32.xlu0 %v542, 78
      %v3872 = vpop.permute.xlu0 %3871
      %vm3873 = vcmask 637952
      %v3874 = vsel %vm3873, %v3866, %v3868
      %v3875 = vsel %vm3873, %v3870, %v3872
      %v3882 = vsel %vm3873, %v3868, %v3866
      %v3883 = vsel %vm3873, %v3872, %v3870
      %v3885 = vlaneseq
      %v3886 = vshrl.u32 %v3885, 7
      %v3887 = vsub.s32 0, %v3886
      %v3888 = vrot.slane %v3864, %v3887
      %v3889 = vlaneseq
      %v3890 = vshrl.u32 %v3889, 7
      %v3891 = vsub.s32 1, %v3890
      %v3892 = vrot.slane %v3864, %v3891
      %v3895 = vmul.f32 %v3874, %v3888
      %v3896 = vmul.f32 %v3882, %v3892
      %v3897 = vmul.f32 %v3875, %v3888
      %v3898 = vmul.f32 %v3883, %v3892
      %v3899 = vpack.c.bf16 %v3897, %v3895
      %v3900 = vpack.c.bf16 %v3898, %v3896
      %3901 = vst [vmem:[#allocation2 + $0x2f0] sm:$0xff] %v3899
      %3902 = vst [vmem:[#allocation2 + $0x2f8] sm:$0xff] %v3900
      %s3903 = scalar_lea.vmem %s1, 96
      %v3904 = vld [vmem:[%s3903] ss:$8 sm:$0x3]
      %3905 = vrot.lane.b32.xlu0 %v539, 77
      %v3906 = vpop.permute.xlu0 %3905
      %3907 = vrot.lane.b32.xlu0 %v540, 77
      %v3908 = vpop.permute.xlu0 %3907
      %3909 = vrot.lane.b32.xlu0 %v541, 77
      %v3910 = vpop.permute.xlu0 %3909
      %3911 = vrot.lane.b32.xlu0 %v542, 77
      %v3912 = vpop.permute.xlu0 %3911
      %vm3913 = vcmask 629760
      %v3914 = vsel %vm3913, %v3906, %v3908
      %v3915 = vsel %vm3913, %v3910, %v3912
      %v3922 = vsel %vm3913, %v3908, %v3906
      %v3923 = vsel %vm3913, %v3912, %v3910
      %v3925 = vlaneseq
      %v3926 = vshrl.u32 %v3925, 7
      %v3927 = vsub.s32 0, %v3926
      %v3928 = vrot.slane %v3904, %v3927
      %v3929 = vlaneseq
      %v3930 = vshrl.u32 %v3929, 7
      %v3931 = vsub.s32 1, %v3930
      %v3932 = vrot.slane %v3904, %v3931
      %v3935 = vmul.f32 %v3914, %v3928
      %v3936 = vmul.f32 %v3922, %v3932
      %v3937 = vmul.f32 %v3915, %v3928
      %v3938 = vmul.f32 %v3923, %v3932
      %v3939 = vpack.c.bf16 %v3937, %v3935
      %v3940 = vpack.c.bf16 %v3938, %v3936
      %3941 = vst [vmem:[#allocation2 + $0x300] sm:$0xff] %v3939
      %3942 = vst [vmem:[#allocation2 + $0x308] sm:$0xff] %v3940
      %v3943 = vld [vmem:[#allocation2] sm:$0xff]
      %v3944 = vld [vmem:[#allocation2 + $0x8] sm:$0xff]
      %v3945 = vld [vmem:[#allocation2 + $0x10] sm:$0xff]
      %v3946 = vld [vmem:[#allocation2 + $0x18] sm:$0xff]
      %v3947 = vld [vmem:[#allocation2 + $0x20] sm:$0xff]
      %v3948 = vld [vmem:[#allocation2 + $0x28] sm:$0xff]
      %v3949 = vld [vmem:[#allocation2 + $0x30] sm:$0xff]
      %v3950 = vld [vmem:[#allocation2 + $0x38] sm:$0xff]
      %v3951 = vld [vmem:[#allocation2 + $0x40] sm:$0xff]
      %v3952 = vld [vmem:[#allocation2 + $0x48] sm:$0xff]
      %v3953 = vld [vmem:[#allocation2 + $0x50] sm:$0xff]
      %v3954 = vld [vmem:[#allocation2 + $0x58] sm:$0xff]
      %v3955 = vld [vmem:[#allocation2 + $0x60] sm:$0xff]
      %v3956 = vld [vmem:[#allocation2 + $0x68] sm:$0xff]
      %v3957 = vld [vmem:[#allocation2 + $0x70] sm:$0xff]
      %v3958 = vld [vmem:[#allocation2 + $0x78] sm:$0xff]
      %v3959 = vld [vmem:[#allocation2 + $0x80] sm:$0xff]
      %v3960 = vld [vmem:[#allocation2 + $0x88] sm:$0xff]
      %v3961 = vld [vmem:[#allocation2 + $0x90] sm:$0xff]
      %v3962 = vld [vmem:[#allocation2 + $0x98] sm:$0xff]
      %v3963 = vld [vmem:[#allocation2 + $0xa0] sm:$0xff]
      %v3964 = vld [vmem:[#allocation2 + $0xa8] sm:$0xff]
      %v3965 = vld [vmem:[#allocation2 + $0xb0] sm:$0xff]
      %v3966 = vld [vmem:[#allocation2 + $0xb8] sm:$0xff]
      %v3967 = vld [vmem:[#allocation2 + $0xc0] sm:$0xff]
      %v3968 = vld [vmem:[#allocation2 + $0xc8] sm:$0xff]
      %v3969 = vld [vmem:[#allocation2 + $0xd0] sm:$0xff]
      %v3970 = vld [vmem:[#allocation2 + $0xd8] sm:$0xff]
      %v3971 = vld [vmem:[#allocation2 + $0xe0] sm:$0xff]
      %v3972 = vld [vmem:[#allocation2 + $0xe8] sm:$0xff]
      %v3973 = vld [vmem:[#allocation2 + $0xf0] sm:$0xff]
      %v3974 = vld [vmem:[#allocation2 + $0xf8] sm:$0xff]
      %v3975 = vld [vmem:[#allocation2 + $0x100] sm:$0xff]
      %v3976 = vld [vmem:[#allocation2 + $0x108] sm:$0xff]
      %v3977 = vld [vmem:[#allocation2 + $0x110] sm:$0xff]
      %v3978 = vld [vmem:[#allocation2 + $0x118] sm:$0xff]
      %v3979 = vld [vmem:[#allocation2 + $0x120] sm:$0xff]
      %v3980 = vld [vmem:[#allocation2 + $0x128] sm:$0xff]
      %v3981 = vld [vmem:[#allocation2 + $0x130] sm:$0xff]
      %v3982 = vld [vmem:[#allocation2 + $0x138] sm:$0xff]
      %v3983 = vld [vmem:[#allocation2 + $0x140] sm:$0xff]
      %v3984 = vld [vmem:[#allocation2 + $0x148] sm:$0xff]
      %v3985 = vld [vmem:[#allocation2 + $0x150] sm:$0xff]
      %v3986 = vld [vmem:[#allocation2 + $0x158] sm:$0xff]
      %v3987 = vld [vmem:[#allocation2 + $0x160] sm:$0xff]
      %v3988 = vld [vmem:[#allocation2 + $0x168] sm:$0xff]
      %v3989 = vld [vmem:[#allocation2 + $0x170] sm:$0xff]
      %v3990 = vld [vmem:[#allocation2 + $0x178] sm:$0xff]
      %v3991 = vld [vmem:[#allocation2 + $0x180] sm:$0xff]
      %v3992 = vld [vmem:[#allocation2 + $0x188] sm:$0xff]
      %v3993 = vld [vmem:[#allocation2 + $0x190] sm:$0xff]
      %v3994 = vld [vmem:[#allocation2 + $0x198] sm:$0xff]
      %v3995 = vld [vmem:[#allocation2 + $0x1a0] sm:$0xff]
      %v3996 = vld [vmem:[#allocation2 + $0x1a8] sm:$0xff]
      %v3997 = vld [vmem:[#allocation2 + $0x1b0] sm:$0xff]
      %v3998 = vld [vmem:[#allocation2 + $0x1b8] sm:$0xff]
      %v3999 = vld [vmem:[#allocation2 + $0x1c0] sm:$0xff]
      %v4000 = vld [vmem:[#allocation2 + $0x1c8] sm:$0xff]
      %v4001 = vld [vmem:[#allocation2 + $0x1d0] sm:$0xff]
      %v4002 = vld [vmem:[#allocation2 + $0x1d8] sm:$0xff]
      %v4003 = vld [vmem:[#allocation2 + $0x1e0] sm:$0xff]
      %v4004 = vld [vmem:[#allocation2 + $0x1e8] sm:$0xff]
      %v4005 = vld [vmem:[#allocation2 + $0x1f0] sm:$0xff]
      %v4006 = vld [vmem:[#allocation2 + $0x1f8] sm:$0xff]
      %v4007 = vld [vmem:[#allocation2 + $0x200] sm:$0xff]
      %v4008 = vld [vmem:[#allocation2 + $0x208] sm:$0xff]
      %v4009 = vld [vmem:[#allocation2 + $0x210] sm:$0xff]
      %v4010 = vld [vmem:[#allocation2 + $0x218] sm:$0xff]
      %v4011 = vld [vmem:[#allocation2 + $0x220] sm:$0xff]
      %v4012 = vld [vmem:[#allocation2 + $0x228] sm:$0xff]
      %v4013 = vld [vmem:[#allocation2 + $0x230] sm:$0xff]
      %v4014 = vld [vmem:[#allocation2 + $0x238] sm:$0xff]
      %v4015 = vld [vmem:[#allocation2 + $0x240] sm:$0xff]
      %v4016 = vld [vmem:[#allocation2 + $0x248] sm:$0xff]
      %v4017 = vld [vmem:[#allocation2 + $0x250] sm:$0xff]
      %v4018 = vld [vmem:[#allocation2 + $0x258] sm:$0xff]
      %v4019 = vld [vmem:[#allocation2 + $0x260] sm:$0xff]
      %v4020 = vld [vmem:[#allocation2 + $0x268] sm:$0xff]
      %v4021 = vld [vmem:[#allocation2 + $0x270] sm:$0xff]
      %v4022 = vld [vmem:[#allocation2 + $0x278] sm:$0xff]
      %v4023 = vld [vmem:[#allocation2 + $0x280] sm:$0xff]
      %v4024 = vld [vmem:[#allocation2 + $0x288] sm:$0xff]
      %v4025 = vld [vmem:[#allocation2 + $0x290] sm:$0xff]
      %v4026 = vld [vmem:[#allocation2 + $0x298] sm:$0xff]
      %v4027 = vld [vmem:[#allocation2 + $0x2a0] sm:$0xff]
      %v4028 = vld [vmem:[#allocation2 + $0x2a8] sm:$0xff]
      %v4029 = vld [vmem:[#allocation2 + $0x2b0] sm:$0xff]
      %v4030 = vld [vmem:[#allocation2 + $0x2b8] sm:$0xff]
      %v4031 = vld [vmem:[#allocation2 + $0x2c0] sm:$0xff]
      %v4032 = vld [vmem:[#allocation2 + $0x2c8] sm:$0xff]
      %v4033 = vld [vmem:[#allocation2 + $0x2d0] sm:$0xff]
      %v4034 = vld [vmem:[#allocation2 + $0x2d8] sm:$0xff]
      %v4035 = vld [vmem:[#allocation2 + $0x2e0] sm:$0xff]
      %v4036 = vld [vmem:[#allocation2 + $0x2e8] sm:$0xff]
      %v4037 = vld [vmem:[#allocation2 + $0x2f0] sm:$0xff]
      %v4038 = vld [vmem:[#allocation2 + $0x2f8] sm:$0xff]
      %v4039 = vld [vmem:[#allocation2 + $0x300] sm:$0xff]
      %v4040 = vld [vmem:[#allocation2 + $0x308] sm:$0xff]
      %v4041 = vld [vmem:[%s8] sm:$0xff]
      %v4042 = vld [vmem:[%s8 + $0x8] sm:$0xff]
      %v4043 = vld [vmem:[%s8 + $0x10] sm:$0xff]
      %v4044 = vld [vmem:[%s8 + $0x18] sm:$0xf]
      %v4045 = vld [vmem:[%s9] sm:$0xff]
      %4047 = vset.pattern.permute.xlu0 0
      %4048 = vperm.xlu0 %4047, %v4045
      %v4049 = vpop.permute.xlu0 %4048
      %v4055 = vunpack.c.l.b16 %v4041
      %v4056 = vunpack.c.h.b16 %v4041
      %v4057 = vunpack.c.l.b16 %v4042
      %v4058 = vunpack.c.h.b16 %v4042
      %v4059 = vunpack.c.l.b16 %v4043
      %v4060 = vunpack.c.h.b16 %v4043
      %v4061 = vunpack.c.l.b16 %v4044
      %v4062 = vpack.c.b16 %v4055, %v4055
      %v4063 = vpack.c.b16 %v4056, %v4056
      %v4064 = vpack.c.b16 %v4057, %v4057
      %v4065 = vpack.c.b16 %v4058, %v4058
      %v4066 = vpack.c.b16 %v4059, %v4059
      %v4067 = vpack.c.b16 %v4060, %v4060
      %v4068 = vpack.c.b16 %v4061, %v4061
      %v4076 = vsel %vm601, %v4068, 0
      %4078 = vmatprep.subr.bf16.mxu0 %v3944
      %4079 = vmatpush1.bf16.msra.mxu0 %v3943
      %4080 = vmatprep.subr.bf16.mxu0 %v3946
      %4081 = vmatpush1.bf16.msra.mxu0 %v3945
      %4082 = vmatprep.subr.bf16.mxu0 %v3948
      %4083 = vmatpush1.bf16.msra.mxu0 %v3947
      %4084 = vmatprep.subr.bf16.mxu0 %v3950
      %4085 = vmatpush1.bf16.msra.mxu0 %v3949
      %4086 = vmatprep.subr.bf16.mxu0 %v3952
      %4087 = vmatpush1.bf16.msra.mxu0 %v3951
      %4088 = vmatprep.subr.bf16.mxu0 %v3954
      %4089 = vmatpush1.bf16.msra.mxu0 %v3953
      %4090 = vmatprep.subr.bf16.mxu0 %v3956
      %4091 = vmatpush1.bf16.msra.mxu0 %v3955
      %4092 = vmatprep.subr.bf16.mxu0 %v3958
      %4093 = vmatpush1.bf16.msra.mxu0 %v3957
      %4094 = vmatprep.subr.bf16.mxu0 %v3960
      %4095 = vmatpush1.bf16.msra.mxu0 %v3959
      %4096 = vmatprep.subr.bf16.mxu0 %v3962
      %4097 = vmatpush1.bf16.msra.mxu0 %v3961
      %4098 = vmatprep.subr.bf16.mxu0 %v3964
      %4099 = vmatpush1.bf16.msra.mxu0 %v3963
      %4100 = vmatprep.subr.bf16.mxu0 %v3966
      %4101 = vmatpush1.bf16.msra.mxu0 %v3965
      %4102 = vmatprep.subr.bf16.mxu0 %v3968
      %4103 = vmatpush1.bf16.msra.mxu0 %v3967
      %4104 = vmatprep.subr.bf16.mxu0 %v3970
      %4105 = vmatpush1.bf16.msra.mxu0 %v3969
      %4106 = vmatprep.subr.bf16.mxu0 %v3972
      %4107 = vmatpush1.bf16.msra.mxu0 %v3971
      %4108 = vmatprep.subr.bf16.mxu0 %v3974
      %4109 = vmatpush1.bf16.msra.mxu0 %v3973
      %4110 = vmatprep.mubr.bf16.mxu0 %v4063
      %4111 = vmatmul.mubr.bf16.gmra.mrb[0].mxu0 %v4062
      %v4112 = vpop.f32.mrb[0].mxu0
      %v4113 = vadd.f32 %v4049, %v4112
      %v4114 = vpop.f32.mrb[0].mxu0
      %v4115 = vadd.f32 %v4049, %v4114
      %v4116 = vpop.f32.mrb[0].mxu0
      %v4117 = vpop.f32.mrb[0].mxu0
      %4118 = vdwg.mxu0
      %4119 = vmatprep.subr.bf16.mxu0 %v3976
      %4120 = vmatpush1.bf16.msra.mxu0 %v3975
      %4121 = vmatprep.subr.bf16.mxu0 %v3978
      %4122 = vmatpush1.bf16.msra.mxu0 %v3977
      %4123 = vmatprep.subr.bf16.mxu0 %v3980
      %4124 = vmatpush1.bf16.msra.mxu0 %v3979
      %4125 = vmatprep.subr.bf16.mxu0 %v3982
      %4126 = vmatpush1.bf16.msra.mxu0 %v3981
      %4127 = vmatprep.subr.bf16.mxu0 %v3984
      %4128 = vmatpush1.bf16.msra.mxu0 %v3983
      %4129 = vmatprep.subr.bf16.mxu0 %v3986
      %4130 = vmatpush1.bf16.msra.mxu0 %v3985
      %4131 = vmatprep.subr.bf16.mxu0 %v3988
      %4132 = vmatpush1.bf16.msra.mxu0 %v3987
      %4133 = vmatprep.subr.bf16.mxu0 %v3990
      %4134 = vmatpush1.bf16.msra.mxu0 %v3989
      %4135 = vmatprep.subr.bf16.mxu0 %v3992
      %4136 = vmatpush1.bf16.msra.mxu0 %v3991
      %4137 = vmatprep.subr.bf16.mxu0 %v3994
      %4138 = vmatpush1.bf16.msra.mxu0 %v3993
      %4139 = vmatprep.subr.bf16.mxu0 %v3996
      %4140 = vmatpush1.bf16.msra.mxu0 %v3995
      %4141 = vmatprep.subr.bf16.mxu0 %v3998
      %4142 = vmatpush1.bf16.msra.mxu0 %v3997
      %4143 = vmatprep.subr.bf16.mxu0 %v4000
      %4144 = vmatpush1.bf16.msra.mxu0 %v3999
      %4145 = vmatprep.subr.bf16.mxu0 %v4002
      %4146 = vmatpush1.bf16.msra.mxu0 %v4001
      %4147 = vmatprep.subr.bf16.mxu0 %v4004
      %4148 = vmatpush1.bf16.msra.mxu0 %v4003
      %4149 = vmatprep.subr.bf16.mxu0 %v4006
      %4150 = vmatpush1.bf16.msra.mxu0 %v4005
      %4151 = vmatprep.mubr.bf16.mxu0 %v4065
      %4152 = vmatmul.mubr.bf16.gmra.mrb[0].mxu0 %v4064
      %v4153 = vpop.f32.mrb[0].mxu0
      %v4154 = vadd.f32 %v4113, %v4153
      %v4155 = vpop.f32.mrb[0].mxu0
      %v4156 = vadd.f32 %v4115, %v4155
      %v4157 = vpop.f32.mrb[0].mxu0
      %v4158 = vpop.f32.mrb[0].mxu0
      %4159 = vdwg.mxu0
      %4160 = vmatprep.subr.bf16.mxu0 %v4008
      %4161 = vmatpush1.bf16.msra.mxu0 %v4007
      %4162 = vmatprep.subr.bf16.mxu0 %v4010
      %4163 = vmatpush1.bf16.msra.mxu0 %v4009
      %4164 = vmatprep.subr.bf16.mxu0 %v4012
      %4165 = vmatpush1.bf16.msra.mxu0 %v4011
      %4166 = vmatprep.subr.bf16.mxu0 %v4014
      %4167 = vmatpush1.bf16.msra.mxu0 %v4013
      %4168 = vmatprep.subr.bf16.mxu0 %v4016
      %4169 = vmatpush1.bf16.msra.mxu0 %v4015
      %4170 = vmatprep.subr.bf16.mxu0 %v4018
      %4171 = vmatpush1.bf16.msra.mxu0 %v4017
      %4172 = vmatprep.subr.bf16.mxu0 %v4020
      %4173 = vmatpush1.bf16.msra.mxu0 %v4019
      %4174 = vmatprep.subr.bf16.mxu0 %v4022
      %4175 = vmatpush1.bf16.msra.mxu0 %v4021
      %4176 = vmatprep.subr.bf16.mxu0 %v4024
      %4177 = vmatpush1.bf16.msra.mxu0 %v4023
      %4178 = vmatprep.subr.bf16.mxu0 %v4026
      %4179 = vmatpush1.bf16.msra.mxu0 %v4025
      %4180 = vmatprep.subr.bf16.mxu0 %v4028
      %4181 = vmatpush1.bf16.msra.mxu0 %v4027
      %4182 = vmatprep.subr.bf16.mxu0 %v4030
      %4183 = vmatpush1.bf16.msra.mxu0 %v4029
      %4184 = vmatprep.subr.bf16.mxu0 %v4032
      %4185 = vmatpush1.bf16.msra.mxu0 %v4031
      %4186 = vmatprep.subr.bf16.mxu0 %v4034
      %4187 = vmatpush1.bf16.msra.mxu0 %v4033
      %4188 = vmatprep.subr.bf16.mxu0 %v4036
      %4189 = vmatpush1.bf16.msra.mxu0 %v4035
      %4190 = vmatprep.subr.bf16.mxu0 %v4038
      %4191 = vmatpush1.bf16.msra.mxu0 %v4037
      %4192 = vmatprep.mubr.bf16.mxu0 %v4067
      %4193 = vmatmul.mubr.bf16.gmra.mrb[0].mxu0 %v4066
      %v4194 = vpop.f32.mrb[0].mxu0
      %v4195 = vadd.f32 %v4154, %v4194
      %v4196 = vpop.f32.mrb[0].mxu0
      %v4197 = vadd.f32 %v4156, %v4196
      %v4198 = vpop.f32.mrb[0].mxu0
      %v4199 = vpop.f32.mrb[0].mxu0
      %4200 = vdwg.mxu0
      %4201 = vmatprep.subr.bf16.mxu0 %v4040
      %4202 = vmatpush1.bf16.msra.mxu0 %v4039
      %4203 = vmatprep.subr.bf16.mxu0 0
      %4204 = vmatpush1.bf16.msra.mxu0 0
      %4205 = vmatprep.subr.bf16.mxu0 0
      %4206 = vmatpush1.bf16.msra.mxu0 0
      %4207 = vmatprep.subr.bf16.mxu0 0
      %4208 = vmatpush1.bf16.msra.mxu0 0
      %4209 = vmatprep.subr.bf16.mxu0 0
      %4210 = vmatpush1.bf16.msra.mxu0 0
      %4211 = vmatprep.subr.bf16.mxu0 0
      %4212 = vmatpush1.bf16.msra.mxu0 0
      %4213 = vmatprep.subr.bf16.mxu0 0
      %4214 = vmatpush1.bf16.msra.mxu0 0
      %4215 = vmatprep.subr.bf16.mxu0 0
      %4216 = vmatpush1.bf16.msra.mxu0 0
      %4217 = vmatprep.subr.bf16.mxu0 0
      %4218 = vmatpush1.bf16.msra.mxu0 0
      %4219 = vmatprep.subr.bf16.mxu0 0
      %4220 = vmatpush1.bf16.msra.mxu0 0
      %4221 = vmatprep.subr.bf16.mxu0 0
      %4222 = vmatpush1.bf16.msra.mxu0 0
      %4223 = vmatprep.subr.bf16.mxu0 0
      %4224 = vmatpush1.bf16.msra.mxu0 0
      %4225 = vmatprep.subr.bf16.mxu0 0
      %4226 = vmatpush1.bf16.msra.mxu0 0
      %4227 = vmatprep.subr.bf16.mxu0 0
      %4228 = vmatpush1.bf16.msra.mxu0 0
      %4229 = vmatprep.subr.bf16.mxu0 0
      %4230 = vmatpush1.bf16.msra.mxu0 0
      %4231 = vmatprep.subr.bf16.mxu0 0
      %4232 = vmatpush1.bf16.msra.mxu0 0
      %4233 = vmatprep.mubr.bf16.mxu0 0
      %4234 = vmatmul.mubr.bf16.gmra.mrb[0].mxu0 %v4076
      %v4235 = vpop.f32.mrb[0].mxu0
      %v4236 = vadd.f32 %v4195, %v4235
      %v4237 = vpop.f32.mrb[0].mxu0
      %v4238 = vadd.f32 %v4197, %v4237
      %v4239 = vpop.f32.mrb[0].mxu0
      %v4240 = vpop.f32.mrb[0].mxu0
      %4241 = vdwg.mxu0
      %v4242 = vmax.f32 %v4236, 0.0
      %v4243 = vmax.f32 %v4238, 0.0
      %4244 = vst [vmem:[%s359 + $0x30] sm:$0xff] %v4242
      %4245 = vst [vmem:[%s359 + $0x38] sm:$0xff] %v4243
      %p4246 = scmp.lt.s32.totalorder %s21, 1
      %s4247 = scalar_select %p4246, %s21, 1
      %s4248 = smul.addr %s4247, 8
      %s4249 = smul.addr %s4248, 8
      %s4250 = scalar_lea.vmem %s10, %s4249
      // Predicated region
      $region61: #{sanet_core_forward.1} parent=59 // pred_check
        %p4251 = pneg %p254
      $region62: #{sanet_core_forward.1} parent=59 // pred_check_branch
        %4253 = sbr.rel (%p4251) target = $region64
      $region63: #{sanet_core_forward.1} parent=59 // pred_region
        _
      $region64: #{sanet_core_forward.1} parent=59 // pred_fallthru
        _
    $region60: #{sanet_core_forward.1} parent=5 // pred_fallthru
      _
    %p4254 = scmp.le.s32.totalorder 2, %s16
    // Predicated region
    $region65: #{sanet_core_forward.1} parent=5 // pred_check
      %p4255 = pneg %p4254
    $region66: #{sanet_core_forward.1} parent=5 // pred_check_branch
      %4257 = sbr.rel (%p4255) target = $region68
    $region67: #{sanet_core_forward.1} parent=5 // pred_region
      %s4258 = ssub.s32 %s16, 2
      // Predicated region
      $region69: #{sanet_core_forward.1} parent=67 // pred_check
        %p4259 = pneg %p260
      $region70: #{sanet_core_forward.1} parent=67 // pred_check_branch
        %4261 = sbr.rel (%p4259) target = $region72
      $region71: #{sanet_core_forward.1} parent=67 // pred_region
        %p4262 = scmp.lt.s32.totalorder %s22, 1
        %s4263 = scalar_select %p4262, %s22, 1
        %s4264 = smul.addr %s4263, 8
        %s4265 = smul.addr %s4264, 8
        %s4266 = scalar_lea.vmem %s10, %s4265
      $region72: #{sanet_core_forward.1} parent=67 // pred_fallthru
        _
    $region68: #{sanet_core_forward.1} parent=5 // pred_fallthru
      _
  $region6: #{sanet_core_forward.1} parent=0 // loop_footer
    %s20 = sadd.s32 1, %s16
  $region7: #{sanet_core_forward.1} parent=0 // loop_footer_branch
    %15 = sbr.rel target = $region3
  $region8: #{sanet_core_forward.1} parent=0 // loop_exit
    _

</llo_original>
